<compile_context>
chip_gen: v6e
topology: v6e:2x2x1
jax: 0.10.0
libtpu: 0.0.40
codegen_flags: <defaults>
</compile_context>

<pallas_src>
import functools

import jax
import jax.numpy as jnp
from jax import lax
from jax.experimental import pallas as pl
from jax.experimental.pallas import tpu as pltpu


# ----------------------------------------------------------------------------
# Kernel 1: valid 5x5 conv + bias + ReLU + max over adjacent output rows.
# One grid step per batch sample; the whole sample lives in VMEM.
# ----------------------------------------------------------------------------
def _conv_relu_hpool_kernel(x_ref, w_ref, b_ref, o_ref, *, c_in):
    # x_ref: (1, H*Cin, W)      one sample; row index is h*Cin + c
    # w_ref: (KW, Cout, KH*Cin) one (Cout, KH*Cin) weight matrix per kw tap
    # b_ref: (Cout, 1)
    # o_ref: (1, PH, Cout, OW)  H-pooled, ReLU'd conv rows (W not pooled yet)
    kw_taps, c_out, k_dim = w_ref.shape
    w_lanes = x_ref.shape[2]
    ow = w_lanes - kw_taps + 1
    n_row_pairs = o_ref.shape[1]

    bias = b_ref[...]                                      # (Cout, 1)

    def row_pair(ph, carry):
        r0 = 2 * ph
        # All (kh, cin) rows of the two conv windows; width stays on lanes.
        x0 = x_ref[0, pl.ds(r0 * c_in, k_dim), :]          # (KH*Cin, W) conv row r0
        x1 = x_ref[0, pl.ds((r0 + 1) * c_in, k_dim), :]    # conv row r0 + 1
        acc0 = jnp.zeros((c_out, ow), jnp.float32)
        acc1 = jnp.zeros((c_out, ow), jnp.float32)
        for t in range(kw_taps):                           # one MXU dot per kw tap
            wt = w_ref[t]                                  # (Cout, KH*Cin)
            acc0 = acc0 + jnp.dot(wt, x0[:, t:t + ow],
                                  preferred_element_type=jnp.float32)
            acc1 = acc1 + jnp.dot(wt, x1[:, t:t + ow],
                                  preferred_element_type=jnp.float32)
        # bias + ReLU commute with the row-wise max.
        o_ref[0, ph] = jnp.maximum(jnp.maximum(acc0, acc1) + bias, 0.0)
        return carry

    lax.fori_loop(0, n_row_pairs, row_pair, 0)


def conv_relu_pool(x_hcw, w_oihw, b):
    # x_hcw: (N, H*Cin, W) activations, w_oihw: torch-layout (Cout, Cin, KH, KW)
    n, hc, w_in = x_hcw.shape
    c_out, c_in, kh, kw = w_oihw.shape
    h_in = hc // c_in
    oh, ow = h_in - kh + 1, w_in - kw + 1
    ph, pw = oh // 2, ow // 2

    # (Cout, Cin, KH, KW) -> (KW, Cout, KH*Cin): contraction index is (kh, cin),
    # matching the row order of the merged (h*cin, w) activation layout.
    w_prep = jnp.transpose(w_oihw, (3, 0, 2, 1)).reshape(kw, c_out, kh * c_in)
    b_prep = b.reshape(c_out, 1)

    y = pl.pallas_call(
        functools.partial(_conv_relu_hpool_kernel, c_in=c_in),
        out_shape=jax.ShapeDtypeStruct((n, ph, c_out, ow), jnp.float32),
        grid=(n,),
        in_specs=[
            pl.BlockSpec((1, hc, w_in), lambda i: (i, 0, 0)),
            pl.BlockSpec((kw, c_out, kh * c_in), lambda i: (0, 0, 0)),
            pl.BlockSpec((c_out, 1), lambda i: (0, 0)),
        ],
        out_specs=pl.BlockSpec((1, ph, c_out, ow), lambda i: (i, 0, 0, 0)),
        compiler_params=pltpu.CompilerParams(dimension_semantics=("parallel",)),
    )(x_hcw, w_prep, b_prep)

    # W-direction half of MaxPool2d(2): stride-2 pairwise max on the (small)
    # H-pooled tensor, done in XLA (lane-strided selection is not TPU-native).
    y = jnp.max(y[..., : 2 * pw].reshape(n, ph, c_out, pw, 2), axis=-1)
    # Back to the merged (h*c, w) layout expected by the next conv / flatten.
    return y.reshape(n, ph * c_out, pw)


# ----------------------------------------------------------------------------
# Kernel 2: fc1 (K-blocked matmul + bias + ReLU) -> fc2 -> log_softmax,
# with the fc1 weight streamed through VMEM along the contraction dim.
# ----------------------------------------------------------------------------
def _mlp_head_kernel(x_ref, w1_ref, b1_ref, w2_ref, b2_ref, o_ref, acc_ref):
    step = pl.program_id(0)

    @pl.when(step == 0)
    def _():
        acc_ref[...] = jnp.zeros_like(acc_ref)

    acc_ref[...] += jnp.dot(x_ref[...], w1_ref[...],
                            preferred_element_type=jnp.float32)

    @pl.when(step == pl.num_programs(0) - 1)
    def _():
        hidden = jnp.maximum(acc_ref[...] + b1_ref[...], 0.0)
        logits = jnp.dot(hidden, w2_ref[...],
                         preferred_element_type=jnp.float32) + b2_ref[...]
        m = jnp.max(logits, axis=-1, keepdims=True)
        s = logits - m
        o_ref[...] = s - jnp.log(jnp.sum(jnp.exp(s), axis=-1, keepdims=True))


def mlp_head(x_flat, fc1_w_hcw, fc1_b, fc2_w, fc2_b, *, num_k_blocks=4):
    # fc1_w_hcw: (K, 50) fc1 weight with rows already permuted to the (h, c, w)
    # flatten order produced by the conv stack.
    n, k = x_flat.shape
    d_hidden = fc1_w_hcw.shape[1]
    d_out = fc2_w.shape[0]

    # Pad the contraction dim so every K block is a multiple of 128 lanes.
    block_k = -(-k // (num_k_blocks * 128)) * 128
    k_pad = block_k * num_k_blocks
    x_p = jnp.pad(x_flat, ((0, 0), (0, k_pad - k)))
    w1_p = jnp.pad(fc1_w_hcw, ((0, k_pad - k), (0, 0)))

    return pl.pallas_call(
        _mlp_head_kernel,
        out_shape=jax.ShapeDtypeStruct((n, d_out), jnp.float32),
        grid=(num_k_blocks,),
        in_specs=[
            pl.BlockSpec((n, block_k), lambda i: (0, i)),
            pl.BlockSpec((block_k, d_hidden), lambda i: (i, 0)),
            pl.BlockSpec((1, d_hidden), lambda i: (0, 0)),
            pl.BlockSpec((d_hidden, d_out), lambda i: (0, 0)),
            pl.BlockSpec((1, d_out), lambda i: (0, 0)),
        ],
        out_specs=pl.BlockSpec((n, d_out), lambda i: (0, 0)),
        scratch_shapes=[pltpu.VMEM((n, d_hidden), jnp.float32)],
        compiler_params=pltpu.CompilerParams(dimension_semantics=("arbitrary",)),
    )(x_p, w1_p, fc1_b.reshape(1, d_hidden), fc2_w.T, fc2_b.reshape(1, d_out))


# ----------------------------------------------------------------------------
# Full forward pass (NCHW input + torch-layout parameters, like PyTorch).
# ----------------------------------------------------------------------------
def network_forward(x_nchw, p):
    n, c_in, h, w = x_nchw.shape
    # NCHW -> merged (h*cin, w) layout: every conv window's (kh, cin) rows are
    # contiguous on the sublane dim, width stays lane-dense.
    x = jnp.transpose(x_nchw, (0, 2, 1, 3)).reshape(n, h * c_in, w)

    h1 = conv_relu_pool(x, p["conv1_w"], p["conv1_b"])    # (N, 62*10, 62)
    h2 = conv_relu_pool(h1, p["conv2_w"], p["conv2_b"])   # (N, 29*20, 29)

    c2 = p["conv2_w"].shape[0]
    ph2 = h2.shape[1] // c2
    pw2 = h2.shape[2]
    flat = h2.reshape(n, -1)                              # (h, c, w) flatten order

    d_hidden = p["fc1_w"].shape[0]
    # Fold torch's channel-major view(-1, 20*29*29) into the fc1 weight:
    # torch rows are (c, h, w)-ordered, our activations are (h, c, w)-ordered.
    w1 = p["fc1_w"].T.reshape(c2, ph2, pw2, d_hidden)
    w1 = jnp.transpose(w1, (1, 0, 2, 3)).reshape(c2 * ph2 * pw2, d_hidden)

    return mlp_head(flat, w1, p["fc1_b"], p["fc2_w"], p["fc2_b"])


# Pure-JAX reference (torch layouts) used only for the correctness check below.
def reference_forward(x_nchw, p):
    dn = ("NCHW", "OIHW", "NCHW")

    def conv_block(x, w, b):
        y = lax.conv_general_dilated(x, w, (1, 1), "VALID", dimension_numbers=dn)
        y = jnp.maximum(y + b.reshape(1, -1, 1, 1), 0.0)
        return lax.reduce_window(y, -jnp.inf, lax.max,
                                 (1, 1, 2, 2), (1, 1, 2, 2), "VALID")

    h = conv_block(conv_block(x_nchw, p["conv1_w"], p["conv1_b"]),
                   p["conv2_w"], p["conv2_b"])
    flat = h.reshape(h.shape[0], -1)
    hidden = jnp.maximum(flat @ p["fc1_w"].T + p["fc1_b"], 0.0)
    logits = hidden @ p["fc2_w"].T + p["fc2_b"]
    return jax.nn.log_softmax(logits, axis=-1)


if __name__ == "__main__":
    key = jax.random.PRNGKey(0)
    ks = jax.random.split(key, 9)
    # Deterministic synthetic parameters, in torch layouts (OIHW conv weights,
    # (out, in) fc weights), with shapes from Network.__init__.
    params = {
        "conv1_w": jax.random.normal(ks[0], (10, 3, 5, 5), jnp.float32) * 0.05,
        "conv1_b": jax.random.normal(ks[1], (10,), jnp.float32) * 0.05,
        "conv2_w": jax.random.normal(ks[2], (20, 10, 5, 5), jnp.float32) * 0.05,
        "conv2_b": jax.random.normal(ks[3], (20,), jnp.float32) * 0.05,
        "fc1_w": jax.random.normal(ks[4], (50, 20 * 29 * 29), jnp.float32) * 0.01,
        "fc1_b": jax.random.normal(ks[5], (50,), jnp.float32) * 0.01,
        "fc2_w": jax.random.normal(ks[6], (2, 50), jnp.float32) * 0.1,
        "fc2_b": jax.random.normal(ks[7], (2,), jnp.float32) * 0.1,
    }
    # fc1 = Linear(20*29*29, ...) forces 3x128x128 input: 128-5+1=124 /2=62 -5+1=58 /2=29.
    x = jax.random.normal(ks[8], (2, 3, 128, 128), jnp.float32)

    out = jax.jit(network_forward)(x, params)
    out = jax.block_until_ready(out)
    assert out.shape == (2, 2), out.shape

    ref = reference_forward(x, params)
    if not bool(jnp.allclose(out, ref, atol=1e-2, rtol=1e-2)):
        raise AssertionError(
            f"Pallas output mismatch vs reference, max abs diff = "
            f"{float(jnp.max(jnp.abs(out - ref)))}"
        )
    print("KERNEL_OK")
</pallas_src>

<mosaic_0001>
module attributes {stable_mosaic.version = 11 : i64} {
  func.func @_conv_relu_hpool_kernel(%arg0: i32, %arg1: memref<1x384x128xf32, #tpu.memory_space<vmem>>, %arg2: memref<5x10x15xf32, #tpu.memory_space<vmem>>, %arg3: memref<10x1xf32, #tpu.memory_space<vmem>>, %arg4: memref<1x62x10x124xf32, #tpu.memory_space<vmem>>) attributes {dimension_semantics = [#tpu.dimension_semantics<parallel>], iteration_bounds = array<i64: 2>, scalar_prefetch = 0 : i64, scratch_operands = 0 : i64, tpu.core_type = #tpu.core_type<tc>, window_params = [{transform_indices = @transform_0, window_bounds = array<i64: 1, 384, 128>}, {pipeline_mode = #tpu.pipeline_mode<synchronous>, transform_indices = @transform_1, window_bounds = array<i64: 5, 10, 15>}, {pipeline_mode = #tpu.pipeline_mode<synchronous>, transform_indices = @transform_2, window_bounds = array<i64: 10, 1>}, {transform_indices = @transform_3, window_bounds = array<i64: 1, 62, 10, 124>}]} {
    %c0 = arith.constant 0 : index
    %c0_0 = arith.constant 0 : index
    %0 = vector.load %arg3[%c0, %c0_0] : memref<10x1xf32, #tpu.memory_space<vmem>>, vector<10x1xf32>
    %c0_i32 = arith.constant 0 : i32
    %c62_i32 = arith.constant 62 : i32
    %1 = arith.addi %c0_i32, %c62_i32 : i32
    %c1_i32 = arith.constant 1 : i32
    scf.for %arg5 = %c0_i32 to %1 step %c1_i32  : i32 {
      %c2_i32 = arith.constant 2 : i32
      %2 = arith.muli %c2_i32, %arg5 : i32
      %c3_i32 = arith.constant 3 : i32
      %3 = arith.muli %2, %c3_i32 : i32
      %c0_2 = arith.constant 0 : index
      %4 = arith.index_cast %3 : i32 to index
      %c0_3 = arith.constant 0 : index
      %5 = vector.load %arg1[%c0_2, %4, %c0_3] : memref<1x384x128xf32, #tpu.memory_space<vmem>>, vector<1x15x128xf32>
      %6 = vector.shape_cast %5 : vector<1x15x128xf32> to vector<15x128xf32>
      %c1_i32_4 = arith.constant 1 : i32
      %7 = arith.addi %2, %c1_i32_4 : i32
      %c3_i32_5 = arith.constant 3 : i32
      %8 = arith.muli %7, %c3_i32_5 : i32
      %c0_6 = arith.constant 0 : index
      %9 = arith.index_cast %8 : i32 to index
      %c0_7 = arith.constant 0 : index
      %10 = vector.load %arg1[%c0_6, %9, %c0_7] : memref<1x384x128xf32, #tpu.memory_space<vmem>>, vector<1x15x128xf32>
      %11 = vector.shape_cast %10 : vector<1x15x128xf32> to vector<15x128xf32>
      %cst = arith.constant 0.000000e+00 : f32
      %12 = vector.broadcast %cst : f32 to vector<10x124xf32>
      %cst_8 = arith.constant 0.000000e+00 : f32
      %13 = vector.broadcast %cst_8 : f32 to vector<10x124xf32>
      %c0_9 = arith.constant 0 : index
      %c0_10 = arith.constant 0 : index
      %c0_11 = arith.constant 0 : index
      %14 = vector.load %arg2[%c0_9, %c0_10, %c0_11] : memref<5x10x15xf32, #tpu.memory_space<vmem>>, vector<1x10x15xf32>
      %15 = vector.shape_cast %14 : vector<1x10x15xf32> to vector<10x15xf32>
      %16 = vector.extract_strided_slice %6 {offsets = [0, 0], sizes = [15, 124], strides = [1, 1]} : vector<15x128xf32> to vector<15x124xf32>
      %cst_12 = arith.constant dense<0.000000e+00> : vector<10x124xf32>
      %17 = tpu.matmul %15, %16, %cst_12 {dimension_numbers = #tpu.dot_dimension_numbers<[1], [0], [0], [1], [0, 0, 1, 1], [], []>} : vector<10x15xf32>, vector<15x124xf32>, vector<10x124xf32> -> vector<10x124xf32>
      %18 = arith.addf %12, %17 : vector<10x124xf32>
      %19 = vector.extract_strided_slice %11 {offsets = [0, 0], sizes = [15, 124], strides = [1, 1]} : vector<15x128xf32> to vector<15x124xf32>
      %cst_13 = arith.constant dense<0.000000e+00> : vector<10x124xf32>
      %20 = tpu.matmul %15, %19, %cst_13 {dimension_numbers = #tpu.dot_dimension_numbers<[1], [0], [0], [1], [0, 0, 1, 1], [], []>} : vector<10x15xf32>, vector<15x124xf32>, vector<10x124xf32> -> vector<10x124xf32>
      %21 = arith.addf %13, %20 : vector<10x124xf32>
      %c1 = arith.constant 1 : index
      %c0_14 = arith.constant 0 : index
      %c0_15 = arith.constant 0 : index
      %22 = vector.load %arg2[%c1, %c0_14, %c0_15] : memref<5x10x15xf32, #tpu.memory_space<vmem>>, vector<1x10x15xf32>
      %23 = vector.shape_cast %22 : vector<1x10x15xf32> to vector<10x15xf32>
      %24 = vector.extract_strided_slice %6 {offsets = [0, 1], sizes = [15, 124], strides = [1, 1]} : vector<15x128xf32> to vector<15x124xf32>
      %cst_16 = arith.constant dense<0.000000e+00> : vector<10x124xf32>
      %25 = tpu.matmul %23, %24, %cst_16 {dimension_numbers = #tpu.dot_dimension_numbers<[1], [0], [0], [1], [0, 0, 1, 1], [], []>} : vector<10x15xf32>, vector<15x124xf32>, vector<10x124xf32> -> vector<10x124xf32>
      %26 = arith.addf %18, %25 : vector<10x124xf32>
      %27 = vector.extract_strided_slice %11 {offsets = [0, 1], sizes = [15, 124], strides = [1, 1]} : vector<15x128xf32> to vector<15x124xf32>
      %cst_17 = arith.constant dense<0.000000e+00> : vector<10x124xf32>
      %28 = tpu.matmul %23, %27, %cst_17 {dimension_numbers = #tpu.dot_dimension_numbers<[1], [0], [0], [1], [0, 0, 1, 1], [], []>} : vector<10x15xf32>, vector<15x124xf32>, vector<10x124xf32> -> vector<10x124xf32>
      %29 = arith.addf %21, %28 : vector<10x124xf32>
      %c2 = arith.constant 2 : index
      %c0_18 = arith.constant 0 : index
      %c0_19 = arith.constant 0 : index
      %30 = vector.load %arg2[%c2, %c0_18, %c0_19] : memref<5x10x15xf32, #tpu.memory_space<vmem>>, vector<1x10x15xf32>
      %31 = vector.shape_cast %30 : vector<1x10x15xf32> to vector<10x15xf32>
      %32 = vector.extract_strided_slice %6 {offsets = [0, 2], sizes = [15, 124], strides = [1, 1]} : vector<15x128xf32> to vector<15x124xf32>
      %cst_20 = arith.constant dense<0.000000e+00> : vector<10x124xf32>
      %33 = tpu.matmul %31, %32, %cst_20 {dimension_numbers = #tpu.dot_dimension_numbers<[1], [0], [0], [1], [0, 0, 1, 1], [], []>} : vector<10x15xf32>, vector<15x124xf32>, vector<10x124xf32> -> vector<10x124xf32>
      %34 = arith.addf %26, %33 : vector<10x124xf32>
      %35 = vector.extract_strided_slice %11 {offsets = [0, 2], sizes = [15, 124], strides = [1, 1]} : vector<15x128xf32> to vector<15x124xf32>
      %cst_21 = arith.constant dense<0.000000e+00> : vector<10x124xf32>
      %36 = tpu.matmul %31, %35, %cst_21 {dimension_numbers = #tpu.dot_dimension_numbers<[1], [0], [0], [1], [0, 0, 1, 1], [], []>} : vector<10x15xf32>, vector<15x124xf32>, vector<10x124xf32> -> vector<10x124xf32>
      %37 = arith.addf %29, %36 : vector<10x124xf32>
      %c3 = arith.constant 3 : index
      %c0_22 = arith.constant 0 : index
      %c0_23 = arith.constant 0 : index
      %38 = vector.load %arg2[%c3, %c0_22, %c0_23] : memref<5x10x15xf32, #tpu.memory_space<vmem>>, vector<1x10x15xf32>
      %39 = vector.shape_cast %38 : vector<1x10x15xf32> to vector<10x15xf32>
      %40 = vector.extract_strided_slice %6 {offsets = [0, 3], sizes = [15, 124], strides = [1, 1]} : vector<15x128xf32> to vector<15x124xf32>
      %cst_24 = arith.constant dense<0.000000e+00> : vector<10x124xf32>
      %41 = tpu.matmul %39, %40, %cst_24 {dimension_numbers = #tpu.dot_dimension_numbers<[1], [0], [0], [1], [0, 0, 1, 1], [], []>} : vector<10x15xf32>, vector<15x124xf32>, vector<10x124xf32> -> vector<10x124xf32>
      %42 = arith.addf %34, %41 : vector<10x124xf32>
      %43 = vector.extract_strided_slice %11 {offsets = [0, 3], sizes = [15, 124], strides = [1, 1]} : vector<15x128xf32> to vector<15x124xf32>
      %cst_25 = arith.constant dense<0.000000e+00> : vector<10x124xf32>
      %44 = tpu.matmul %39, %43, %cst_25 {dimension_numbers = #tpu.dot_dimension_numbers<[1], [0], [0], [1], [0, 0, 1, 1], [], []>} : vector<10x15xf32>, vector<15x124xf32>, vector<10x124xf32> -> vector<10x124xf32>
      %45 = arith.addf %37, %44 : vector<10x124xf32>
      %c4 = arith.constant 4 : index
      %c0_26 = arith.constant 0 : index
      %c0_27 = arith.constant 0 : index
      %46 = vector.load %arg2[%c4, %c0_26, %c0_27] : memref<5x10x15xf32, #tpu.memory_space<vmem>>, vector<1x10x15xf32>
      %47 = vector.shape_cast %46 : vector<1x10x15xf32> to vector<10x15xf32>
      %48 = vector.extract_strided_slice %6 {offsets = [0, 4], sizes = [15, 124], strides = [1, 1]} : vector<15x128xf32> to vector<15x124xf32>
      %cst_28 = arith.constant dense<0.000000e+00> : vector<10x124xf32>
      %49 = tpu.matmul %47, %48, %cst_28 {dimension_numbers = #tpu.dot_dimension_numbers<[1], [0], [0], [1], [0, 0, 1, 1], [], []>} : vector<10x15xf32>, vector<15x124xf32>, vector<10x124xf32> -> vector<10x124xf32>
      %50 = arith.addf %42, %49 : vector<10x124xf32>
      %51 = vector.extract_strided_slice %11 {offsets = [0, 4], sizes = [15, 124], strides = [1, 1]} : vector<15x128xf32> to vector<15x124xf32>
      %cst_29 = arith.constant dense<0.000000e+00> : vector<10x124xf32>
      %52 = tpu.matmul %47, %51, %cst_29 {dimension_numbers = #tpu.dot_dimension_numbers<[1], [0], [0], [1], [0, 0, 1, 1], [], []>} : vector<10x15xf32>, vector<15x124xf32>, vector<10x124xf32> -> vector<10x124xf32>
      %53 = arith.addf %45, %52 : vector<10x124xf32>
      %54 = arith.maximumf %50, %53 : vector<10x124xf32>
      %55 = vector.broadcast %0 : vector<10x1xf32> to vector<10x124xf32>
      %56 = arith.addf %54, %55 : vector<10x124xf32>
      %cst_30 = arith.constant 0.000000e+00 : f32
      %57 = vector.broadcast %cst_30 : f32 to vector<10x124xf32>
      %58 = arith.maximumf %56, %57 : vector<10x124xf32>
      %c0_31 = arith.constant 0 : index
      %59 = arith.index_cast %arg5 : i32 to index
      %c0_32 = arith.constant 0 : index
      %c0_33 = arith.constant 0 : index
      %60 = vector.load %arg4[%c0_31, %59, %c0_32, %c0_33] : memref<1x62x10x124xf32, #tpu.memory_space<vmem>>, vector<1x1x10x124xf32>
      %61 = vector.shape_cast %60 : vector<1x1x10x124xf32> to vector<10x124xf32>
      %62 = vector.shape_cast %58 : vector<10x124xf32> to vector<1x1x10x124xf32>
      tpu.vector_store %arg4[%c0_31, %59, %c0_32, %c0_33], %62 {strides = array<i32>} : memref<1x62x10x124xf32, #tpu.memory_space<vmem>>, vector<1x1x10x124xf32>,
    }
    %c62_i32_1 = arith.constant 62 : i32
    return
  }
  func.func @transform_0(%arg0: i32) -> (i32, i32, i32) {
    %c0_i32 = arith.constant 0 : i32
    %c0_i32_0 = arith.constant 0 : i32
    %c0_i32_1 = arith.constant 0 : i32
    return %arg0, %c0_i32, %c0_i32_0 : i32, i32, i32
  }
  func.func @transform_1(%arg0: i32) -> (i32, i32, i32) {
    %c0_i32 = arith.constant 0 : i32
    %c0_i32_0 = arith.constant 0 : i32
    %c0_i32_1 = arith.constant 0 : i32
    %c0_i32_2 = arith.constant 0 : i32
    return %c0_i32, %c0_i32_0, %c0_i32_1 : i32, i32, i32
  }
  func.func @transform_2(%arg0: i32) -> (i32, i32) {
    %c0_i32 = arith.constant 0 : i32
    %c0_i32_0 = arith.constant 0 : i32
    %c0_i32_1 = arith.constant 0 : i32
    return %c0_i32, %c0_i32_0 : i32, i32
  }
  func.func @transform_3(%arg0: i32) -> (i32, i32, i32, i32) {
    %c0_i32 = arith.constant 0 : i32
    %c0_i32_0 = arith.constant 0 : i32
    %c0_i32_1 = arith.constant 0 : i32
    %c0_i32_2 = arith.constant 0 : i32
    return %arg0, %c0_i32, %c0_i32_0, %c0_i32_1 : i32, i32, i32, i32
  }
}

module attributes {stable_mosaic.version = 11 : i64} {
  func.func @_conv_relu_hpool_kernel(%arg0: i32, %arg1: memref<1x620x62xf32, #tpu.memory_space<vmem>>, %arg2: memref<5x20x50xf32, #tpu.memory_space<vmem>>, %arg3: memref<20x1xf32, #tpu.memory_space<vmem>>, %arg4: memref<1x29x20x58xf32, #tpu.memory_space<vmem>>) attributes {dimension_semantics = [#tpu.dimension_semantics<parallel>], iteration_bounds = array<i64: 2>, scalar_prefetch = 0 : i64, scratch_operands = 0 : i64, tpu.core_type = #tpu.core_type<tc>, window_params = [{transform_indices = @transform_0, window_bounds = array<i64: 1, 620, 62>}, {pipeline_mode = #tpu.pipeline_mode<synchronous>, transform_indices = @transform_1, window_bounds = array<i64: 5, 20, 50>}, {pipeline_mode = #tpu.pipeline_mode<synchronous>, transform_indices = @transform_2, window_bounds = array<i64: 20, 1>}, {transform_indices = @transform_3, window_bounds = array<i64: 1, 29, 20, 58>}]} {
    %c0 = arith.constant 0 : index
    %c0_0 = arith.constant 0 : index
    %0 = vector.load %arg3[%c0, %c0_0] : memref<20x1xf32, #tpu.memory_space<vmem>>, vector<20x1xf32>
    %c0_i32 = arith.constant 0 : i32
    %c29_i32 = arith.constant 29 : i32
    %1 = arith.addi %c0_i32, %c29_i32 : i32
    %c1_i32 = arith.constant 1 : i32
    scf.for %arg5 = %c0_i32 to %1 step %c1_i32  : i32 {
      %c2_i32 = arith.constant 2 : i32
      %2 = arith.muli %c2_i32, %arg5 : i32
      %c10_i32 = arith.constant 10 : i32
      %3 = arith.muli %2, %c10_i32 : i32
      %c0_2 = arith.constant 0 : index
      %4 = arith.index_cast %3 : i32 to index
      %c0_3 = arith.constant 0 : index
      %5 = vector.load %arg1[%c0_2, %4, %c0_3] : memref<1x620x62xf32, #tpu.memory_space<vmem>>, vector<1x50x62xf32>
      %6 = vector.shape_cast %5 : vector<1x50x62xf32> to vector<50x62xf32>
      %c1_i32_4 = arith.constant 1 : i32
      %7 = arith.addi %2, %c1_i32_4 : i32
      %c10_i32_5 = arith.constant 10 : i32
      %8 = arith.muli %7, %c10_i32_5 : i32
      %c0_6 = arith.constant 0 : index
      %9 = arith.index_cast %8 : i32 to index
      %c0_7 = arith.constant 0 : index
      %10 = vector.load %arg1[%c0_6, %9, %c0_7] : memref<1x620x62xf32, #tpu.memory_space<vmem>>, vector<1x50x62xf32>
      %11 = vector.shape_cast %10 : vector<1x50x62xf32> to vector<50x62xf32>
      %cst = arith.constant 0.000000e+00 : f32
      %12 = vector.broadcast %cst : f32 to vector<20x58xf32>
      %cst_8 = arith.constant 0.000000e+00 : f32
      %13 = vector.broadcast %cst_8 : f32 to vector<20x58xf32>
      %c0_9 = arith.constant 0 : index
      %c0_10 = arith.constant 0 : index
      %c0_11 = arith.constant 0 : index
      %14 = vector.load %arg2[%c0_9, %c0_10, %c0_11] : memref<5x20x50xf32, #tpu.memory_space<vmem>>, vector<1x20x50xf32>
      %15 = vector.shape_cast %14 : vector<1x20x50xf32> to vector<20x50xf32>
      %16 = vector.extract_strided_slice %6 {offsets = [0, 0], sizes = [50, 58], strides = [1, 1]} : vector<50x62xf32> to vector<50x58xf32>
      %cst_12 = arith.constant dense<0.000000e+00> : vector<20x58xf32>
      %17 = tpu.matmul %15, %16, %cst_12 {dimension_numbers = #tpu.dot_dimension_numbers<[1], [0], [0], [1], [0, 0, 1, 1], [], []>} : vector<20x50xf32>, vector<50x58xf32>, vector<20x58xf32> -> vector<20x58xf32>
      %18 = arith.addf %12, %17 : vector<20x58xf32>
      %19 = vector.extract_strided_slice %11 {offsets = [0, 0], sizes = [50, 58], strides = [1, 1]} : vector<50x62xf32> to vector<50x58xf32>
      %cst_13 = arith.constant dense<0.000000e+00> : vector<20x58xf32>
      %20 = tpu.matmul %15, %19, %cst_13 {dimension_numbers = #tpu.dot_dimension_numbers<[1], [0], [0], [1], [0, 0, 1, 1], [], []>} : vector<20x50xf32>, vector<50x58xf32>, vector<20x58xf32> -> vector<20x58xf32>
      %21 = arith.addf %13, %20 : vector<20x58xf32>
      %c1 = arith.constant 1 : index
      %c0_14 = arith.constant 0 : index
      %c0_15 = arith.constant 0 : index
      %22 = vector.load %arg2[%c1, %c0_14, %c0_15] : memref<5x20x50xf32, #tpu.memory_space<vmem>>, vector<1x20x50xf32>
      %23 = vector.shape_cast %22 : vector<1x20x50xf32> to vector<20x50xf32>
      %24 = vector.extract_strided_slice %6 {offsets = [0, 1], sizes = [50, 58], strides = [1, 1]} : vector<50x62xf32> to vector<50x58xf32>
      %cst_16 = arith.constant dense<0.000000e+00> : vector<20x58xf32>
      %25 = tpu.matmul %23, %24, %cst_16 {dimension_numbers = #tpu.dot_dimension_numbers<[1], [0], [0], [1], [0, 0, 1, 1], [], []>} : vector<20x50xf32>, vector<50x58xf32>, vector<20x58xf32> -> vector<20x58xf32>
      %26 = arith.addf %18, %25 : vector<20x58xf32>
      %27 = vector.extract_strided_slice %11 {offsets = [0, 1], sizes = [50, 58], strides = [1, 1]} : vector<50x62xf32> to vector<50x58xf32>
      %cst_17 = arith.constant dense<0.000000e+00> : vector<20x58xf32>
      %28 = tpu.matmul %23, %27, %cst_17 {dimension_numbers = #tpu.dot_dimension_numbers<[1], [0], [0], [1], [0, 0, 1, 1], [], []>} : vector<20x50xf32>, vector<50x58xf32>, vector<20x58xf32> -> vector<20x58xf32>
      %29 = arith.addf %21, %28 : vector<20x58xf32>
      %c2 = arith.constant 2 : index
      %c0_18 = arith.constant 0 : index
      %c0_19 = arith.constant 0 : index
      %30 = vector.load %arg2[%c2, %c0_18, %c0_19] : memref<5x20x50xf32, #tpu.memory_space<vmem>>, vector<1x20x50xf32>
      %31 = vector.shape_cast %30 : vector<1x20x50xf32> to vector<20x50xf32>
      %32 = vector.extract_strided_slice %6 {offsets = [0, 2], sizes = [50, 58], strides = [1, 1]} : vector<50x62xf32> to vector<50x58xf32>
      %cst_20 = arith.constant dense<0.000000e+00> : vector<20x58xf32>
      %33 = tpu.matmul %31, %32, %cst_20 {dimension_numbers = #tpu.dot_dimension_numbers<[1], [0], [0], [1], [0, 0, 1, 1], [], []>} : vector<20x50xf32>, vector<50x58xf32>, vector<20x58xf32> -> vector<20x58xf32>
      %34 = arith.addf %26, %33 : vector<20x58xf32>
      %35 = vector.extract_strided_slice %11 {offsets = [0, 2], sizes = [50, 58], strides = [1, 1]} : vector<50x62xf32> to vector<50x58xf32>
      %cst_21 = arith.constant dense<0.000000e+00> : vector<20x58xf32>
      %36 = tpu.matmul %31, %35, %cst_21 {dimension_numbers = #tpu.dot_dimension_numbers<[1], [0], [0], [1], [0, 0, 1, 1], [], []>} : vector<20x50xf32>, vector<50x58xf32>, vector<20x58xf32> -> vector<20x58xf32>
      %37 = arith.addf %29, %36 : vector<20x58xf32>
      %c3 = arith.constant 3 : index
      %c0_22 = arith.constant 0 : index
      %c0_23 = arith.constant 0 : index
      %38 = vector.load %arg2[%c3, %c0_22, %c0_23] : memref<5x20x50xf32, #tpu.memory_space<vmem>>, vector<1x20x50xf32>
      %39 = vector.shape_cast %38 : vector<1x20x50xf32> to vector<20x50xf32>
      %40 = vector.extract_strided_slice %6 {offsets = [0, 3], sizes = [50, 58], strides = [1, 1]} : vector<50x62xf32> to vector<50x58xf32>
      %cst_24 = arith.constant dense<0.000000e+00> : vector<20x58xf32>
      %41 = tpu.matmul %39, %40, %cst_24 {dimension_numbers = #tpu.dot_dimension_numbers<[1], [0], [0], [1], [0, 0, 1, 1], [], []>} : vector<20x50xf32>, vector<50x58xf32>, vector<20x58xf32> -> vector<20x58xf32>
      %42 = arith.addf %34, %41 : vector<20x58xf32>
      %43 = vector.extract_strided_slice %11 {offsets = [0, 3], sizes = [50, 58], strides = [1, 1]} : vector<50x62xf32> to vector<50x58xf32>
      %cst_25 = arith.constant dense<0.000000e+00> : vector<20x58xf32>
      %44 = tpu.matmul %39, %43, %cst_25 {dimension_numbers = #tpu.dot_dimension_numbers<[1], [0], [0], [1], [0, 0, 1, 1], [], []>} : vector<20x50xf32>, vector<50x58xf32>, vector<20x58xf32> -> vector<20x58xf32>
      %45 = arith.addf %37, %44 : vector<20x58xf32>
      %c4 = arith.constant 4 : index
      %c0_26 = arith.constant 0 : index
      %c0_27 = arith.constant 0 : index
      %46 = vector.load %arg2[%c4, %c0_26, %c0_27] : memref<5x20x50xf32, #tpu.memory_space<vmem>>, vector<1x20x50xf32>
      %47 = vector.shape_cast %46 : vector<1x20x50xf32> to vector<20x50xf32>
      %48 = vector.extract_strided_slice %6 {offsets = [0, 4], sizes = [50, 58], strides = [1, 1]} : vector<50x62xf32> to vector<50x58xf32>
      %cst_28 = arith.constant dense<0.000000e+00> : vector<20x58xf32>
      %49 = tpu.matmul %47, %48, %cst_28 {dimension_numbers = #tpu.dot_dimension_numbers<[1], [0], [0], [1], [0, 0, 1, 1], [], []>} : vector<20x50xf32>, vector<50x58xf32>, vector<20x58xf32> -> vector<20x58xf32>
      %50 = arith.addf %42, %49 : vector<20x58xf32>
      %51 = vector.extract_strided_slice %11 {offsets = [0, 4], sizes = [50, 58], strides = [1, 1]} : vector<50x62xf32> to vector<50x58xf32>
      %cst_29 = arith.constant dense<0.000000e+00> : vector<20x58xf32>
      %52 = tpu.matmul %47, %51, %cst_29 {dimension_numbers = #tpu.dot_dimension_numbers<[1], [0], [0], [1], [0, 0, 1, 1], [], []>} : vector<20x50xf32>, vector<50x58xf32>, vector<20x58xf32> -> vector<20x58xf32>
      %53 = arith.addf %45, %52 : vector<20x58xf32>
      %54 = arith.maximumf %50, %53 : vector<20x58xf32>
      %55 = vector.broadcast %0 : vector<20x1xf32> to vector<20x58xf32>
      %56 = arith.addf %54, %55 : vector<20x58xf32>
      %cst_30 = arith.constant 0.000000e+00 : f32
      %57 = vector.broadcast %cst_30 : f32 to vector<20x58xf32>
      %58 = arith.maximumf %56, %57 : vector<20x58xf32>
      %c0_31 = arith.constant 0 : index
      %59 = arith.index_cast %arg5 : i32 to index
      %c0_32 = arith.constant 0 : index
      %c0_33 = arith.constant 0 : index
      %60 = vector.load %arg4[%c0_31, %59, %c0_32, %c0_33] : memref<1x29x20x58xf32, #tpu.memory_space<vmem>>, vector<1x1x20x58xf32>
      %61 = vector.shape_cast %60 : vector<1x1x20x58xf32> to vector<20x58xf32>
      %62 = vector.shape_cast %58 : vector<20x58xf32> to vector<1x1x20x58xf32>
      tpu.vector_store %arg4[%c0_31, %59, %c0_32, %c0_33], %62 {strides = array<i32>} : memref<1x29x20x58xf32, #tpu.memory_space<vmem>>, vector<1x1x20x58xf32>,
    }
    %c29_i32_1 = arith.constant 29 : i32
    return
  }
  func.func @transform_0(%arg0: i32) -> (i32, i32, i32) {
    %c0_i32 = arith.constant 0 : i32
    %c0_i32_0 = arith.constant 0 : i32
    %c0_i32_1 = arith.constant 0 : i32
    return %arg0, %c0_i32, %c0_i32_0 : i32, i32, i32
  }
  func.func @transform_1(%arg0: i32) -> (i32, i32, i32) {
    %c0_i32 = arith.constant 0 : i32
    %c0_i32_0 = arith.constant 0 : i32
    %c0_i32_1 = arith.constant 0 : i32
    %c0_i32_2 = arith.constant 0 : i32
    return %c0_i32, %c0_i32_0, %c0_i32_1 : i32, i32, i32
  }
  func.func @transform_2(%arg0: i32) -> (i32, i32) {
    %c0_i32 = arith.constant 0 : i32
    %c0_i32_0 = arith.constant 0 : i32
    %c0_i32_1 = arith.constant 0 : i32
    return %c0_i32, %c0_i32_0 : i32, i32
  }
  func.func @transform_3(%arg0: i32) -> (i32, i32, i32, i32) {
    %c0_i32 = arith.constant 0 : i32
    %c0_i32_0 = arith.constant 0 : i32
    %c0_i32_1 = arith.constant 0 : i32
    %c0_i32_2 = arith.constant 0 : i32
    return %arg0, %c0_i32, %c0_i32_0, %c0_i32_1 : i32, i32, i32, i32
  }
}

module attributes {stable_mosaic.version = 11 : i64} {
  func.func @_mlp_head_kernel(%arg0: i32, %arg1: memref<2x4224xf32, #tpu.memory_space<vmem>>, %arg2: memref<4224x50xf32, #tpu.memory_space<vmem>>, %arg3: memref<1x50xf32, #tpu.memory_space<vmem>>, %arg4: memref<50x2xf32, #tpu.memory_space<vmem>>, %arg5: memref<1x2xf32, #tpu.memory_space<vmem>>, %arg6: memref<2x2xf32, #tpu.memory_space<vmem>>, %arg7: memref<2x50xf32, #tpu.memory_space<vmem>>) attributes {dimension_semantics = [#tpu.dimension_semantics<arbitrary>], iteration_bounds = array<i64: 4>, scalar_prefetch = 0 : i64, scratch_operands = 1 : i64, tpu.core_type = #tpu.core_type<tc>, window_params = [{transform_indices = @transform_0, window_bounds = array<i64: 2, 4224>}, {transform_indices = @transform_1, window_bounds = array<i64: 4224, 50>}, {pipeline_mode = #tpu.pipeline_mode<synchronous>, transform_indices = @transform_2, window_bounds = array<i64: 1, 50>}, {pipeline_mode = #tpu.pipeline_mode<synchronous>, transform_indices = @transform_3, window_bounds = array<i64: 50, 2>}, {pipeline_mode = #tpu.pipeline_mode<synchronous>, transform_indices = @transform_4, window_bounds = array<i64: 1, 2>}, {pipeline_mode = #tpu.pipeline_mode<synchronous>, transform_indices = @transform_5, window_bounds = array<i64: 2, 2>}]} {
    %c0_i32 = arith.constant 0 : i32
    %0 = arith.cmpi eq, %arg0, %c0_i32 : i32
    %1 = arith.extui %0 : i1 to i32
    %c0_i32_0 = arith.constant 0 : i32
    %2 = arith.cmpi ne, %1, %c0_i32_0 : i32
    scf.if %2 {
      %cst_9 = arith.constant 0.000000e+00 : f32
      %12 = vector.broadcast %cst_9 : f32 to vector<2x50xf32>
      %c0_10 = arith.constant 0 : index
      %c0_11 = arith.constant 0 : index
      %13 = vector.load %arg7[%c0_10, %c0_11] : memref<2x50xf32, #tpu.memory_space<vmem>>, vector<2x50xf32>
      tpu.vector_store %arg7[%c0_10, %c0_11], %12 {strides = array<i32>} : memref<2x50xf32, #tpu.memory_space<vmem>>, vector<2x50xf32>,
    } else {
    }
    %c0 = arith.constant 0 : index
    %c0_1 = arith.constant 0 : index
    %3 = vector.load %arg7[%c0, %c0_1] : memref<2x50xf32, #tpu.memory_space<vmem>>, vector<2x50xf32>
    %c0_2 = arith.constant 0 : index
    %c0_3 = arith.constant 0 : index
    %4 = vector.load %arg1[%c0_2, %c0_3] : memref<2x4224xf32, #tpu.memory_space<vmem>>, vector<2x4224xf32>
    %c0_4 = arith.constant 0 : index
    %c0_5 = arith.constant 0 : index
    %5 = vector.load %arg2[%c0_4, %c0_5] : memref<4224x50xf32, #tpu.memory_space<vmem>>, vector<4224x50xf32>
    %cst = arith.constant dense<0.000000e+00> : vector<2x50xf32>
    %6 = tpu.matmul %4, %5, %cst {dimension_numbers = #tpu.dot_dimension_numbers<[1], [0], [0], [1], [0, 0, 1, 1], [], []>} : vector<2x4224xf32>, vector<4224x50xf32>, vector<2x50xf32> -> vector<2x50xf32>
    %7 = arith.addf %3, %6 : vector<2x50xf32>
    %c0_6 = arith.constant 0 : index
    %c0_7 = arith.constant 0 : index
    %8 = vector.load %arg7[%c0_6, %c0_7] : memref<2x50xf32, #tpu.memory_space<vmem>>, vector<2x50xf32>
    tpu.vector_store %arg7[%c0_6, %c0_7], %7 {strides = array<i32>} : memref<2x50xf32, #tpu.memory_space<vmem>>, vector<2x50xf32>,
    %c3_i32 = arith.constant 3 : i32
    %9 = arith.cmpi eq, %arg0, %c3_i32 : i32
    %10 = arith.extui %9 : i1 to i32
    %c0_i32_8 = arith.constant 0 : i32
    %11 = arith.cmpi ne, %10, %c0_i32_8 : i32
    scf.if %11 {
      %c0_9 = arith.constant 0 : index
      %c0_10 = arith.constant 0 : index
      %12 = vector.load %arg7[%c0_9, %c0_10] : memref<2x50xf32, #tpu.memory_space<vmem>>, vector<2x50xf32>
      %c0_11 = arith.constant 0 : index
      %c0_12 = arith.constant 0 : index
      %13 = vector.load %arg3[%c0_11, %c0_12] : memref<1x50xf32, #tpu.memory_space<vmem>>, vector<1x50xf32>
      %14 = vector.broadcast %13 : vector<1x50xf32> to vector<2x50xf32>
      %15 = arith.addf %12, %14 : vector<2x50xf32>
      %cst_13 = arith.constant 0.000000e+00 : f32
      %16 = vector.broadcast %cst_13 : f32 to vector<2x50xf32>
      %17 = arith.maximumf %15, %16 : vector<2x50xf32>
      %c0_14 = arith.constant 0 : index
      %c0_15 = arith.constant 0 : index
      %18 = vector.load %arg4[%c0_14, %c0_15] : memref<50x2xf32, #tpu.memory_space<vmem>>, vector<50x2xf32>
      %cst_16 = arith.constant dense<0.000000e+00> : vector<2x2xf32>
      %19 = tpu.matmul %17, %18, %cst_16 {dimension_numbers = #tpu.dot_dimension_numbers<[1], [0], [0], [1], [0, 0, 1, 1], [], []>} : vector<2x50xf32>, vector<50x2xf32>, vector<2x2xf32> -> vector<2x2xf32>
      %c0_17 = arith.constant 0 : index
      %c0_18 = arith.constant 0 : index
      %20 = vector.load %arg5[%c0_17, %c0_18] : memref<1x2xf32, #tpu.memory_space<vmem>>, vector<1x2xf32>
      %21 = vector.broadcast %20 : vector<1x2xf32> to vector<2x2xf32>
      %22 = arith.addf %19, %21 : vector<2x2xf32>
      %cst_19 = arith.constant dense<0xFF800000> : vector<2xf32>
      %23 = vector.multi_reduction <maximumf>, %22, %cst_19 [1] : vector<2x2xf32> to vector<2xf32>
      %24 = vector.shape_cast %23 : vector<2xf32> to vector<2x1xf32>
      %25 = vector.broadcast %24 : vector<2x1xf32> to vector<2x2xf32>
      %26 = arith.subf %22, %25 : vector<2x2xf32>
      %27 = math.exp %26 : vector<2x2xf32>
      %cst_20 = arith.constant dense<0.000000e+00> : vector<2xf32>
      %28 = vector.multi_reduction <add>, %27, %cst_20 [1] : vector<2x2xf32> to vector<2xf32>
      %29 = vector.shape_cast %28 : vector<2xf32> to vector<2x1xf32>
      %30 = math.log %29 : vector<2x1xf32>
      %31 = vector.broadcast %30 : vector<2x1xf32> to vector<2x2xf32>
      %32 = arith.subf %26, %31 : vector<2x2xf32>
      %c0_21 = arith.constant 0 : index
      %c0_22 = arith.constant 0 : index
      %33 = vector.load %arg6[%c0_21, %c0_22] : memref<2x2xf32, #tpu.memory_space<vmem>>, vector<2x2xf32>
      tpu.vector_store %arg6[%c0_21, %c0_22], %32 {strides = array<i32>} : memref<2x2xf32, #tpu.memory_space<vmem>>, vector<2x2xf32>,
    } else {
    }
    return
  }
  func.func @transform_0(%arg0: i32) -> (i32, i32) {
    %c0_i32 = arith.constant 0 : i32
    %c0_i32_0 = arith.constant 0 : i32
    return %c0_i32, %arg0 : i32, i32
  }
  func.func @transform_1(%arg0: i32) -> (i32, i32) {
    %c0_i32 = arith.constant 0 : i32
    %c0_i32_0 = arith.constant 0 : i32
    return %arg0, %c0_i32 : i32, i32
  }
  func.func @transform_2(%arg0: i32) -> (i32, i32) {
    %c0_i32 = arith.constant 0 : i32
    %c0_i32_0 = arith.constant 0 : i32
    %c0_i32_1 = arith.constant 0 : i32
    return %c0_i32, %c0_i32_0 : i32, i32
  }
  func.func @transform_3(%arg0: i32) -> (i32, i32) {
    %c0_i32 = arith.constant 0 : i32
    %c0_i32_0 = arith.constant 0 : i32
    %c0_i32_1 = arith.constant 0 : i32
    return %c0_i32, %c0_i32_0 : i32, i32
  }
  func.func @transform_4(%arg0: i32) -> (i32, i32) {
    %c0_i32 = arith.constant 0 : i32
    %c0_i32_0 = arith.constant 0 : i32
    %c0_i32_1 = arith.constant 0 : i32
    return %c0_i32, %c0_i32_0 : i32, i32
  }
  func.func @transform_5(%arg0: i32) -> (i32, i32) {
    %c0_i32 = arith.constant 0 : i32
    %c0_i32_0 = arith.constant 0 : i32
    %c0_i32_1 = arith.constant 0 : i32
    return %c0_i32, %c0_i32_0 : i32, i32
  }
}

</mosaic_0001>

<llo_original>
// kernel: network_forward.3
$region0: #{network_forward.3}
  #allocation0 [shape = 'u32[]', space=smem, size = 0x4, offset = 0x4, fixed_abs, tag = 'smem constant byte address 0x4 - core index']
  #allocation1 [shape = 'u32[144,128]{1,0:T(1,128)}', space=vmem, size = 0x12000, scoped, tag = 'internal scratch']
  %s0 = inlined_call_operand.vmem [shape: f32[2,384,128], index: 0, kind: input, shape index: {}]
  %s1 = inlined_call_operand.vmem [shape: f32[5,10,15], index: 1, kind: input, shape index: {}]
  %s2 = inlined_call_operand.vmem [shape: f32[10,1], index: 2, kind: input, shape index: {}]
  %s3 = inlined_call_operand.vmem [shape: f32[2,62,10,124], index: 3, kind: output, shape index: {}]
  %s4 = sld [smem:[#allocation0]]
  $region52: #{network_forward.3} parent=0
    _
  %s6 = ssub.s32 1, %s4
  %s7 = scalar_select 0, %s6, %s4
  loop: start=0, step=1, limit=4
  $region2: #{network_forward.3} parent=0 // loop_pre_header
    _
  $region3: #{network_forward.3} parent=0 // loop_header
    %s9 = sphi 0, %s13
    %p10 = scmp.ge.s32.totalorder %s9, 4
    %s19 = sphi 0, %s21
    %s22 = sphi 0, %s19
    %s23 = sphi 0, %s22
    %s39 = sphi 0, %s23
    %s43 = sphi 0, %s43
    %s45 = sphi 0, %s43
    %s46 = sphi 0, %s45
    %s60 = sphi 0, %s46
    %s64 = sphi 0, %s64
    %s66 = sphi 0, %s64
    %s67 = sphi 0, %s66
    %s81 = sphi 0, %s67
    %s87 = sphi 0, %s89
    %s90 = sphi 0, %s87
    %s91 = sphi 0, %s90
    %s107 = sphi 0, %s91
  $region4: #{network_forward.3} parent=0 // loop_header_branch
    %12 = sbr.rel (%p10) target = $region8
  $region5: #{network_forward.3} parent=0 // loop_body
    %s14 = ssub.s32 %s9, 1
    %s15 = ssub.s32 %s9, 2
    %s16 = sadd.s32 %s9, 1
    %s17 = ssub.s32 %s9, %s16
    %p18 = scmp.eq.s32.totalorder %s17, 0
    %s20 = sadd.s32 %s19, 1
    %s21 = scalar_select %p18, %s19, %s20
    %p24 = pneg %p18
    %p25 = scmp.eq.s32.totalorder %s9, 1
    %p26 = por %p24, %p25
    %p27 = scmp.ne.s32.totalorder %s19, %s22
    %p28 = scmp.eq.s32.totalorder %s9, 0
    %p29 = por %p27, %p28
    %p30 = scmp.ne.s32.totalorder %s19, %s22
    %p31 = scmp.eq.s32.totalorder %s14, 1
    %p32 = por %p30, %p31
    %p33 = scmp.ne.s32.totalorder %s22, %s23
    %p34 = scmp.eq.s32.totalorder %s14, 0
    %p35 = por %p33, %p34
    %p36 = scmp.ne.s32.totalorder %s22, %s23
    %p37 = scmp.eq.s32.totalorder %s15, 1
    %p38 = por %p36, %p37
    %p40 = scmp.ne.s32.totalorder %s23, %s39
    %p41 = scmp.eq.s32.totalorder %s15, 0
    %p42 = por %p40, %p41
    %s44 = sadd.s32 %s43, 1
    %p47 = scmp.eq.s32.totalorder %s9, 1
    %p48 = scmp.ne.s32.totalorder %s43, %s45
    %p49 = scmp.eq.s32.totalorder %s9, 0
    %p50 = por %p48, %p49
    %p51 = scmp.ne.s32.totalorder %s43, %s45
    %p52 = scmp.eq.s32.totalorder %s14, 1
    %p53 = por %p51, %p52
    %p54 = scmp.ne.s32.totalorder %s45, %s46
    %p55 = scmp.eq.s32.totalorder %s14, 0
    %p56 = por %p54, %p55
    %p57 = scmp.ne.s32.totalorder %s45, %s46
    %p58 = scmp.eq.s32.totalorder %s15, 1
    %p59 = por %p57, %p58
    %p61 = scmp.ne.s32.totalorder %s46, %s60
    %p62 = scmp.eq.s32.totalorder %s15, 0
    %p63 = por %p61, %p62
    %s65 = sadd.s32 %s64, 1
    %p68 = scmp.eq.s32.totalorder %s9, 1
    %p69 = scmp.ne.s32.totalorder %s64, %s66
    %p70 = scmp.eq.s32.totalorder %s9, 0
    %p71 = por %p69, %p70
    %p72 = scmp.ne.s32.totalorder %s64, %s66
    %p73 = scmp.eq.s32.totalorder %s14, 1
    %p74 = por %p72, %p73
    %p75 = scmp.ne.s32.totalorder %s66, %s67
    %p76 = scmp.eq.s32.totalorder %s14, 0
    %p77 = por %p75, %p76
    %p78 = scmp.ne.s32.totalorder %s66, %s67
    %p79 = scmp.eq.s32.totalorder %s15, 1
    %p80 = por %p78, %p79
    %p82 = scmp.ne.s32.totalorder %s67, %s81
    %p83 = scmp.eq.s32.totalorder %s15, 0
    %p84 = por %p82, %p83
    %s85 = ssub.s32 %s9, %s16
    %p86 = scmp.eq.s32.totalorder %s85, 0
    %s88 = sadd.s32 %s87, 1
    %s89 = scalar_select %p86, %s87, %s88
    %p92 = pneg %p86
    %p93 = scmp.eq.s32.totalorder %s9, 1
    %p94 = por %p92, %p93
    %p95 = scmp.ne.s32.totalorder %s87, %s90
    %p96 = scmp.eq.s32.totalorder %s9, 0
    %p97 = por %p95, %p96
    %p98 = scmp.ne.s32.totalorder %s87, %s90
    %p99 = scmp.eq.s32.totalorder %s14, 1
    %p100 = por %p98, %p99
    %p101 = scmp.ne.s32.totalorder %s90, %s91
    %p102 = scmp.eq.s32.totalorder %s14, 0
    %p103 = por %p101, %p102
    %p104 = scmp.ne.s32.totalorder %s90, %s91
    %p105 = scmp.eq.s32.totalorder %s15, 1
    %p106 = por %p104, %p105
    %p108 = scmp.ne.s32.totalorder %s91, %s107
    %p109 = scmp.eq.s32.totalorder %s15, 0
    %p110 = por %p108, %p109
    %p111 = scmp.le.s32.totalorder 1, %s9
    %p112 = scmp.lt.s32.totalorder %s9, 3
    %p113 = pnand %p111, %p112
    %p114 = pneg %p113
    // Predicated region
    $region9: #{network_forward.3} parent=5 // pred_check
      _
    $region10: #{network_forward.3} parent=5 // pred_check_branch
      %116 = sbr.rel (%p113) target = $region12
    $region11: #{network_forward.3} parent=5 // pred_region
      %s117 = ssub.s32 %s9, 1
      // Predicated region
      $region13: #{network_forward.3} parent=11 // pred_check
        %p118 = pneg %p56
      $region14: #{network_forward.3} parent=11 // pred_check_branch
        %120 = sbr.rel (%p118) target = $region16
      $region15: #{network_forward.3} parent=11 // pred_region
        _
      $region16: #{network_forward.3} parent=11 // pred_fallthru
        _
      // Predicated region
      $region17: #{network_forward.3} parent=11 // pred_check
        %p121 = pneg %p77
      $region18: #{network_forward.3} parent=11 // pred_check_branch
        %123 = sbr.rel (%p121) target = $region20
      $region19: #{network_forward.3} parent=11 // pred_region
        _
      $region20: #{network_forward.3} parent=11 // pred_fallthru
        _
    $region12: #{network_forward.3} parent=5 // pred_fallthru
      _
    %p124 = scmp.lt.s32.totalorder %s9, 2
    // Predicated region
    $region21: #{network_forward.3} parent=5 // pred_check
      %p125 = pneg %p124
    $region22: #{network_forward.3} parent=5 // pred_check_branch
      %127 = sbr.rel (%p125) target = $region24
    $region23: #{network_forward.3} parent=5 // pred_region
      // Predicated region
      $region25: #{network_forward.3} parent=23 // pred_check
        %p128 = pneg %p29
      $region26: #{network_forward.3} parent=23 // pred_check_branch
        %130 = sbr.rel (%p128) target = $region28
      $region27: #{network_forward.3} parent=23 // pred_region
        %p131 = scmp.lt.s32.totalorder %s9, 1
        %s132 = scalar_select %p131, %s9, 1
        %s133 = smul.addr %s132, 48
        %s134 = smul.addr %s133, 8
        %s135 = scalar_lea.vmem %s0, %s134
      $region28: #{network_forward.3} parent=23 // pred_fallthru
        _
    $region24: #{network_forward.3} parent=5 // pred_fallthru
      _
    %p136 = scmp.le.s32.totalorder 1, %s9
    %p137 = scmp.lt.s32.totalorder %s9, 3
    %p138 = pnand %p136, %p137
    %p139 = pneg %p138
    // Predicated region
    $region29: #{network_forward.3} parent=5 // pred_check
      _
    $region30: #{network_forward.3} parent=5 // pred_check_branch
      %141 = sbr.rel (%p138) target = $region32
    $region31: #{network_forward.3} parent=5 // pred_region
      %s142 = ssub.s32 %s9, 1
      %p143 = scmp.lt.s32.totalorder %s14, 1
      %s144 = scalar_select %p143, %s14, 1
      %s145 = smul.addr %s144, 48
      %s146 = smul.addr %s145, 8
      %s147 = scalar_lea.vmem %s0, %s146
      %p148 = pneg %p35
      %p149 = pneg %p32
      %p150 = pneg %p56
      %p151 = pneg %p53
      %p152 = pneg %p77
      %p153 = pneg %p74
      %p154 = pneg %p103
      %p155 = pneg %p100
      %p156 = scmp.lt.s32.totalorder %s14, 1
      %s157 = scalar_select %p156, %s14, 1
      %s158 = smul.addr %s157, 124
      %s159 = smul.addr %s158, 8
      %s160 = scalar_lea.vmem %s3, %s159
      %p161 = scmp.lt.s32.totalorder %s14, 1
      %s162 = scalar_select %p161, %s14, 1
      %s163 = smul.addr %s162, 48
      %s164 = smul.addr %s163, 8
      %s165 = scalar_lea.vmem %s0, %s164
      %p166 = scmp.lt.s32.totalorder %s14, 1
      %s167 = scalar_select %p166, %s14, 1
      %s168 = smul.addr %s167, 124
      %s169 = smul.addr %s168, 8
      %s170 = scalar_lea.vmem %s3, %s169
      %v171 = vld [vmem:[%s2] sm:$0xff]
      %v172 = vld [vmem:[%s2 + $0x8] sm:$0x3]
      loop: start=0, step=1, limit=62
      $region33: #{network_forward.3} parent=31 // loop_pre_header
        _
      $region34: #{network_forward.3} parent=31 // loop_header
        %s174 = sphi 0, %s178
        %p175 = scmp.ge.s32.totalorder %s174, 62
      $region35: #{network_forward.3} parent=31 // loop_header_branch
        %177 = sbr.rel (%p175) target = $region39
      $region36: #{network_forward.3} parent=31 // loop_body
        %s179 = smul.u32 %s174, 2
        %s180 = smul.u32 %s174, 6
        %s181 = scalar_lea.vmem %s165, %s180
        %v182 = vld [vmem:[%s181] sm:$0xff]
        %v183 = vld [vmem:[%s181 + $0x8] sm:$0x7f]
        %s184 = sadd.s32 %s179, 1
        %s185 = smul.u32 %s184, 3
        %s186 = scalar_lea.vmem %s165, %s185
        %v187 = vld [vmem:[%s186] sm:$0xff]
        %v188 = vld [vmem:[%s186 + $0x8] sm:$0x7f]
        %v189 = vld [vmem:[%s1] sm:$0xff]
        %v190 = vld [vmem:[%s1 + $0x8] sm:$0x3]
        %s191 = scalar_lea.vmem %s1, 16
        %v192 = vld [vmem:[%s191] sm:$0xff]
        %v193 = vld [vmem:[%s191 + $0x8] sm:$0x3]
        %196 = vrot.lane.b32.xlu0 %v182, 127
        %v197 = vpop.permute.xlu0 %196
        %198 = vrot.lane.b32.xlu0 %v183, 127
        %v199 = vpop.permute.xlu0 %198
        %vm201 = vcmask 121856
        %v203 = vsel %vm201, %v192, 0
        %v206 = vsel %vm201, %v193, 0
        %vm208 = vcmask 1046528
        %v209 = vsel %vm208, %v199, 0
        %211 = vmatprep.subr.mxu0 0.0
        %212 = vmatpush1.msra.mxu0 0.0
        %213 = vmatprep.subr.mxu0 0.0
        %214 = vmatpush1.msra.mxu0 0.0
        %215 = vmatprep.subr.mxu0 0.0
        %216 = vmatpush1.msra.mxu0 0.0
        %217 = vmatprep.subr.mxu0 0.0
        %218 = vmatpush1.msra.mxu0 0.0
        %219 = vmatprep.subr.mxu0 0.0
        %220 = vmatpush1.msra.mxu0 0.0
        %221 = vmatprep.subr.mxu0 0.0
        %222 = vmatpush1.msra.mxu0 0.0
        %223 = vmatprep.subr.mxu0 0.0
        %224 = vmatpush1.msra.mxu0 0.0
        %225 = vmatprep.subr.mxu0 0.0
        %226 = vmatpush1.msra.mxu0 0.0
        %227 = vmatprep.subr.mxu0 0.0
        %228 = vmatpush1.msra.mxu0 0.0
        %229 = vmatprep.subr.mxu0 0.0
        %230 = vmatpush1.msra.mxu0 0.0
        %231 = vmatprep.subr.mxu0 0.0
        %232 = vmatpush1.msra.mxu0 0.0
        %233 = vmatprep.subr.mxu0 0.0
        %234 = vmatpush1.msra.mxu0 0.0
        %235 = vmatprep.subr.mxu0 0.0
        %236 = vmatpush1.msra.mxu0 0.0
        %237 = vmatprep.subr.mxu0 0.0
        %238 = vmatpush1.msra.mxu0 0.0
        %239 = vmatprep.subr.mxu0 0.0
        %240 = vmatpush1.msra.mxu0 %v209
        %241 = vmatprep.subr.mxu0 0.0
        %242 = vmatpush1.msra.mxu0 %v197
        %243 = vmatprep.subr.mxu0 0.0
        %244 = vmatpush2.msra.mxu0 0.0
        %245 = vmatprep.subr.mxu0 0.0
        %246 = vmatpush2.msra.mxu0 0.0
        %247 = vmatprep.subr.mxu0 0.0
        %248 = vmatpush2.msra.mxu0 0.0
        %249 = vmatprep.subr.mxu0 0.0
        %250 = vmatpush2.msra.mxu0 0.0
        %251 = vmatprep.subr.mxu0 0.0
        %252 = vmatpush2.msra.mxu0 0.0
        %253 = vmatprep.subr.mxu0 0.0
        %254 = vmatpush2.msra.mxu0 0.0
        %255 = vmatprep.subr.mxu0 0.0
        %256 = vmatpush2.msra.mxu0 0.0
        %257 = vmatprep.subr.mxu0 0.0
        %258 = vmatpush2.msra.mxu0 0.0
        %259 = vmatprep.subr.mxu0 0.0
        %260 = vmatpush2.msra.mxu0 0.0
        %261 = vmatprep.subr.mxu0 0.0
        %262 = vmatpush2.msra.mxu0 0.0
        %263 = vmatprep.subr.mxu0 0.0
        %264 = vmatpush2.msra.mxu0 0.0
        %265 = vmatprep.subr.mxu0 0.0
        %266 = vmatpush2.msra.mxu0 0.0
        %267 = vmatprep.subr.mxu0 0.0
        %268 = vmatpush2.msra.mxu0 0.0
        %269 = vmatprep.subr.mxu0 0.0
        %270 = vmatpush2.msra.mxu0 0.0
        %271 = vmatprep.subr.mxu0 0.0
        %272 = vmatpush2.msra.mxu0 0.0
        %273 = vmatprep.subr.mxu0 0.0
        %274 = vmatpush2.msra.mxu0 0.0
        %275 = vmatprep.mubr.f32.mxu0 0.0
        %276 = vmatmul.mubr.f32.gmra.mxu0 %v203
        %v277 = vpop.f32.mrf.mxu0
        %v278 = vadd.f32 0.0, %v277
        %v279 = vpop.f32.mrf.mxu0
        %280 = vmatprep.mubr.f32.mxu0 0.0
        %281 = vmatmul.mubr.f32.gmra.mxu0 %v206
        %v282 = vpop.f32.mrf.mxu0
        %v283 = vadd.f32 0.0, %v282
        %v284 = vpop.f32.mrf.mxu0
        %285 = vdwg.mxu0
        %v287 = vsel %vm201, %v189, 0
        %v290 = vsel %vm201, %v190, 0
        %v292 = vsel %vm208, %v183, 0
        %294 = vmatprep.subr.mxu0 0.0
        %295 = vmatpush1.msra.mxu0 0.0
        %296 = vmatprep.subr.mxu0 0.0
        %297 = vmatpush1.msra.mxu0 0.0
        %298 = vmatprep.subr.mxu0 0.0
        %299 = vmatpush1.msra.mxu0 0.0
        %300 = vmatprep.subr.mxu0 0.0
        %301 = vmatpush1.msra.mxu0 0.0
        %302 = vmatprep.subr.mxu0 0.0
        %303 = vmatpush1.msra.mxu0 0.0
        %304 = vmatprep.subr.mxu0 0.0
        %305 = vmatpush1.msra.mxu0 0.0
        %306 = vmatprep.subr.mxu0 0.0
        %307 = vmatpush1.msra.mxu0 0.0
        %308 = vmatprep.subr.mxu0 0.0
        %309 = vmatpush1.msra.mxu0 0.0
        %310 = vmatprep.subr.mxu0 0.0
        %311 = vmatpush1.msra.mxu0 0.0
        %312 = vmatprep.subr.mxu0 0.0
        %313 = vmatpush1.msra.mxu0 0.0
        %314 = vmatprep.subr.mxu0 0.0
        %315 = vmatpush1.msra.mxu0 0.0
        %316 = vmatprep.subr.mxu0 0.0
        %317 = vmatpush1.msra.mxu0 0.0
        %318 = vmatprep.subr.mxu0 0.0
        %319 = vmatpush1.msra.mxu0 0.0
        %320 = vmatprep.subr.mxu0 0.0
        %321 = vmatpush1.msra.mxu0 0.0
        %322 = vmatprep.subr.mxu0 0.0
        %323 = vmatpush1.msra.mxu0 %v292
        %324 = vmatprep.subr.mxu0 0.0
        %325 = vmatpush1.msra.mxu0 %v182
        %326 = vmatprep.subr.mxu0 0.0
        %327 = vmatpush2.msra.mxu0 0.0
        %328 = vmatprep.subr.mxu0 0.0
        %329 = vmatpush2.msra.mxu0 0.0
        %330 = vmatprep.subr.mxu0 0.0
        %331 = vmatpush2.msra.mxu0 0.0
        %332 = vmatprep.subr.mxu0 0.0
        %333 = vmatpush2.msra.mxu0 0.0
        %334 = vmatprep.subr.mxu0 0.0
        %335 = vmatpush2.msra.mxu0 0.0
        %336 = vmatprep.subr.mxu0 0.0
        %337 = vmatpush2.msra.mxu0 0.0
        %338 = vmatprep.subr.mxu0 0.0
        %339 = vmatpush2.msra.mxu0 0.0
        %340 = vmatprep.subr.mxu0 0.0
        %341 = vmatpush2.msra.mxu0 0.0
        %342 = vmatprep.subr.mxu0 0.0
        %343 = vmatpush2.msra.mxu0 0.0
        %344 = vmatprep.subr.mxu0 0.0
        %345 = vmatpush2.msra.mxu0 0.0
        %346 = vmatprep.subr.mxu0 0.0
        %347 = vmatpush2.msra.mxu0 0.0
        %348 = vmatprep.subr.mxu0 0.0
        %349 = vmatpush2.msra.mxu0 0.0
        %350 = vmatprep.subr.mxu0 0.0
        %351 = vmatpush2.msra.mxu0 0.0
        %352 = vmatprep.subr.mxu0 0.0
        %353 = vmatpush2.msra.mxu0 0.0
        %354 = vmatprep.subr.mxu0 0.0
        %355 = vmatpush2.msra.mxu0 0.0
        %356 = vmatprep.subr.mxu0 0.0
        %357 = vmatpush2.msra.mxu0 0.0
        %358 = vmatprep.mubr.f32.mxu0 0.0
        %359 = vmatmul.mubr.f32.gmra.mxu0 %v287
        %v360 = vpop.f32.mrf.mxu0
        %v361 = vadd.f32 %v278, %v360
        %v362 = vpop.f32.mrf.mxu0
        %363 = vmatprep.mubr.f32.mxu0 0.0
        %364 = vmatmul.mubr.f32.gmra.mxu0 %v290
        %v365 = vpop.f32.mrf.mxu0
        %v366 = vadd.f32 %v283, %v365
        %v367 = vpop.f32.mrf.mxu0
        %368 = vdwg.mxu0
        %371 = vrot.lane.b32.xlu0 %v187, 127
        %v372 = vpop.permute.xlu0 %371
        %373 = vrot.lane.b32.xlu0 %v188, 127
        %v374 = vpop.permute.xlu0 %373
        %v376 = vsel %vm208, %v374, 0
        %378 = vmatprep.subr.mxu0 0.0
        %379 = vmatpush1.msra.mxu0 0.0
        %380 = vmatprep.subr.mxu0 0.0
        %381 = vmatpush1.msra.mxu0 0.0
        %382 = vmatprep.subr.mxu0 0.0
        %383 = vmatpush1.msra.mxu0 0.0
        %384 = vmatprep.subr.mxu0 0.0
        %385 = vmatpush1.msra.mxu0 0.0
        %386 = vmatprep.subr.mxu0 0.0
        %387 = vmatpush1.msra.mxu0 0.0
        %388 = vmatprep.subr.mxu0 0.0
        %389 = vmatpush1.msra.mxu0 0.0
        %390 = vmatprep.subr.mxu0 0.0
        %391 = vmatpush1.msra.mxu0 0.0
        %392 = vmatprep.subr.mxu0 0.0
        %393 = vmatpush1.msra.mxu0 0.0
        %394 = vmatprep.subr.mxu0 0.0
        %395 = vmatpush1.msra.mxu0 0.0
        %396 = vmatprep.subr.mxu0 0.0
        %397 = vmatpush1.msra.mxu0 0.0
        %398 = vmatprep.subr.mxu0 0.0
        %399 = vmatpush1.msra.mxu0 0.0
        %400 = vmatprep.subr.mxu0 0.0
        %401 = vmatpush1.msra.mxu0 0.0
        %402 = vmatprep.subr.mxu0 0.0
        %403 = vmatpush1.msra.mxu0 0.0
        %404 = vmatprep.subr.mxu0 0.0
        %405 = vmatpush1.msra.mxu0 0.0
        %406 = vmatprep.subr.mxu0 0.0
        %407 = vmatpush1.msra.mxu0 %v376
        %408 = vmatprep.subr.mxu0 0.0
        %409 = vmatpush1.msra.mxu0 %v372
        %410 = vmatprep.subr.mxu0 0.0
        %411 = vmatpush2.msra.mxu0 0.0
        %412 = vmatprep.subr.mxu0 0.0
        %413 = vmatpush2.msra.mxu0 0.0
        %414 = vmatprep.subr.mxu0 0.0
        %415 = vmatpush2.msra.mxu0 0.0
        %416 = vmatprep.subr.mxu0 0.0
        %417 = vmatpush2.msra.mxu0 0.0
        %418 = vmatprep.subr.mxu0 0.0
        %419 = vmatpush2.msra.mxu0 0.0
        %420 = vmatprep.subr.mxu0 0.0
        %421 = vmatpush2.msra.mxu0 0.0
        %422 = vmatprep.subr.mxu0 0.0
        %423 = vmatpush2.msra.mxu0 0.0
        %424 = vmatprep.subr.mxu0 0.0
        %425 = vmatpush2.msra.mxu0 0.0
        %426 = vmatprep.subr.mxu0 0.0
        %427 = vmatpush2.msra.mxu0 0.0
        %428 = vmatprep.subr.mxu0 0.0
        %429 = vmatpush2.msra.mxu0 0.0
        %430 = vmatprep.subr.mxu0 0.0
        %431 = vmatpush2.msra.mxu0 0.0
        %432 = vmatprep.subr.mxu0 0.0
        %433 = vmatpush2.msra.mxu0 0.0
        %434 = vmatprep.subr.mxu0 0.0
        %435 = vmatpush2.msra.mxu0 0.0
        %436 = vmatprep.subr.mxu0 0.0
        %437 = vmatpush2.msra.mxu0 0.0
        %438 = vmatprep.subr.mxu0 0.0
        %439 = vmatpush2.msra.mxu0 0.0
        %440 = vmatprep.subr.mxu0 0.0
        %441 = vmatpush2.msra.mxu0 0.0
        %442 = vmatprep.mubr.f32.mxu0 0.0
        %443 = vmatmul.mubr.f32.gmra.mxu0 %v203
        %v444 = vpop.f32.mrf.mxu0
        %v445 = vadd.f32 0.0, %v444
        %v446 = vpop.f32.mrf.mxu0
        %447 = vmatprep.mubr.f32.mxu0 0.0
        %448 = vmatmul.mubr.f32.gmra.mxu0 %v206
        %v449 = vpop.f32.mrf.mxu0
        %v450 = vadd.f32 0.0, %v449
        %v451 = vpop.f32.mrf.mxu0
        %452 = vdwg.mxu0
        %v453 = vsel %vm208, %v188, 0
        %455 = vmatprep.subr.mxu0 0.0
        %456 = vmatpush1.msra.mxu0 0.0
        %457 = vmatprep.subr.mxu0 0.0
        %458 = vmatpush1.msra.mxu0 0.0
        %459 = vmatprep.subr.mxu0 0.0
        %460 = vmatpush1.msra.mxu0 0.0
        %461 = vmatprep.subr.mxu0 0.0
        %462 = vmatpush1.msra.mxu0 0.0
        %463 = vmatprep.subr.mxu0 0.0
        %464 = vmatpush1.msra.mxu0 0.0
        %465 = vmatprep.subr.mxu0 0.0
        %466 = vmatpush1.msra.mxu0 0.0
        %467 = vmatprep.subr.mxu0 0.0
        %468 = vmatpush1.msra.mxu0 0.0
        %469 = vmatprep.subr.mxu0 0.0
        %470 = vmatpush1.msra.mxu0 0.0
        %471 = vmatprep.subr.mxu0 0.0
        %472 = vmatpush1.msra.mxu0 0.0
        %473 = vmatprep.subr.mxu0 0.0
        %474 = vmatpush1.msra.mxu0 0.0
        %475 = vmatprep.subr.mxu0 0.0
        %476 = vmatpush1.msra.mxu0 0.0
        %477 = vmatprep.subr.mxu0 0.0
        %478 = vmatpush1.msra.mxu0 0.0
        %479 = vmatprep.subr.mxu0 0.0
        %480 = vmatpush1.msra.mxu0 0.0
        %481 = vmatprep.subr.mxu0 0.0
        %482 = vmatpush1.msra.mxu0 0.0
        %483 = vmatprep.subr.mxu0 0.0
        %484 = vmatpush1.msra.mxu0 %v453
        %485 = vmatprep.subr.mxu0 0.0
        %486 = vmatpush1.msra.mxu0 %v187
        %487 = vmatprep.subr.mxu0 0.0
        %488 = vmatpush2.msra.mxu0 0.0
        %489 = vmatprep.subr.mxu0 0.0
        %490 = vmatpush2.msra.mxu0 0.0
        %491 = vmatprep.subr.mxu0 0.0
        %492 = vmatpush2.msra.mxu0 0.0
        %493 = vmatprep.subr.mxu0 0.0
        %494 = vmatpush2.msra.mxu0 0.0
        %495 = vmatprep.subr.mxu0 0.0
        %496 = vmatpush2.msra.mxu0 0.0
        %497 = vmatprep.subr.mxu0 0.0
        %498 = vmatpush2.msra.mxu0 0.0
        %499 = vmatprep.subr.mxu0 0.0
        %500 = vmatpush2.msra.mxu0 0.0
        %501 = vmatprep.subr.mxu0 0.0
        %502 = vmatpush2.msra.mxu0 0.0
        %503 = vmatprep.subr.mxu0 0.0
        %504 = vmatpush2.msra.mxu0 0.0
        %505 = vmatprep.subr.mxu0 0.0
        %506 = vmatpush2.msra.mxu0 0.0
        %507 = vmatprep.subr.mxu0 0.0
        %508 = vmatpush2.msra.mxu0 0.0
        %509 = vmatprep.subr.mxu0 0.0
        %510 = vmatpush2.msra.mxu0 0.0
        %511 = vmatprep.subr.mxu0 0.0
        %512 = vmatpush2.msra.mxu0 0.0
        %513 = vmatprep.subr.mxu0 0.0
        %514 = vmatpush2.msra.mxu0 0.0
        %515 = vmatprep.subr.mxu0 0.0
        %516 = vmatpush2.msra.mxu0 0.0
        %517 = vmatprep.subr.mxu0 0.0
        %518 = vmatpush2.msra.mxu0 0.0
        %519 = vmatprep.mubr.f32.mxu0 0.0
        %520 = vmatmul.mubr.f32.gmra.mxu0 %v287
        %v521 = vpop.f32.mrf.mxu0
        %v522 = vadd.f32 %v445, %v521
        %v523 = vpop.f32.mrf.mxu0
        %524 = vmatprep.mubr.f32.mxu0 0.0
        %525 = vmatmul.mubr.f32.gmra.mxu0 %v290
        %v526 = vpop.f32.mrf.mxu0
        %v527 = vadd.f32 %v450, %v526
        %v528 = vpop.f32.mrf.mxu0
        %529 = vdwg.mxu0
        %s530 = scalar_lea.vmem %s1, 32
        %v531 = vld [vmem:[%s530] sm:$0xff]
        %v532 = vld [vmem:[%s530 + $0x8] sm:$0x3]
        %533 = vrot.lane.b32.xlu0 %v182, 126
        %v534 = vpop.permute.xlu0 %533
        %535 = vrot.lane.b32.xlu0 %v183, 126
        %v536 = vpop.permute.xlu0 %535
        %v539 = vsel %vm201, %v531, 0
        %v542 = vsel %vm201, %v532, 0
        %v544 = vsel %vm208, %v536, 0
        %546 = vmatprep.subr.mxu0 0.0
        %547 = vmatpush1.msra.mxu0 0.0
        %548 = vmatprep.subr.mxu0 0.0
        %549 = vmatpush1.msra.mxu0 0.0
        %550 = vmatprep.subr.mxu0 0.0
        %551 = vmatpush1.msra.mxu0 0.0
        %552 = vmatprep.subr.mxu0 0.0
        %553 = vmatpush1.msra.mxu0 0.0
        %554 = vmatprep.subr.mxu0 0.0
        %555 = vmatpush1.msra.mxu0 0.0
        %556 = vmatprep.subr.mxu0 0.0
        %557 = vmatpush1.msra.mxu0 0.0
        %558 = vmatprep.subr.mxu0 0.0
        %559 = vmatpush1.msra.mxu0 0.0
        %560 = vmatprep.subr.mxu0 0.0
        %561 = vmatpush1.msra.mxu0 0.0
        %562 = vmatprep.subr.mxu0 0.0
        %563 = vmatpush1.msra.mxu0 0.0
        %564 = vmatprep.subr.mxu0 0.0
        %565 = vmatpush1.msra.mxu0 0.0
        %566 = vmatprep.subr.mxu0 0.0
        %567 = vmatpush1.msra.mxu0 0.0
        %568 = vmatprep.subr.mxu0 0.0
        %569 = vmatpush1.msra.mxu0 0.0
        %570 = vmatprep.subr.mxu0 0.0
        %571 = vmatpush1.msra.mxu0 0.0
        %572 = vmatprep.subr.mxu0 0.0
        %573 = vmatpush1.msra.mxu0 0.0
        %574 = vmatprep.subr.mxu0 0.0
        %575 = vmatpush1.msra.mxu0 %v544
        %576 = vmatprep.subr.mxu0 0.0
        %577 = vmatpush1.msra.mxu0 %v534
        %578 = vmatprep.subr.mxu0 0.0
        %579 = vmatpush2.msra.mxu0 0.0
        %580 = vmatprep.subr.mxu0 0.0
        %581 = vmatpush2.msra.mxu0 0.0
        %582 = vmatprep.subr.mxu0 0.0
        %583 = vmatpush2.msra.mxu0 0.0
        %584 = vmatprep.subr.mxu0 0.0
        %585 = vmatpush2.msra.mxu0 0.0
        %586 = vmatprep.subr.mxu0 0.0
        %587 = vmatpush2.msra.mxu0 0.0
        %588 = vmatprep.subr.mxu0 0.0
        %589 = vmatpush2.msra.mxu0 0.0
        %590 = vmatprep.subr.mxu0 0.0
        %591 = vmatpush2.msra.mxu0 0.0
        %592 = vmatprep.subr.mxu0 0.0
        %593 = vmatpush2.msra.mxu0 0.0
        %594 = vmatprep.subr.mxu0 0.0
        %595 = vmatpush2.msra.mxu0 0.0
        %596 = vmatprep.subr.mxu0 0.0
        %597 = vmatpush2.msra.mxu0 0.0
        %598 = vmatprep.subr.mxu0 0.0
        %599 = vmatpush2.msra.mxu0 0.0
        %600 = vmatprep.subr.mxu0 0.0
        %601 = vmatpush2.msra.mxu0 0.0
        %602 = vmatprep.subr.mxu0 0.0
        %603 = vmatpush2.msra.mxu0 0.0
        %604 = vmatprep.subr.mxu0 0.0
        %605 = vmatpush2.msra.mxu0 0.0
        %606 = vmatprep.subr.mxu0 0.0
        %607 = vmatpush2.msra.mxu0 0.0
        %608 = vmatprep.subr.mxu0 0.0
        %609 = vmatpush2.msra.mxu0 0.0
        %610 = vmatprep.mubr.f32.mxu0 0.0
        %611 = vmatmul.mubr.f32.gmra.mxu0 %v539
        %v612 = vpop.f32.mrf.mxu0
        %v613 = vadd.f32 0.0, %v612
        %v614 = vpop.f32.mrf.mxu0
        %615 = vmatprep.mubr.f32.mxu0 0.0
        %616 = vmatmul.mubr.f32.gmra.mxu0 %v542
        %v617 = vpop.f32.mrf.mxu0
        %v618 = vadd.f32 0.0, %v617
        %v619 = vpop.f32.mrf.mxu0
        %620 = vdwg.mxu0
        %v621 = vadd.f32 %v361, %v613
        %v622 = vadd.f32 %v366, %v618
        %623 = vrot.lane.b32.xlu0 %v187, 126
        %v624 = vpop.permute.xlu0 %623
        %625 = vrot.lane.b32.xlu0 %v188, 126
        %v626 = vpop.permute.xlu0 %625
        %v628 = vsel %vm208, %v626, 0
        %630 = vmatprep.subr.mxu0 0.0
        %631 = vmatpush1.msra.mxu0 0.0
        %632 = vmatprep.subr.mxu0 0.0
        %633 = vmatpush1.msra.mxu0 0.0
        %634 = vmatprep.subr.mxu0 0.0
        %635 = vmatpush1.msra.mxu0 0.0
        %636 = vmatprep.subr.mxu0 0.0
        %637 = vmatpush1.msra.mxu0 0.0
        %638 = vmatprep.subr.mxu0 0.0
        %639 = vmatpush1.msra.mxu0 0.0
        %640 = vmatprep.subr.mxu0 0.0
        %641 = vmatpush1.msra.mxu0 0.0
        %642 = vmatprep.subr.mxu0 0.0
        %643 = vmatpush1.msra.mxu0 0.0
        %644 = vmatprep.subr.mxu0 0.0
        %645 = vmatpush1.msra.mxu0 0.0
        %646 = vmatprep.subr.mxu0 0.0
        %647 = vmatpush1.msra.mxu0 0.0
        %648 = vmatprep.subr.mxu0 0.0
        %649 = vmatpush1.msra.mxu0 0.0
        %650 = vmatprep.subr.mxu0 0.0
        %651 = vmatpush1.msra.mxu0 0.0
        %652 = vmatprep.subr.mxu0 0.0
        %653 = vmatpush1.msra.mxu0 0.0
        %654 = vmatprep.subr.mxu0 0.0
        %655 = vmatpush1.msra.mxu0 0.0
        %656 = vmatprep.subr.mxu0 0.0
        %657 = vmatpush1.msra.mxu0 0.0
        %658 = vmatprep.subr.mxu0 0.0
        %659 = vmatpush1.msra.mxu0 %v628
        %660 = vmatprep.subr.mxu0 0.0
        %661 = vmatpush1.msra.mxu0 %v624
        %662 = vmatprep.subr.mxu0 0.0
        %663 = vmatpush2.msra.mxu0 0.0
        %664 = vmatprep.subr.mxu0 0.0
        %665 = vmatpush2.msra.mxu0 0.0
        %666 = vmatprep.subr.mxu0 0.0
        %667 = vmatpush2.msra.mxu0 0.0
        %668 = vmatprep.subr.mxu0 0.0
        %669 = vmatpush2.msra.mxu0 0.0
        %670 = vmatprep.subr.mxu0 0.0
        %671 = vmatpush2.msra.mxu0 0.0
        %672 = vmatprep.subr.mxu0 0.0
        %673 = vmatpush2.msra.mxu0 0.0
        %674 = vmatprep.subr.mxu0 0.0
        %675 = vmatpush2.msra.mxu0 0.0
        %676 = vmatprep.subr.mxu0 0.0
        %677 = vmatpush2.msra.mxu0 0.0
        %678 = vmatprep.subr.mxu0 0.0
        %679 = vmatpush2.msra.mxu0 0.0
        %680 = vmatprep.subr.mxu0 0.0
        %681 = vmatpush2.msra.mxu0 0.0
        %682 = vmatprep.subr.mxu0 0.0
        %683 = vmatpush2.msra.mxu0 0.0
        %684 = vmatprep.subr.mxu0 0.0
        %685 = vmatpush2.msra.mxu0 0.0
        %686 = vmatprep.subr.mxu0 0.0
        %687 = vmatpush2.msra.mxu0 0.0
        %688 = vmatprep.subr.mxu0 0.0
        %689 = vmatpush2.msra.mxu0 0.0
        %690 = vmatprep.subr.mxu0 0.0
        %691 = vmatpush2.msra.mxu0 0.0
        %692 = vmatprep.subr.mxu0 0.0
        %693 = vmatpush2.msra.mxu0 0.0
        %694 = vmatprep.mubr.f32.mxu0 0.0
        %695 = vmatmul.mubr.f32.gmra.mxu0 %v539
        %v696 = vpop.f32.mrf.mxu0
        %v697 = vadd.f32 0.0, %v696
        %v698 = vpop.f32.mrf.mxu0
        %699 = vmatprep.mubr.f32.mxu0 0.0
        %700 = vmatmul.mubr.f32.gmra.mxu0 %v542
        %v701 = vpop.f32.mrf.mxu0
        %v702 = vadd.f32 0.0, %v701
        %v703 = vpop.f32.mrf.mxu0
        %704 = vdwg.mxu0
        %v705 = vadd.f32 %v522, %v697
        %v706 = vadd.f32 %v527, %v702
        %s707 = scalar_lea.vmem %s1, 48
        %v708 = vld [vmem:[%s707] sm:$0xff]
        %v709 = vld [vmem:[%s707 + $0x8] sm:$0x3]
        %710 = vrot.lane.b32.xlu0 %v182, 125
        %v711 = vpop.permute.xlu0 %710
        %712 = vrot.lane.b32.xlu0 %v183, 125
        %v713 = vpop.permute.xlu0 %712
        %v716 = vsel %vm201, %v708, 0
        %v719 = vsel %vm201, %v709, 0
        %v721 = vsel %vm208, %v713, 0
        %723 = vmatprep.subr.mxu0 0.0
        %724 = vmatpush1.msra.mxu0 0.0
        %725 = vmatprep.subr.mxu0 0.0
        %726 = vmatpush1.msra.mxu0 0.0
        %727 = vmatprep.subr.mxu0 0.0
        %728 = vmatpush1.msra.mxu0 0.0
        %729 = vmatprep.subr.mxu0 0.0
        %730 = vmatpush1.msra.mxu0 0.0
        %731 = vmatprep.subr.mxu0 0.0
        %732 = vmatpush1.msra.mxu0 0.0
        %733 = vmatprep.subr.mxu0 0.0
        %734 = vmatpush1.msra.mxu0 0.0
        %735 = vmatprep.subr.mxu0 0.0
        %736 = vmatpush1.msra.mxu0 0.0
        %737 = vmatprep.subr.mxu0 0.0
        %738 = vmatpush1.msra.mxu0 0.0
        %739 = vmatprep.subr.mxu0 0.0
        %740 = vmatpush1.msra.mxu0 0.0
        %741 = vmatprep.subr.mxu0 0.0
        %742 = vmatpush1.msra.mxu0 0.0
        %743 = vmatprep.subr.mxu0 0.0
        %744 = vmatpush1.msra.mxu0 0.0
        %745 = vmatprep.subr.mxu0 0.0
        %746 = vmatpush1.msra.mxu0 0.0
        %747 = vmatprep.subr.mxu0 0.0
        %748 = vmatpush1.msra.mxu0 0.0
        %749 = vmatprep.subr.mxu0 0.0
        %750 = vmatpush1.msra.mxu0 0.0
        %751 = vmatprep.subr.mxu0 0.0
        %752 = vmatpush1.msra.mxu0 %v721
        %753 = vmatprep.subr.mxu0 0.0
        %754 = vmatpush1.msra.mxu0 %v711
        %755 = vmatprep.subr.mxu0 0.0
        %756 = vmatpush2.msra.mxu0 0.0
        %757 = vmatprep.subr.mxu0 0.0
        %758 = vmatpush2.msra.mxu0 0.0
        %759 = vmatprep.subr.mxu0 0.0
        %760 = vmatpush2.msra.mxu0 0.0
        %761 = vmatprep.subr.mxu0 0.0
        %762 = vmatpush2.msra.mxu0 0.0
        %763 = vmatprep.subr.mxu0 0.0
        %764 = vmatpush2.msra.mxu0 0.0
        %765 = vmatprep.subr.mxu0 0.0
        %766 = vmatpush2.msra.mxu0 0.0
        %767 = vmatprep.subr.mxu0 0.0
        %768 = vmatpush2.msra.mxu0 0.0
        %769 = vmatprep.subr.mxu0 0.0
        %770 = vmatpush2.msra.mxu0 0.0
        %771 = vmatprep.subr.mxu0 0.0
        %772 = vmatpush2.msra.mxu0 0.0
        %773 = vmatprep.subr.mxu0 0.0
        %774 = vmatpush2.msra.mxu0 0.0
        %775 = vmatprep.subr.mxu0 0.0
        %776 = vmatpush2.msra.mxu0 0.0
        %777 = vmatprep.subr.mxu0 0.0
        %778 = vmatpush2.msra.mxu0 0.0
        %779 = vmatprep.subr.mxu0 0.0
        %780 = vmatpush2.msra.mxu0 0.0
        %781 = vmatprep.subr.mxu0 0.0
        %782 = vmatpush2.msra.mxu0 0.0
        %783 = vmatprep.subr.mxu0 0.0
        %784 = vmatpush2.msra.mxu0 0.0
        %785 = vmatprep.subr.mxu0 0.0
        %786 = vmatpush2.msra.mxu0 0.0
        %787 = vmatprep.mubr.f32.mxu0 0.0
        %788 = vmatmul.mubr.f32.gmra.mxu0 %v716
        %v789 = vpop.f32.mrf.mxu0
        %v790 = vadd.f32 0.0, %v789
        %v791 = vpop.f32.mrf.mxu0
        %792 = vmatprep.mubr.f32.mxu0 0.0
        %793 = vmatmul.mubr.f32.gmra.mxu0 %v719
        %v794 = vpop.f32.mrf.mxu0
        %v795 = vadd.f32 0.0, %v794
        %v796 = vpop.f32.mrf.mxu0
        %797 = vdwg.mxu0
        %v798 = vadd.f32 %v621, %v790
        %v799 = vadd.f32 %v622, %v795
        %800 = vrot.lane.b32.xlu0 %v187, 125
        %v801 = vpop.permute.xlu0 %800
        %802 = vrot.lane.b32.xlu0 %v188, 125
        %v803 = vpop.permute.xlu0 %802
        %v805 = vsel %vm208, %v803, 0
        %807 = vmatprep.subr.mxu0 0.0
        %808 = vmatpush1.msra.mxu0 0.0
        %809 = vmatprep.subr.mxu0 0.0
        %810 = vmatpush1.msra.mxu0 0.0
        %811 = vmatprep.subr.mxu0 0.0
        %812 = vmatpush1.msra.mxu0 0.0
        %813 = vmatprep.subr.mxu0 0.0
        %814 = vmatpush1.msra.mxu0 0.0
        %815 = vmatprep.subr.mxu0 0.0
        %816 = vmatpush1.msra.mxu0 0.0
        %817 = vmatprep.subr.mxu0 0.0
        %818 = vmatpush1.msra.mxu0 0.0
        %819 = vmatprep.subr.mxu0 0.0
        %820 = vmatpush1.msra.mxu0 0.0
        %821 = vmatprep.subr.mxu0 0.0
        %822 = vmatpush1.msra.mxu0 0.0
        %823 = vmatprep.subr.mxu0 0.0
        %824 = vmatpush1.msra.mxu0 0.0
        %825 = vmatprep.subr.mxu0 0.0
        %826 = vmatpush1.msra.mxu0 0.0
        %827 = vmatprep.subr.mxu0 0.0
        %828 = vmatpush1.msra.mxu0 0.0
        %829 = vmatprep.subr.mxu0 0.0
        %830 = vmatpush1.msra.mxu0 0.0
        %831 = vmatprep.subr.mxu0 0.0
        %832 = vmatpush1.msra.mxu0 0.0
        %833 = vmatprep.subr.mxu0 0.0
        %834 = vmatpush1.msra.mxu0 0.0
        %835 = vmatprep.subr.mxu0 0.0
        %836 = vmatpush1.msra.mxu0 %v805
        %837 = vmatprep.subr.mxu0 0.0
        %838 = vmatpush1.msra.mxu0 %v801
        %839 = vmatprep.subr.mxu0 0.0
        %840 = vmatpush2.msra.mxu0 0.0
        %841 = vmatprep.subr.mxu0 0.0
        %842 = vmatpush2.msra.mxu0 0.0
        %843 = vmatprep.subr.mxu0 0.0
        %844 = vmatpush2.msra.mxu0 0.0
        %845 = vmatprep.subr.mxu0 0.0
        %846 = vmatpush2.msra.mxu0 0.0
        %847 = vmatprep.subr.mxu0 0.0
        %848 = vmatpush2.msra.mxu0 0.0
        %849 = vmatprep.subr.mxu0 0.0
        %850 = vmatpush2.msra.mxu0 0.0
        %851 = vmatprep.subr.mxu0 0.0
        %852 = vmatpush2.msra.mxu0 0.0
        %853 = vmatprep.subr.mxu0 0.0
        %854 = vmatpush2.msra.mxu0 0.0
        %855 = vmatprep.subr.mxu0 0.0
        %856 = vmatpush2.msra.mxu0 0.0
        %857 = vmatprep.subr.mxu0 0.0
        %858 = vmatpush2.msra.mxu0 0.0
        %859 = vmatprep.subr.mxu0 0.0
        %860 = vmatpush2.msra.mxu0 0.0
        %861 = vmatprep.subr.mxu0 0.0
        %862 = vmatpush2.msra.mxu0 0.0
        %863 = vmatprep.subr.mxu0 0.0
        %864 = vmatpush2.msra.mxu0 0.0
        %865 = vmatprep.subr.mxu0 0.0
        %866 = vmatpush2.msra.mxu0 0.0
        %867 = vmatprep.subr.mxu0 0.0
        %868 = vmatpush2.msra.mxu0 0.0
        %869 = vmatprep.subr.mxu0 0.0
        %870 = vmatpush2.msra.mxu0 0.0
        %871 = vmatprep.mubr.f32.mxu0 0.0
        %872 = vmatmul.mubr.f32.gmra.mxu0 %v716
        %v873 = vpop.f32.mrf.mxu0
        %v874 = vadd.f32 0.0, %v873
        %v875 = vpop.f32.mrf.mxu0
        %876 = vmatprep.mubr.f32.mxu0 0.0
        %877 = vmatmul.mubr.f32.gmra.mxu0 %v719
        %v878 = vpop.f32.mrf.mxu0
        %v879 = vadd.f32 0.0, %v878
        %v880 = vpop.f32.mrf.mxu0
        %881 = vdwg.mxu0
        %v882 = vadd.f32 %v705, %v874
        %v883 = vadd.f32 %v706, %v879
        %s884 = scalar_lea.vmem %s1, 64
        %v885 = vld [vmem:[%s884] sm:$0xff]
        %v886 = vld [vmem:[%s884 + $0x8] sm:$0x3]
        %887 = vrot.lane.b32.xlu0 %v182, 124
        %v888 = vpop.permute.xlu0 %887
        %889 = vrot.lane.b32.xlu0 %v183, 124
        %v890 = vpop.permute.xlu0 %889
        %v893 = vsel %vm201, %v885, 0
        %v896 = vsel %vm201, %v886, 0
        %v898 = vsel %vm208, %v890, 0
        %900 = vmatprep.subr.mxu0 0.0
        %901 = vmatpush1.msra.mxu0 0.0
        %902 = vmatprep.subr.mxu0 0.0
        %903 = vmatpush1.msra.mxu0 0.0
        %904 = vmatprep.subr.mxu0 0.0
        %905 = vmatpush1.msra.mxu0 0.0
        %906 = vmatprep.subr.mxu0 0.0
        %907 = vmatpush1.msra.mxu0 0.0
        %908 = vmatprep.subr.mxu0 0.0
        %909 = vmatpush1.msra.mxu0 0.0
        %910 = vmatprep.subr.mxu0 0.0
        %911 = vmatpush1.msra.mxu0 0.0
        %912 = vmatprep.subr.mxu0 0.0
        %913 = vmatpush1.msra.mxu0 0.0
        %914 = vmatprep.subr.mxu0 0.0
        %915 = vmatpush1.msra.mxu0 0.0
        %916 = vmatprep.subr.mxu0 0.0
        %917 = vmatpush1.msra.mxu0 0.0
        %918 = vmatprep.subr.mxu0 0.0
        %919 = vmatpush1.msra.mxu0 0.0
        %920 = vmatprep.subr.mxu0 0.0
        %921 = vmatpush1.msra.mxu0 0.0
        %922 = vmatprep.subr.mxu0 0.0
        %923 = vmatpush1.msra.mxu0 0.0
        %924 = vmatprep.subr.mxu0 0.0
        %925 = vmatpush1.msra.mxu0 0.0
        %926 = vmatprep.subr.mxu0 0.0
        %927 = vmatpush1.msra.mxu0 0.0
        %928 = vmatprep.subr.mxu0 0.0
        %929 = vmatpush1.msra.mxu0 %v898
        %930 = vmatprep.subr.mxu0 0.0
        %931 = vmatpush1.msra.mxu0 %v888
        %932 = vmatprep.subr.mxu0 0.0
        %933 = vmatpush2.msra.mxu0 0.0
        %934 = vmatprep.subr.mxu0 0.0
        %935 = vmatpush2.msra.mxu0 0.0
        %936 = vmatprep.subr.mxu0 0.0
        %937 = vmatpush2.msra.mxu0 0.0
        %938 = vmatprep.subr.mxu0 0.0
        %939 = vmatpush2.msra.mxu0 0.0
        %940 = vmatprep.subr.mxu0 0.0
        %941 = vmatpush2.msra.mxu0 0.0
        %942 = vmatprep.subr.mxu0 0.0
        %943 = vmatpush2.msra.mxu0 0.0
        %944 = vmatprep.subr.mxu0 0.0
        %945 = vmatpush2.msra.mxu0 0.0
        %946 = vmatprep.subr.mxu0 0.0
        %947 = vmatpush2.msra.mxu0 0.0
        %948 = vmatprep.subr.mxu0 0.0
        %949 = vmatpush2.msra.mxu0 0.0
        %950 = vmatprep.subr.mxu0 0.0
        %951 = vmatpush2.msra.mxu0 0.0
        %952 = vmatprep.subr.mxu0 0.0
        %953 = vmatpush2.msra.mxu0 0.0
        %954 = vmatprep.subr.mxu0 0.0
        %955 = vmatpush2.msra.mxu0 0.0
        %956 = vmatprep.subr.mxu0 0.0
        %957 = vmatpush2.msra.mxu0 0.0
        %958 = vmatprep.subr.mxu0 0.0
        %959 = vmatpush2.msra.mxu0 0.0
        %960 = vmatprep.subr.mxu0 0.0
        %961 = vmatpush2.msra.mxu0 0.0
        %962 = vmatprep.subr.mxu0 0.0
        %963 = vmatpush2.msra.mxu0 0.0
        %964 = vmatprep.mubr.f32.mxu0 0.0
        %965 = vmatmul.mubr.f32.gmra.mxu0 %v893
        %v966 = vpop.f32.mrf.mxu0
        %v967 = vadd.f32 0.0, %v966
        %v968 = vpop.f32.mrf.mxu0
        %969 = vmatprep.mubr.f32.mxu0 0.0
        %970 = vmatmul.mubr.f32.gmra.mxu0 %v896
        %v971 = vpop.f32.mrf.mxu0
        %v972 = vadd.f32 0.0, %v971
        %v973 = vpop.f32.mrf.mxu0
        %974 = vdwg.mxu0
        %v975 = vadd.f32 %v798, %v967
        %v976 = vadd.f32 %v799, %v972
        %977 = vrot.lane.b32.xlu0 %v187, 124
        %v978 = vpop.permute.xlu0 %977
        %979 = vrot.lane.b32.xlu0 %v188, 124
        %v980 = vpop.permute.xlu0 %979
        %v982 = vsel %vm208, %v980, 0
        %984 = vmatprep.subr.mxu0 0.0
        %985 = vmatpush1.msra.mxu0 0.0
        %986 = vmatprep.subr.mxu0 0.0
        %987 = vmatpush1.msra.mxu0 0.0
        %988 = vmatprep.subr.mxu0 0.0
        %989 = vmatpush1.msra.mxu0 0.0
        %990 = vmatprep.subr.mxu0 0.0
        %991 = vmatpush1.msra.mxu0 0.0
        %992 = vmatprep.subr.mxu0 0.0
        %993 = vmatpush1.msra.mxu0 0.0
        %994 = vmatprep.subr.mxu0 0.0
        %995 = vmatpush1.msra.mxu0 0.0
        %996 = vmatprep.subr.mxu0 0.0
        %997 = vmatpush1.msra.mxu0 0.0
        %998 = vmatprep.subr.mxu0 0.0
        %999 = vmatpush1.msra.mxu0 0.0
        %1000 = vmatprep.subr.mxu0 0.0
        %1001 = vmatpush1.msra.mxu0 0.0
        %1002 = vmatprep.subr.mxu0 0.0
        %1003 = vmatpush1.msra.mxu0 0.0
        %1004 = vmatprep.subr.mxu0 0.0
        %1005 = vmatpush1.msra.mxu0 0.0
        %1006 = vmatprep.subr.mxu0 0.0
        %1007 = vmatpush1.msra.mxu0 0.0
        %1008 = vmatprep.subr.mxu0 0.0
        %1009 = vmatpush1.msra.mxu0 0.0
        %1010 = vmatprep.subr.mxu0 0.0
        %1011 = vmatpush1.msra.mxu0 0.0
        %1012 = vmatprep.subr.mxu0 0.0
        %1013 = vmatpush1.msra.mxu0 %v982
        %1014 = vmatprep.subr.mxu0 0.0
        %1015 = vmatpush1.msra.mxu0 %v978
        %1016 = vmatprep.subr.mxu0 0.0
        %1017 = vmatpush2.msra.mxu0 0.0
        %1018 = vmatprep.subr.mxu0 0.0
        %1019 = vmatpush2.msra.mxu0 0.0
        %1020 = vmatprep.subr.mxu0 0.0
        %1021 = vmatpush2.msra.mxu0 0.0
        %1022 = vmatprep.subr.mxu0 0.0
        %1023 = vmatpush2.msra.mxu0 0.0
        %1024 = vmatprep.subr.mxu0 0.0
        %1025 = vmatpush2.msra.mxu0 0.0
        %1026 = vmatprep.subr.mxu0 0.0
        %1027 = vmatpush2.msra.mxu0 0.0
        %1028 = vmatprep.subr.mxu0 0.0
        %1029 = vmatpush2.msra.mxu0 0.0
        %1030 = vmatprep.subr.mxu0 0.0
        %1031 = vmatpush2.msra.mxu0 0.0
        %1032 = vmatprep.subr.mxu0 0.0
        %1033 = vmatpush2.msra.mxu0 0.0
        %1034 = vmatprep.subr.mxu0 0.0
        %1035 = vmatpush2.msra.mxu0 0.0
        %1036 = vmatprep.subr.mxu0 0.0
        %1037 = vmatpush2.msra.mxu0 0.0
        %1038 = vmatprep.subr.mxu0 0.0
        %1039 = vmatpush2.msra.mxu0 0.0
        %1040 = vmatprep.subr.mxu0 0.0
        %1041 = vmatpush2.msra.mxu0 0.0
        %1042 = vmatprep.subr.mxu0 0.0
        %1043 = vmatpush2.msra.mxu0 0.0
        %1044 = vmatprep.subr.mxu0 0.0
        %1045 = vmatpush2.msra.mxu0 0.0
        %1046 = vmatprep.subr.mxu0 0.0
        %1047 = vmatpush2.msra.mxu0 0.0
        %1048 = vmatprep.mubr.f32.mxu0 0.0
        %1049 = vmatmul.mubr.f32.gmra.mxu0 %v893
        %v1050 = vpop.f32.mrf.mxu0
        %v1051 = vadd.f32 0.0, %v1050
        %v1052 = vpop.f32.mrf.mxu0
        %1053 = vmatprep.mubr.f32.mxu0 0.0
        %1054 = vmatmul.mubr.f32.gmra.mxu0 %v896
        %v1055 = vpop.f32.mrf.mxu0
        %v1056 = vadd.f32 0.0, %v1055
        %v1057 = vpop.f32.mrf.mxu0
        %1058 = vdwg.mxu0
        %v1059 = vadd.f32 %v882, %v1051
        %v1060 = vadd.f32 %v883, %v1056
        %v1061 = vmax.f32 %v975, %v1059
        %v1062 = vmax.f32 %v976, %v1060
        %1064 = vset.pattern.permute.xlu0 0
        %1065 = vperm.xlu0 %1064, %v171
        %v1066 = vpop.permute.xlu0 %1065
        %1069 = vset.pattern.permute.xlu0 0
        %1070 = vperm.xlu0 %1069, %v172
        %v1071 = vpop.permute.xlu0 %1070
        %v1073 = vadd.f32 %v1061, %v1066
        %v1074 = vadd.f32 %v1062, %v1071
        %v1075 = vmax.f32 %v1073, 0.0
        %v1076 = vmax.f32 %v1074, 0.0
        %s1077 = smul.u32 %s174, 16
        %s1078 = scalar_lea.vmem %s170, %s1077
        %vm1079 = vcmask 1014784
        %1080 = vst.msk [vmem:[%s1078] sm:$0xff] %vm1079, %v1075
        %vm1081 = vcmask 1008640
        %1082 = vst.msk [vmem:[%s1078 + $0x8] sm:$0x3] %vm1081, %v1076
      $region37: #{network_forward.3} parent=31 // loop_footer
        %s178 = sadd.s32 1, %s174
      $region38: #{network_forward.3} parent=31 // loop_footer_branch
        %173 = sbr.rel target = $region34
      $region39: #{network_forward.3} parent=31 // loop_exit
        _
      %p1083 = scmp.lt.s32.totalorder %s14, 1
      %s1084 = scalar_select %p1083, %s14, 1
      %s1085 = smul.addr %s1084, 124
      %s1086 = smul.addr %s1085, 8
      %s1087 = scalar_lea.vmem %s3, %s1086
      // Predicated region
      $region40: #{network_forward.3} parent=31 // pred_check
        %p1088 = pneg %p100
      $region41: #{network_forward.3} parent=31 // pred_check_branch
        %1090 = sbr.rel (%p1088) target = $region43
      $region42: #{network_forward.3} parent=31 // pred_region
        _
      $region43: #{network_forward.3} parent=31 // pred_fallthru
        _
    $region32: #{network_forward.3} parent=5 // pred_fallthru
      _
    %p1091 = scmp.le.s32.totalorder 2, %s9
    // Predicated region
    $region44: #{network_forward.3} parent=5 // pred_check
      %p1092 = pneg %p1091
    $region45: #{network_forward.3} parent=5 // pred_check_branch
      %1094 = sbr.rel (%p1092) target = $region47
    $region46: #{network_forward.3} parent=5 // pred_region
      %s1095 = ssub.s32 %s9, 2
      // Predicated region
      $region48: #{network_forward.3} parent=46 // pred_check
        %p1096 = pneg %p106
      $region49: #{network_forward.3} parent=46 // pred_check_branch
        %1098 = sbr.rel (%p1096) target = $region51
      $region50: #{network_forward.3} parent=46 // pred_region
        %p1099 = scmp.lt.s32.totalorder %s15, 1
        %s1100 = scalar_select %p1099, %s15, 1
        %s1101 = smul.addr %s1100, 124
        %s1102 = smul.addr %s1101, 8
        %s1103 = scalar_lea.vmem %s3, %s1102
      $region51: #{network_forward.3} parent=46 // pred_fallthru
        _
    $region47: #{network_forward.3} parent=5 // pred_fallthru
      _
  $region6: #{network_forward.3} parent=0 // loop_footer
    %s13 = sadd.s32 1, %s9
  $region7: #{network_forward.3} parent=0 // loop_footer_branch
    %8 = sbr.rel target = $region3
  $region8: #{network_forward.3} parent=0 // loop_exit
    _

// kernel: network_forward.4
$region0: #{network_forward.4}
  #allocation0 [shape = 'u32[]', space=smem, size = 0x4, offset = 0x4, fixed_abs, tag = 'smem constant byte address 0x4 - core index']
  #allocation1 [shape = 'u32[144,128]{1,0:T(1,128)}', space=vmem, size = 0x12000, scoped, tag = 'internal scratch']
  %s0 = inlined_call_operand.vmem [shape: f32[2,620,62], index: 0, kind: input, shape index: {}]
  %s1 = inlined_call_operand.vmem [shape: f32[5,20,50], index: 1, kind: input, shape index: {}]
  %s2 = inlined_call_operand.vmem [shape: f32[20,1], index: 2, kind: input, shape index: {}]
  %s3 = inlined_call_operand.vmem [shape: f32[2,29,20,58], index: 3, kind: output, shape index: {}]
  %s4 = sld [smem:[#allocation0]]
  $region52: #{network_forward.4} parent=0
    _
  %s6 = ssub.s32 1, %s4
  %s7 = scalar_select 0, %s6, %s4
  loop: start=0, step=1, limit=4
  $region2: #{network_forward.4} parent=0 // loop_pre_header
    _
  $region3: #{network_forward.4} parent=0 // loop_header
    %s9 = sphi 0, %s13
    %p10 = scmp.ge.s32.totalorder %s9, 4
    %s19 = sphi 0, %s21
    %s22 = sphi 0, %s19
    %s23 = sphi 0, %s22
    %s39 = sphi 0, %s23
    %s43 = sphi 0, %s43
    %s45 = sphi 0, %s43
    %s46 = sphi 0, %s45
    %s60 = sphi 0, %s46
    %s64 = sphi 0, %s64
    %s66 = sphi 0, %s64
    %s67 = sphi 0, %s66
    %s81 = sphi 0, %s67
    %s87 = sphi 0, %s89
    %s90 = sphi 0, %s87
    %s91 = sphi 0, %s90
    %s107 = sphi 0, %s91
  $region4: #{network_forward.4} parent=0 // loop_header_branch
    %12 = sbr.rel (%p10) target = $region8
  $region5: #{network_forward.4} parent=0 // loop_body
    %s14 = ssub.s32 %s9, 1
    %s15 = ssub.s32 %s9, 2
    %s16 = sadd.s32 %s9, 1
    %s17 = ssub.s32 %s9, %s16
    %p18 = scmp.eq.s32.totalorder %s17, 0
    %s20 = sadd.s32 %s19, 1
    %s21 = scalar_select %p18, %s19, %s20
    %p24 = pneg %p18
    %p25 = scmp.eq.s32.totalorder %s9, 1
    %p26 = por %p24, %p25
    %p27 = scmp.ne.s32.totalorder %s19, %s22
    %p28 = scmp.eq.s32.totalorder %s9, 0
    %p29 = por %p27, %p28
    %p30 = scmp.ne.s32.totalorder %s19, %s22
    %p31 = scmp.eq.s32.totalorder %s14, 1
    %p32 = por %p30, %p31
    %p33 = scmp.ne.s32.totalorder %s22, %s23
    %p34 = scmp.eq.s32.totalorder %s14, 0
    %p35 = por %p33, %p34
    %p36 = scmp.ne.s32.totalorder %s22, %s23
    %p37 = scmp.eq.s32.totalorder %s15, 1
    %p38 = por %p36, %p37
    %p40 = scmp.ne.s32.totalorder %s23, %s39
    %p41 = scmp.eq.s32.totalorder %s15, 0
    %p42 = por %p40, %p41
    %s44 = sadd.s32 %s43, 1
    %p47 = scmp.eq.s32.totalorder %s9, 1
    %p48 = scmp.ne.s32.totalorder %s43, %s45
    %p49 = scmp.eq.s32.totalorder %s9, 0
    %p50 = por %p48, %p49
    %p51 = scmp.ne.s32.totalorder %s43, %s45
    %p52 = scmp.eq.s32.totalorder %s14, 1
    %p53 = por %p51, %p52
    %p54 = scmp.ne.s32.totalorder %s45, %s46
    %p55 = scmp.eq.s32.totalorder %s14, 0
    %p56 = por %p54, %p55
    %p57 = scmp.ne.s32.totalorder %s45, %s46
    %p58 = scmp.eq.s32.totalorder %s15, 1
    %p59 = por %p57, %p58
    %p61 = scmp.ne.s32.totalorder %s46, %s60
    %p62 = scmp.eq.s32.totalorder %s15, 0
    %p63 = por %p61, %p62
    %s65 = sadd.s32 %s64, 1
    %p68 = scmp.eq.s32.totalorder %s9, 1
    %p69 = scmp.ne.s32.totalorder %s64, %s66
    %p70 = scmp.eq.s32.totalorder %s9, 0
    %p71 = por %p69, %p70
    %p72 = scmp.ne.s32.totalorder %s64, %s66
    %p73 = scmp.eq.s32.totalorder %s14, 1
    %p74 = por %p72, %p73
    %p75 = scmp.ne.s32.totalorder %s66, %s67
    %p76 = scmp.eq.s32.totalorder %s14, 0
    %p77 = por %p75, %p76
    %p78 = scmp.ne.s32.totalorder %s66, %s67
    %p79 = scmp.eq.s32.totalorder %s15, 1
    %p80 = por %p78, %p79
    %p82 = scmp.ne.s32.totalorder %s67, %s81
    %p83 = scmp.eq.s32.totalorder %s15, 0
    %p84 = por %p82, %p83
    %s85 = ssub.s32 %s9, %s16
    %p86 = scmp.eq.s32.totalorder %s85, 0
    %s88 = sadd.s32 %s87, 1
    %s89 = scalar_select %p86, %s87, %s88
    %p92 = pneg %p86
    %p93 = scmp.eq.s32.totalorder %s9, 1
    %p94 = por %p92, %p93
    %p95 = scmp.ne.s32.totalorder %s87, %s90
    %p96 = scmp.eq.s32.totalorder %s9, 0
    %p97 = por %p95, %p96
    %p98 = scmp.ne.s32.totalorder %s87, %s90
    %p99 = scmp.eq.s32.totalorder %s14, 1
    %p100 = por %p98, %p99
    %p101 = scmp.ne.s32.totalorder %s90, %s91
    %p102 = scmp.eq.s32.totalorder %s14, 0
    %p103 = por %p101, %p102
    %p104 = scmp.ne.s32.totalorder %s90, %s91
    %p105 = scmp.eq.s32.totalorder %s15, 1
    %p106 = por %p104, %p105
    %p108 = scmp.ne.s32.totalorder %s91, %s107
    %p109 = scmp.eq.s32.totalorder %s15, 0
    %p110 = por %p108, %p109
    %p111 = scmp.le.s32.totalorder 1, %s9
    %p112 = scmp.lt.s32.totalorder %s9, 3
    %p113 = pnand %p111, %p112
    %p114 = pneg %p113
    // Predicated region
    $region9: #{network_forward.4} parent=5 // pred_check
      _
    $region10: #{network_forward.4} parent=5 // pred_check_branch
      %116 = sbr.rel (%p113) target = $region12
    $region11: #{network_forward.4} parent=5 // pred_region
      %s117 = ssub.s32 %s9, 1
      // Predicated region
      $region13: #{network_forward.4} parent=11 // pred_check
        %p118 = pneg %p56
      $region14: #{network_forward.4} parent=11 // pred_check_branch
        %120 = sbr.rel (%p118) target = $region16
      $region15: #{network_forward.4} parent=11 // pred_region
        _
      $region16: #{network_forward.4} parent=11 // pred_fallthru
        _
      // Predicated region
      $region17: #{network_forward.4} parent=11 // pred_check
        %p121 = pneg %p77
      $region18: #{network_forward.4} parent=11 // pred_check_branch
        %123 = sbr.rel (%p121) target = $region20
      $region19: #{network_forward.4} parent=11 // pred_region
        _
      $region20: #{network_forward.4} parent=11 // pred_fallthru
        _
    $region12: #{network_forward.4} parent=5 // pred_fallthru
      _
    %p124 = scmp.lt.s32.totalorder %s9, 2
    // Predicated region
    $region21: #{network_forward.4} parent=5 // pred_check
      %p125 = pneg %p124
    $region22: #{network_forward.4} parent=5 // pred_check_branch
      %127 = sbr.rel (%p125) target = $region24
    $region23: #{network_forward.4} parent=5 // pred_region
      // Predicated region
      $region25: #{network_forward.4} parent=23 // pred_check
        %p128 = pneg %p29
      $region26: #{network_forward.4} parent=23 // pred_check_branch
        %130 = sbr.rel (%p128) target = $region28
      $region27: #{network_forward.4} parent=23 // pred_region
        %p131 = scmp.lt.s32.totalorder %s9, 1
        %s132 = scalar_select %p131, %s9, 1
        %s133 = smul.addr %s132, 78
        %s134 = smul.addr %s133, 8
        %s135 = scalar_lea.vmem %s0, %s134
      $region28: #{network_forward.4} parent=23 // pred_fallthru
        _
    $region24: #{network_forward.4} parent=5 // pred_fallthru
      _
    %p136 = scmp.le.s32.totalorder 1, %s9
    %p137 = scmp.lt.s32.totalorder %s9, 3
    %p138 = pnand %p136, %p137
    %p139 = pneg %p138
    // Predicated region
    $region29: #{network_forward.4} parent=5 // pred_check
      _
    $region30: #{network_forward.4} parent=5 // pred_check_branch
      %141 = sbr.rel (%p138) target = $region32
    $region31: #{network_forward.4} parent=5 // pred_region
      %s142 = ssub.s32 %s9, 1
      %p143 = scmp.lt.s32.totalorder %s14, 1
      %s144 = scalar_select %p143, %s14, 1
      %s145 = smul.addr %s144, 78
      %s146 = smul.addr %s145, 8
      %s147 = scalar_lea.vmem %s0, %s146
      %p148 = pneg %p35
      %p149 = pneg %p32
      %p150 = pneg %p56
      %p151 = pneg %p53
      %p152 = pneg %p77
      %p153 = pneg %p74
      %p154 = pneg %p103
      %p155 = pneg %p100
      %p156 = scmp.lt.s32.totalorder %s14, 1
      %s157 = scalar_select %p156, %s14, 1
      %s158 = smul.addr %s157, 87
      %s159 = smul.addr %s158, 8
      %s160 = scalar_lea.vmem %s3, %s159
      %p161 = scmp.lt.s32.totalorder %s14, 1
      %s162 = scalar_select %p161, %s14, 1
      %s163 = smul.addr %s162, 78
      %s164 = smul.addr %s163, 8
      %s165 = scalar_lea.vmem %s0, %s164
      %p166 = scmp.lt.s32.totalorder %s14, 1
      %s167 = scalar_select %p166, %s14, 1
      %s168 = smul.addr %s167, 87
      %s169 = smul.addr %s168, 8
      %s170 = scalar_lea.vmem %s3, %s169
      %v171 = vld [vmem:[%s2] sm:$0xff]
      %v172 = vld [vmem:[%s2 + $0x8] sm:$0xff]
      %v173 = vld [vmem:[%s2 + $0x10] sm:$0xf]
      loop: start=0, step=1, limit=29
      $region33: #{network_forward.4} parent=31 // loop_pre_header
        _
      $region34: #{network_forward.4} parent=31 // loop_header
        %s175 = sphi 0, %s179
        %p176 = scmp.ge.s32.totalorder %s175, 29
      $region35: #{network_forward.4} parent=31 // loop_header_branch
        %178 = sbr.rel (%p176) target = $region39
      $region36: #{network_forward.4} parent=31 // loop_body
        %s180 = smul.u32 %s175, 2
        %s181 = smul.u32 %s175, 20
        %s182 = scalar_lea.vmem %s165, %s181
        %v183 = vld [vmem:[%s182] sm:$0xff]
        %v184 = vld [vmem:[%s182 + $0x8] sm:$0xff]
        %v185 = vld [vmem:[%s182 + $0x10] sm:$0xff]
        %v186 = vld [vmem:[%s182 + $0x18] sm:$0xff]
        %v187 = vld [vmem:[%s182 + $0x20] sm:$0xff]
        %v188 = vld [vmem:[%s182 + $0x28] sm:$0xff]
        %v189 = vld [vmem:[%s182 + $0x30] sm:$0x3]
        %s190 = sadd.s32 %s180, 1
        %s191 = smul.u32 %s190, 10
        %s192 = scalar_lea.vmem %s165, %s191
        %v193 = vld [vmem:[%s192] sm:$0xff]
        %v194 = vld [vmem:[%s192 + $0x8] sm:$0xff]
        %v195 = vld [vmem:[%s192 + $0x10] sm:$0xff]
        %v196 = vld [vmem:[%s192 + $0x18] sm:$0xff]
        %v197 = vld [vmem:[%s192 + $0x20] sm:$0xff]
        %v198 = vld [vmem:[%s192 + $0x28] sm:$0xff]
        %v199 = vld [vmem:[%s192 + $0x30] sm:$0x3]
        %v200 = vld [vmem:[%s1] sm:$0xff]
        %v201 = vld [vmem:[%s1 + $0x8] sm:$0xff]
        %v202 = vld [vmem:[%s1 + $0x10] sm:$0xf]
        %s203 = scalar_lea.vmem %s1, 24
        %v204 = vld [vmem:[%s203] sm:$0xff]
        %v205 = vld [vmem:[%s203 + $0x8] sm:$0xff]
        %v206 = vld [vmem:[%s203 + $0x10] sm:$0xf]
        %214 = vrot.lane.b32.xlu0 %v183, 127
        %v215 = vpop.permute.xlu0 %214
        %216 = vrot.lane.b32.xlu0 %v184, 127
        %v217 = vpop.permute.xlu0 %216
        %218 = vrot.lane.b32.xlu0 %v185, 127
        %v219 = vpop.permute.xlu0 %218
        %220 = vrot.lane.b32.xlu0 %v186, 127
        %v221 = vpop.permute.xlu0 %220
        %222 = vrot.lane.b32.xlu0 %v187, 127
        %v223 = vpop.permute.xlu0 %222
        %224 = vrot.lane.b32.xlu0 %v188, 127
        %v225 = vpop.permute.xlu0 %224
        %226 = vrot.lane.b32.xlu0 %v189, 127
        %v227 = vpop.permute.xlu0 %226
        %vm234 = vcmask 408576
        %v236 = vsel %vm234, %v204, 0
        %v239 = vsel %vm234, %v205, 0
        %v242 = vsel %vm234, %v206, 0
        %vm244 = vcmask 1041408
        %v245 = vsel %vm244, %v227, 0
        %247 = vmatprep.subr.mxu0 0.0
        %248 = vmatpush1.msra.mxu0 0.0
        %249 = vmatprep.subr.mxu0 0.0
        %250 = vmatpush1.msra.mxu0 0.0
        %251 = vmatprep.subr.mxu0 0.0
        %252 = vmatpush1.msra.mxu0 0.0
        %253 = vmatprep.subr.mxu0 0.0
        %254 = vmatpush1.msra.mxu0 0.0
        %255 = vmatprep.subr.mxu0 0.0
        %256 = vmatpush1.msra.mxu0 0.0
        %257 = vmatprep.subr.mxu0 0.0
        %258 = vmatpush1.msra.mxu0 0.0
        %259 = vmatprep.subr.mxu0 0.0
        %260 = vmatpush1.msra.mxu0 0.0
        %261 = vmatprep.subr.mxu0 0.0
        %262 = vmatpush1.msra.mxu0 0.0
        %263 = vmatprep.subr.mxu0 0.0
        %264 = vmatpush1.msra.mxu0 0.0
        %265 = vmatprep.subr.mxu0 0.0
        %266 = vmatpush1.msra.mxu0 %v245
        %267 = vmatprep.subr.mxu0 0.0
        %268 = vmatpush1.msra.mxu0 %v225
        %269 = vmatprep.subr.mxu0 0.0
        %270 = vmatpush1.msra.mxu0 %v223
        %271 = vmatprep.subr.mxu0 0.0
        %272 = vmatpush1.msra.mxu0 %v221
        %273 = vmatprep.subr.mxu0 0.0
        %274 = vmatpush1.msra.mxu0 %v219
        %275 = vmatprep.subr.mxu0 0.0
        %276 = vmatpush1.msra.mxu0 %v217
        %277 = vmatprep.subr.mxu0 0.0
        %278 = vmatpush1.msra.mxu0 %v215
        %279 = vmatprep.subr.mxu0 0.0
        %280 = vmatpush2.msra.mxu0 0.0
        %281 = vmatprep.subr.mxu0 0.0
        %282 = vmatpush2.msra.mxu0 0.0
        %283 = vmatprep.subr.mxu0 0.0
        %284 = vmatpush2.msra.mxu0 0.0
        %285 = vmatprep.subr.mxu0 0.0
        %286 = vmatpush2.msra.mxu0 0.0
        %287 = vmatprep.subr.mxu0 0.0
        %288 = vmatpush2.msra.mxu0 0.0
        %289 = vmatprep.subr.mxu0 0.0
        %290 = vmatpush2.msra.mxu0 0.0
        %291 = vmatprep.subr.mxu0 0.0
        %292 = vmatpush2.msra.mxu0 0.0
        %293 = vmatprep.subr.mxu0 0.0
        %294 = vmatpush2.msra.mxu0 0.0
        %295 = vmatprep.subr.mxu0 0.0
        %296 = vmatpush2.msra.mxu0 0.0
        %297 = vmatprep.subr.mxu0 0.0
        %298 = vmatpush2.msra.mxu0 0.0
        %299 = vmatprep.subr.mxu0 0.0
        %300 = vmatpush2.msra.mxu0 0.0
        %301 = vmatprep.subr.mxu0 0.0
        %302 = vmatpush2.msra.mxu0 0.0
        %303 = vmatprep.subr.mxu0 0.0
        %304 = vmatpush2.msra.mxu0 0.0
        %305 = vmatprep.subr.mxu0 0.0
        %306 = vmatpush2.msra.mxu0 0.0
        %307 = vmatprep.subr.mxu0 0.0
        %308 = vmatpush2.msra.mxu0 0.0
        %309 = vmatprep.subr.mxu0 0.0
        %310 = vmatpush2.msra.mxu0 0.0
        %311 = vmatprep.mubr.f32.mxu0 0.0
        %312 = vmatmul.mubr.f32.gmra.mxu0 %v236
        %v313 = vpop.f32.mrf.mxu0
        %v314 = vadd.f32 0.0, %v313
        %v315 = vpop.f32.mrf.mxu0
        %316 = vmatprep.mubr.f32.mxu0 0.0
        %317 = vmatmul.mubr.f32.gmra.mxu0 %v239
        %v318 = vpop.f32.mrf.mxu0
        %v319 = vadd.f32 0.0, %v318
        %v320 = vpop.f32.mrf.mxu0
        %321 = vmatprep.mubr.f32.mxu0 0.0
        %322 = vmatmul.mubr.f32.gmra.mxu0 %v242
        %v323 = vpop.f32.mrf.mxu0
        %v324 = vadd.f32 0.0, %v323
        %v325 = vpop.f32.mrf.mxu0
        %326 = vdwg.mxu0
        %v328 = vsel %vm234, %v200, 0
        %v331 = vsel %vm234, %v201, 0
        %v334 = vsel %vm234, %v202, 0
        %v336 = vsel %vm244, %v189, 0
        %338 = vmatprep.subr.mxu0 0.0
        %339 = vmatpush1.msra.mxu0 0.0
        %340 = vmatprep.subr.mxu0 0.0
        %341 = vmatpush1.msra.mxu0 0.0
        %342 = vmatprep.subr.mxu0 0.0
        %343 = vmatpush1.msra.mxu0 0.0
        %344 = vmatprep.subr.mxu0 0.0
        %345 = vmatpush1.msra.mxu0 0.0
        %346 = vmatprep.subr.mxu0 0.0
        %347 = vmatpush1.msra.mxu0 0.0
        %348 = vmatprep.subr.mxu0 0.0
        %349 = vmatpush1.msra.mxu0 0.0
        %350 = vmatprep.subr.mxu0 0.0
        %351 = vmatpush1.msra.mxu0 0.0
        %352 = vmatprep.subr.mxu0 0.0
        %353 = vmatpush1.msra.mxu0 0.0
        %354 = vmatprep.subr.mxu0 0.0
        %355 = vmatpush1.msra.mxu0 0.0
        %356 = vmatprep.subr.mxu0 0.0
        %357 = vmatpush1.msra.mxu0 %v336
        %358 = vmatprep.subr.mxu0 0.0
        %359 = vmatpush1.msra.mxu0 %v188
        %360 = vmatprep.subr.mxu0 0.0
        %361 = vmatpush1.msra.mxu0 %v187
        %362 = vmatprep.subr.mxu0 0.0
        %363 = vmatpush1.msra.mxu0 %v186
        %364 = vmatprep.subr.mxu0 0.0
        %365 = vmatpush1.msra.mxu0 %v185
        %366 = vmatprep.subr.mxu0 0.0
        %367 = vmatpush1.msra.mxu0 %v184
        %368 = vmatprep.subr.mxu0 0.0
        %369 = vmatpush1.msra.mxu0 %v183
        %370 = vmatprep.subr.mxu0 0.0
        %371 = vmatpush2.msra.mxu0 0.0
        %372 = vmatprep.subr.mxu0 0.0
        %373 = vmatpush2.msra.mxu0 0.0
        %374 = vmatprep.subr.mxu0 0.0
        %375 = vmatpush2.msra.mxu0 0.0
        %376 = vmatprep.subr.mxu0 0.0
        %377 = vmatpush2.msra.mxu0 0.0
        %378 = vmatprep.subr.mxu0 0.0
        %379 = vmatpush2.msra.mxu0 0.0
        %380 = vmatprep.subr.mxu0 0.0
        %381 = vmatpush2.msra.mxu0 0.0
        %382 = vmatprep.subr.mxu0 0.0
        %383 = vmatpush2.msra.mxu0 0.0
        %384 = vmatprep.subr.mxu0 0.0
        %385 = vmatpush2.msra.mxu0 0.0
        %386 = vmatprep.subr.mxu0 0.0
        %387 = vmatpush2.msra.mxu0 0.0
        %388 = vmatprep.subr.mxu0 0.0
        %389 = vmatpush2.msra.mxu0 0.0
        %390 = vmatprep.subr.mxu0 0.0
        %391 = vmatpush2.msra.mxu0 0.0
        %392 = vmatprep.subr.mxu0 0.0
        %393 = vmatpush2.msra.mxu0 0.0
        %394 = vmatprep.subr.mxu0 0.0
        %395 = vmatpush2.msra.mxu0 0.0
        %396 = vmatprep.subr.mxu0 0.0
        %397 = vmatpush2.msra.mxu0 0.0
        %398 = vmatprep.subr.mxu0 0.0
        %399 = vmatpush2.msra.mxu0 0.0
        %400 = vmatprep.subr.mxu0 0.0
        %401 = vmatpush2.msra.mxu0 0.0
        %402 = vmatprep.mubr.f32.mxu0 0.0
        %403 = vmatmul.mubr.f32.gmra.mxu0 %v328
        %v404 = vpop.f32.mrf.mxu0
        %v405 = vadd.f32 %v314, %v404
        %v406 = vpop.f32.mrf.mxu0
        %407 = vmatprep.mubr.f32.mxu0 0.0
        %408 = vmatmul.mubr.f32.gmra.mxu0 %v331
        %v409 = vpop.f32.mrf.mxu0
        %v410 = vadd.f32 %v319, %v409
        %v411 = vpop.f32.mrf.mxu0
        %412 = vmatprep.mubr.f32.mxu0 0.0
        %413 = vmatmul.mubr.f32.gmra.mxu0 %v334
        %v414 = vpop.f32.mrf.mxu0
        %v415 = vadd.f32 %v324, %v414
        %v416 = vpop.f32.mrf.mxu0
        %417 = vdwg.mxu0
        %425 = vrot.lane.b32.xlu0 %v193, 127
        %v426 = vpop.permute.xlu0 %425
        %427 = vrot.lane.b32.xlu0 %v194, 127
        %v428 = vpop.permute.xlu0 %427
        %429 = vrot.lane.b32.xlu0 %v195, 127
        %v430 = vpop.permute.xlu0 %429
        %431 = vrot.lane.b32.xlu0 %v196, 127
        %v432 = vpop.permute.xlu0 %431
        %433 = vrot.lane.b32.xlu0 %v197, 127
        %v434 = vpop.permute.xlu0 %433
        %435 = vrot.lane.b32.xlu0 %v198, 127
        %v436 = vpop.permute.xlu0 %435
        %437 = vrot.lane.b32.xlu0 %v199, 127
        %v438 = vpop.permute.xlu0 %437
        %v445 = vsel %vm244, %v438, 0
        %447 = vmatprep.subr.mxu0 0.0
        %448 = vmatpush1.msra.mxu0 0.0
        %449 = vmatprep.subr.mxu0 0.0
        %450 = vmatpush1.msra.mxu0 0.0
        %451 = vmatprep.subr.mxu0 0.0
        %452 = vmatpush1.msra.mxu0 0.0
        %453 = vmatprep.subr.mxu0 0.0
        %454 = vmatpush1.msra.mxu0 0.0
        %455 = vmatprep.subr.mxu0 0.0
        %456 = vmatpush1.msra.mxu0 0.0
        %457 = vmatprep.subr.mxu0 0.0
        %458 = vmatpush1.msra.mxu0 0.0
        %459 = vmatprep.subr.mxu0 0.0
        %460 = vmatpush1.msra.mxu0 0.0
        %461 = vmatprep.subr.mxu0 0.0
        %462 = vmatpush1.msra.mxu0 0.0
        %463 = vmatprep.subr.mxu0 0.0
        %464 = vmatpush1.msra.mxu0 0.0
        %465 = vmatprep.subr.mxu0 0.0
        %466 = vmatpush1.msra.mxu0 %v445
        %467 = vmatprep.subr.mxu0 0.0
        %468 = vmatpush1.msra.mxu0 %v436
        %469 = vmatprep.subr.mxu0 0.0
        %470 = vmatpush1.msra.mxu0 %v434
        %471 = vmatprep.subr.mxu0 0.0
        %472 = vmatpush1.msra.mxu0 %v432
        %473 = vmatprep.subr.mxu0 0.0
        %474 = vmatpush1.msra.mxu0 %v430
        %475 = vmatprep.subr.mxu0 0.0
        %476 = vmatpush1.msra.mxu0 %v428
        %477 = vmatprep.subr.mxu0 0.0
        %478 = vmatpush1.msra.mxu0 %v426
        %479 = vmatprep.subr.mxu0 0.0
        %480 = vmatpush2.msra.mxu0 0.0
        %481 = vmatprep.subr.mxu0 0.0
        %482 = vmatpush2.msra.mxu0 0.0
        %483 = vmatprep.subr.mxu0 0.0
        %484 = vmatpush2.msra.mxu0 0.0
        %485 = vmatprep.subr.mxu0 0.0
        %486 = vmatpush2.msra.mxu0 0.0
        %487 = vmatprep.subr.mxu0 0.0
        %488 = vmatpush2.msra.mxu0 0.0
        %489 = vmatprep.subr.mxu0 0.0
        %490 = vmatpush2.msra.mxu0 0.0
        %491 = vmatprep.subr.mxu0 0.0
        %492 = vmatpush2.msra.mxu0 0.0
        %493 = vmatprep.subr.mxu0 0.0
        %494 = vmatpush2.msra.mxu0 0.0
        %495 = vmatprep.subr.mxu0 0.0
        %496 = vmatpush2.msra.mxu0 0.0
        %497 = vmatprep.subr.mxu0 0.0
        %498 = vmatpush2.msra.mxu0 0.0
        %499 = vmatprep.subr.mxu0 0.0
        %500 = vmatpush2.msra.mxu0 0.0
        %501 = vmatprep.subr.mxu0 0.0
        %502 = vmatpush2.msra.mxu0 0.0
        %503 = vmatprep.subr.mxu0 0.0
        %504 = vmatpush2.msra.mxu0 0.0
        %505 = vmatprep.subr.mxu0 0.0
        %506 = vmatpush2.msra.mxu0 0.0
        %507 = vmatprep.subr.mxu0 0.0
        %508 = vmatpush2.msra.mxu0 0.0
        %509 = vmatprep.subr.mxu0 0.0
        %510 = vmatpush2.msra.mxu0 0.0
        %511 = vmatprep.mubr.f32.mxu0 0.0
        %512 = vmatmul.mubr.f32.gmra.mxu0 %v236
        %v513 = vpop.f32.mrf.mxu0
        %v514 = vadd.f32 0.0, %v513
        %v515 = vpop.f32.mrf.mxu0
        %516 = vmatprep.mubr.f32.mxu0 0.0
        %517 = vmatmul.mubr.f32.gmra.mxu0 %v239
        %v518 = vpop.f32.mrf.mxu0
        %v519 = vadd.f32 0.0, %v518
        %v520 = vpop.f32.mrf.mxu0
        %521 = vmatprep.mubr.f32.mxu0 0.0
        %522 = vmatmul.mubr.f32.gmra.mxu0 %v242
        %v523 = vpop.f32.mrf.mxu0
        %v524 = vadd.f32 0.0, %v523
        %v525 = vpop.f32.mrf.mxu0
        %526 = vdwg.mxu0
        %v527 = vsel %vm244, %v199, 0
        %529 = vmatprep.subr.mxu0 0.0
        %530 = vmatpush1.msra.mxu0 0.0
        %531 = vmatprep.subr.mxu0 0.0
        %532 = vmatpush1.msra.mxu0 0.0
        %533 = vmatprep.subr.mxu0 0.0
        %534 = vmatpush1.msra.mxu0 0.0
        %535 = vmatprep.subr.mxu0 0.0
        %536 = vmatpush1.msra.mxu0 0.0
        %537 = vmatprep.subr.mxu0 0.0
        %538 = vmatpush1.msra.mxu0 0.0
        %539 = vmatprep.subr.mxu0 0.0
        %540 = vmatpush1.msra.mxu0 0.0
        %541 = vmatprep.subr.mxu0 0.0
        %542 = vmatpush1.msra.mxu0 0.0
        %543 = vmatprep.subr.mxu0 0.0
        %544 = vmatpush1.msra.mxu0 0.0
        %545 = vmatprep.subr.mxu0 0.0
        %546 = vmatpush1.msra.mxu0 0.0
        %547 = vmatprep.subr.mxu0 0.0
        %548 = vmatpush1.msra.mxu0 %v527
        %549 = vmatprep.subr.mxu0 0.0
        %550 = vmatpush1.msra.mxu0 %v198
        %551 = vmatprep.subr.mxu0 0.0
        %552 = vmatpush1.msra.mxu0 %v197
        %553 = vmatprep.subr.mxu0 0.0
        %554 = vmatpush1.msra.mxu0 %v196
        %555 = vmatprep.subr.mxu0 0.0
        %556 = vmatpush1.msra.mxu0 %v195
        %557 = vmatprep.subr.mxu0 0.0
        %558 = vmatpush1.msra.mxu0 %v194
        %559 = vmatprep.subr.mxu0 0.0
        %560 = vmatpush1.msra.mxu0 %v193
        %561 = vmatprep.subr.mxu0 0.0
        %562 = vmatpush2.msra.mxu0 0.0
        %563 = vmatprep.subr.mxu0 0.0
        %564 = vmatpush2.msra.mxu0 0.0
        %565 = vmatprep.subr.mxu0 0.0
        %566 = vmatpush2.msra.mxu0 0.0
        %567 = vmatprep.subr.mxu0 0.0
        %568 = vmatpush2.msra.mxu0 0.0
        %569 = vmatprep.subr.mxu0 0.0
        %570 = vmatpush2.msra.mxu0 0.0
        %571 = vmatprep.subr.mxu0 0.0
        %572 = vmatpush2.msra.mxu0 0.0
        %573 = vmatprep.subr.mxu0 0.0
        %574 = vmatpush2.msra.mxu0 0.0
        %575 = vmatprep.subr.mxu0 0.0
        %576 = vmatpush2.msra.mxu0 0.0
        %577 = vmatprep.subr.mxu0 0.0
        %578 = vmatpush2.msra.mxu0 0.0
        %579 = vmatprep.subr.mxu0 0.0
        %580 = vmatpush2.msra.mxu0 0.0
        %581 = vmatprep.subr.mxu0 0.0
        %582 = vmatpush2.msra.mxu0 0.0
        %583 = vmatprep.subr.mxu0 0.0
        %584 = vmatpush2.msra.mxu0 0.0
        %585 = vmatprep.subr.mxu0 0.0
        %586 = vmatpush2.msra.mxu0 0.0
        %587 = vmatprep.subr.mxu0 0.0
        %588 = vmatpush2.msra.mxu0 0.0
        %589 = vmatprep.subr.mxu0 0.0
        %590 = vmatpush2.msra.mxu0 0.0
        %591 = vmatprep.subr.mxu0 0.0
        %592 = vmatpush2.msra.mxu0 0.0
        %593 = vmatprep.mubr.f32.mxu0 0.0
        %594 = vmatmul.mubr.f32.gmra.mxu0 %v328
        %v595 = vpop.f32.mrf.mxu0
        %v596 = vadd.f32 %v514, %v595
        %v597 = vpop.f32.mrf.mxu0
        %598 = vmatprep.mubr.f32.mxu0 0.0
        %599 = vmatmul.mubr.f32.gmra.mxu0 %v331
        %v600 = vpop.f32.mrf.mxu0
        %v601 = vadd.f32 %v519, %v600
        %v602 = vpop.f32.mrf.mxu0
        %603 = vmatprep.mubr.f32.mxu0 0.0
        %604 = vmatmul.mubr.f32.gmra.mxu0 %v334
        %v605 = vpop.f32.mrf.mxu0
        %v606 = vadd.f32 %v524, %v605
        %v607 = vpop.f32.mrf.mxu0
        %608 = vdwg.mxu0
        %s609 = scalar_lea.vmem %s1, 48
        %v610 = vld [vmem:[%s609] sm:$0xff]
        %v611 = vld [vmem:[%s609 + $0x8] sm:$0xff]
        %v612 = vld [vmem:[%s609 + $0x10] sm:$0xf]
        %613 = vrot.lane.b32.xlu0 %v183, 126
        %v614 = vpop.permute.xlu0 %613
        %615 = vrot.lane.b32.xlu0 %v184, 126
        %v616 = vpop.permute.xlu0 %615
        %617 = vrot.lane.b32.xlu0 %v185, 126
        %v618 = vpop.permute.xlu0 %617
        %619 = vrot.lane.b32.xlu0 %v186, 126
        %v620 = vpop.permute.xlu0 %619
        %621 = vrot.lane.b32.xlu0 %v187, 126
        %v622 = vpop.permute.xlu0 %621
        %623 = vrot.lane.b32.xlu0 %v188, 126
        %v624 = vpop.permute.xlu0 %623
        %625 = vrot.lane.b32.xlu0 %v189, 126
        %v626 = vpop.permute.xlu0 %625
        %v634 = vsel %vm234, %v610, 0
        %v637 = vsel %vm234, %v611, 0
        %v640 = vsel %vm234, %v612, 0
        %v642 = vsel %vm244, %v626, 0
        %644 = vmatprep.subr.mxu0 0.0
        %645 = vmatpush1.msra.mxu0 0.0
        %646 = vmatprep.subr.mxu0 0.0
        %647 = vmatpush1.msra.mxu0 0.0
        %648 = vmatprep.subr.mxu0 0.0
        %649 = vmatpush1.msra.mxu0 0.0
        %650 = vmatprep.subr.mxu0 0.0
        %651 = vmatpush1.msra.mxu0 0.0
        %652 = vmatprep.subr.mxu0 0.0
        %653 = vmatpush1.msra.mxu0 0.0
        %654 = vmatprep.subr.mxu0 0.0
        %655 = vmatpush1.msra.mxu0 0.0
        %656 = vmatprep.subr.mxu0 0.0
        %657 = vmatpush1.msra.mxu0 0.0
        %658 = vmatprep.subr.mxu0 0.0
        %659 = vmatpush1.msra.mxu0 0.0
        %660 = vmatprep.subr.mxu0 0.0
        %661 = vmatpush1.msra.mxu0 0.0
        %662 = vmatprep.subr.mxu0 0.0
        %663 = vmatpush1.msra.mxu0 %v642
        %664 = vmatprep.subr.mxu0 0.0
        %665 = vmatpush1.msra.mxu0 %v624
        %666 = vmatprep.subr.mxu0 0.0
        %667 = vmatpush1.msra.mxu0 %v622
        %668 = vmatprep.subr.mxu0 0.0
        %669 = vmatpush1.msra.mxu0 %v620
        %670 = vmatprep.subr.mxu0 0.0
        %671 = vmatpush1.msra.mxu0 %v618
        %672 = vmatprep.subr.mxu0 0.0
        %673 = vmatpush1.msra.mxu0 %v616
        %674 = vmatprep.subr.mxu0 0.0
        %675 = vmatpush1.msra.mxu0 %v614
        %676 = vmatprep.subr.mxu0 0.0
        %677 = vmatpush2.msra.mxu0 0.0
        %678 = vmatprep.subr.mxu0 0.0
        %679 = vmatpush2.msra.mxu0 0.0
        %680 = vmatprep.subr.mxu0 0.0
        %681 = vmatpush2.msra.mxu0 0.0
        %682 = vmatprep.subr.mxu0 0.0
        %683 = vmatpush2.msra.mxu0 0.0
        %684 = vmatprep.subr.mxu0 0.0
        %685 = vmatpush2.msra.mxu0 0.0
        %686 = vmatprep.subr.mxu0 0.0
        %687 = vmatpush2.msra.mxu0 0.0
        %688 = vmatprep.subr.mxu0 0.0
        %689 = vmatpush2.msra.mxu0 0.0
        %690 = vmatprep.subr.mxu0 0.0
        %691 = vmatpush2.msra.mxu0 0.0
        %692 = vmatprep.subr.mxu0 0.0
        %693 = vmatpush2.msra.mxu0 0.0
        %694 = vmatprep.subr.mxu0 0.0
        %695 = vmatpush2.msra.mxu0 0.0
        %696 = vmatprep.subr.mxu0 0.0
        %697 = vmatpush2.msra.mxu0 0.0
        %698 = vmatprep.subr.mxu0 0.0
        %699 = vmatpush2.msra.mxu0 0.0
        %700 = vmatprep.subr.mxu0 0.0
        %701 = vmatpush2.msra.mxu0 0.0
        %702 = vmatprep.subr.mxu0 0.0
        %703 = vmatpush2.msra.mxu0 0.0
        %704 = vmatprep.subr.mxu0 0.0
        %705 = vmatpush2.msra.mxu0 0.0
        %706 = vmatprep.subr.mxu0 0.0
        %707 = vmatpush2.msra.mxu0 0.0
        %708 = vmatprep.mubr.f32.mxu0 0.0
        %709 = vmatmul.mubr.f32.gmra.mxu0 %v634
        %v710 = vpop.f32.mrf.mxu0
        %v711 = vadd.f32 0.0, %v710
        %v712 = vpop.f32.mrf.mxu0
        %713 = vmatprep.mubr.f32.mxu0 0.0
        %714 = vmatmul.mubr.f32.gmra.mxu0 %v637
        %v715 = vpop.f32.mrf.mxu0
        %v716 = vadd.f32 0.0, %v715
        %v717 = vpop.f32.mrf.mxu0
        %718 = vmatprep.mubr.f32.mxu0 0.0
        %719 = vmatmul.mubr.f32.gmra.mxu0 %v640
        %v720 = vpop.f32.mrf.mxu0
        %v721 = vadd.f32 0.0, %v720
        %v722 = vpop.f32.mrf.mxu0
        %723 = vdwg.mxu0
        %v724 = vadd.f32 %v405, %v711
        %v725 = vadd.f32 %v410, %v716
        %v726 = vadd.f32 %v415, %v721
        %727 = vrot.lane.b32.xlu0 %v193, 126
        %v728 = vpop.permute.xlu0 %727
        %729 = vrot.lane.b32.xlu0 %v194, 126
        %v730 = vpop.permute.xlu0 %729
        %731 = vrot.lane.b32.xlu0 %v195, 126
        %v732 = vpop.permute.xlu0 %731
        %733 = vrot.lane.b32.xlu0 %v196, 126
        %v734 = vpop.permute.xlu0 %733
        %735 = vrot.lane.b32.xlu0 %v197, 126
        %v736 = vpop.permute.xlu0 %735
        %737 = vrot.lane.b32.xlu0 %v198, 126
        %v738 = vpop.permute.xlu0 %737
        %739 = vrot.lane.b32.xlu0 %v199, 126
        %v740 = vpop.permute.xlu0 %739
        %v747 = vsel %vm244, %v740, 0
        %749 = vmatprep.subr.mxu0 0.0
        %750 = vmatpush1.msra.mxu0 0.0
        %751 = vmatprep.subr.mxu0 0.0
        %752 = vmatpush1.msra.mxu0 0.0
        %753 = vmatprep.subr.mxu0 0.0
        %754 = vmatpush1.msra.mxu0 0.0
        %755 = vmatprep.subr.mxu0 0.0
        %756 = vmatpush1.msra.mxu0 0.0
        %757 = vmatprep.subr.mxu0 0.0
        %758 = vmatpush1.msra.mxu0 0.0
        %759 = vmatprep.subr.mxu0 0.0
        %760 = vmatpush1.msra.mxu0 0.0
        %761 = vmatprep.subr.mxu0 0.0
        %762 = vmatpush1.msra.mxu0 0.0
        %763 = vmatprep.subr.mxu0 0.0
        %764 = vmatpush1.msra.mxu0 0.0
        %765 = vmatprep.subr.mxu0 0.0
        %766 = vmatpush1.msra.mxu0 0.0
        %767 = vmatprep.subr.mxu0 0.0
        %768 = vmatpush1.msra.mxu0 %v747
        %769 = vmatprep.subr.mxu0 0.0
        %770 = vmatpush1.msra.mxu0 %v738
        %771 = vmatprep.subr.mxu0 0.0
        %772 = vmatpush1.msra.mxu0 %v736
        %773 = vmatprep.subr.mxu0 0.0
        %774 = vmatpush1.msra.mxu0 %v734
        %775 = vmatprep.subr.mxu0 0.0
        %776 = vmatpush1.msra.mxu0 %v732
        %777 = vmatprep.subr.mxu0 0.0
        %778 = vmatpush1.msra.mxu0 %v730
        %779 = vmatprep.subr.mxu0 0.0
        %780 = vmatpush1.msra.mxu0 %v728
        %781 = vmatprep.subr.mxu0 0.0
        %782 = vmatpush2.msra.mxu0 0.0
        %783 = vmatprep.subr.mxu0 0.0
        %784 = vmatpush2.msra.mxu0 0.0
        %785 = vmatprep.subr.mxu0 0.0
        %786 = vmatpush2.msra.mxu0 0.0
        %787 = vmatprep.subr.mxu0 0.0
        %788 = vmatpush2.msra.mxu0 0.0
        %789 = vmatprep.subr.mxu0 0.0
        %790 = vmatpush2.msra.mxu0 0.0
        %791 = vmatprep.subr.mxu0 0.0
        %792 = vmatpush2.msra.mxu0 0.0
        %793 = vmatprep.subr.mxu0 0.0
        %794 = vmatpush2.msra.mxu0 0.0
        %795 = vmatprep.subr.mxu0 0.0
        %796 = vmatpush2.msra.mxu0 0.0
        %797 = vmatprep.subr.mxu0 0.0
        %798 = vmatpush2.msra.mxu0 0.0
        %799 = vmatprep.subr.mxu0 0.0
        %800 = vmatpush2.msra.mxu0 0.0
        %801 = vmatprep.subr.mxu0 0.0
        %802 = vmatpush2.msra.mxu0 0.0
        %803 = vmatprep.subr.mxu0 0.0
        %804 = vmatpush2.msra.mxu0 0.0
        %805 = vmatprep.subr.mxu0 0.0
        %806 = vmatpush2.msra.mxu0 0.0
        %807 = vmatprep.subr.mxu0 0.0
        %808 = vmatpush2.msra.mxu0 0.0
        %809 = vmatprep.subr.mxu0 0.0
        %810 = vmatpush2.msra.mxu0 0.0
        %811 = vmatprep.subr.mxu0 0.0
        %812 = vmatpush2.msra.mxu0 0.0
        %813 = vmatprep.mubr.f32.mxu0 0.0
        %814 = vmatmul.mubr.f32.gmra.mxu0 %v634
        %v815 = vpop.f32.mrf.mxu0
        %v816 = vadd.f32 0.0, %v815
        %v817 = vpop.f32.mrf.mxu0
        %818 = vmatprep.mubr.f32.mxu0 0.0
        %819 = vmatmul.mubr.f32.gmra.mxu0 %v637
        %v820 = vpop.f32.mrf.mxu0
        %v821 = vadd.f32 0.0, %v820
        %v822 = vpop.f32.mrf.mxu0
        %823 = vmatprep.mubr.f32.mxu0 0.0
        %824 = vmatmul.mubr.f32.gmra.mxu0 %v640
        %v825 = vpop.f32.mrf.mxu0
        %v826 = vadd.f32 0.0, %v825
        %v827 = vpop.f32.mrf.mxu0
        %828 = vdwg.mxu0
        %v829 = vadd.f32 %v596, %v816
        %v830 = vadd.f32 %v601, %v821
        %v831 = vadd.f32 %v606, %v826
        %s832 = scalar_lea.vmem %s1, 72
        %v833 = vld [vmem:[%s832] sm:$0xff]
        %v834 = vld [vmem:[%s832 + $0x8] sm:$0xff]
        %v835 = vld [vmem:[%s832 + $0x10] sm:$0xf]
        %836 = vrot.lane.b32.xlu0 %v183, 125
        %v837 = vpop.permute.xlu0 %836
        %838 = vrot.lane.b32.xlu0 %v184, 125
        %v839 = vpop.permute.xlu0 %838
        %840 = vrot.lane.b32.xlu0 %v185, 125
        %v841 = vpop.permute.xlu0 %840
        %842 = vrot.lane.b32.xlu0 %v186, 125
        %v843 = vpop.permute.xlu0 %842
        %844 = vrot.lane.b32.xlu0 %v187, 125
        %v845 = vpop.permute.xlu0 %844
        %846 = vrot.lane.b32.xlu0 %v188, 125
        %v847 = vpop.permute.xlu0 %846
        %848 = vrot.lane.b32.xlu0 %v189, 125
        %v849 = vpop.permute.xlu0 %848
        %v857 = vsel %vm234, %v833, 0
        %v860 = vsel %vm234, %v834, 0
        %v863 = vsel %vm234, %v835, 0
        %v865 = vsel %vm244, %v849, 0
        %867 = vmatprep.subr.mxu0 0.0
        %868 = vmatpush1.msra.mxu0 0.0
        %869 = vmatprep.subr.mxu0 0.0
        %870 = vmatpush1.msra.mxu0 0.0
        %871 = vmatprep.subr.mxu0 0.0
        %872 = vmatpush1.msra.mxu0 0.0
        %873 = vmatprep.subr.mxu0 0.0
        %874 = vmatpush1.msra.mxu0 0.0
        %875 = vmatprep.subr.mxu0 0.0
        %876 = vmatpush1.msra.mxu0 0.0
        %877 = vmatprep.subr.mxu0 0.0
        %878 = vmatpush1.msra.mxu0 0.0
        %879 = vmatprep.subr.mxu0 0.0
        %880 = vmatpush1.msra.mxu0 0.0
        %881 = vmatprep.subr.mxu0 0.0
        %882 = vmatpush1.msra.mxu0 0.0
        %883 = vmatprep.subr.mxu0 0.0
        %884 = vmatpush1.msra.mxu0 0.0
        %885 = vmatprep.subr.mxu0 0.0
        %886 = vmatpush1.msra.mxu0 %v865
        %887 = vmatprep.subr.mxu0 0.0
        %888 = vmatpush1.msra.mxu0 %v847
        %889 = vmatprep.subr.mxu0 0.0
        %890 = vmatpush1.msra.mxu0 %v845
        %891 = vmatprep.subr.mxu0 0.0
        %892 = vmatpush1.msra.mxu0 %v843
        %893 = vmatprep.subr.mxu0 0.0
        %894 = vmatpush1.msra.mxu0 %v841
        %895 = vmatprep.subr.mxu0 0.0
        %896 = vmatpush1.msra.mxu0 %v839
        %897 = vmatprep.subr.mxu0 0.0
        %898 = vmatpush1.msra.mxu0 %v837
        %899 = vmatprep.subr.mxu0 0.0
        %900 = vmatpush2.msra.mxu0 0.0
        %901 = vmatprep.subr.mxu0 0.0
        %902 = vmatpush2.msra.mxu0 0.0
        %903 = vmatprep.subr.mxu0 0.0
        %904 = vmatpush2.msra.mxu0 0.0
        %905 = vmatprep.subr.mxu0 0.0
        %906 = vmatpush2.msra.mxu0 0.0
        %907 = vmatprep.subr.mxu0 0.0
        %908 = vmatpush2.msra.mxu0 0.0
        %909 = vmatprep.subr.mxu0 0.0
        %910 = vmatpush2.msra.mxu0 0.0
        %911 = vmatprep.subr.mxu0 0.0
        %912 = vmatpush2.msra.mxu0 0.0
        %913 = vmatprep.subr.mxu0 0.0
        %914 = vmatpush2.msra.mxu0 0.0
        %915 = vmatprep.subr.mxu0 0.0
        %916 = vmatpush2.msra.mxu0 0.0
        %917 = vmatprep.subr.mxu0 0.0
        %918 = vmatpush2.msra.mxu0 0.0
        %919 = vmatprep.subr.mxu0 0.0
        %920 = vmatpush2.msra.mxu0 0.0
        %921 = vmatprep.subr.mxu0 0.0
        %922 = vmatpush2.msra.mxu0 0.0
        %923 = vmatprep.subr.mxu0 0.0
        %924 = vmatpush2.msra.mxu0 0.0
        %925 = vmatprep.subr.mxu0 0.0
        %926 = vmatpush2.msra.mxu0 0.0
        %927 = vmatprep.subr.mxu0 0.0
        %928 = vmatpush2.msra.mxu0 0.0
        %929 = vmatprep.subr.mxu0 0.0
        %930 = vmatpush2.msra.mxu0 0.0
        %931 = vmatprep.mubr.f32.mxu0 0.0
        %932 = vmatmul.mubr.f32.gmra.mxu0 %v857
        %v933 = vpop.f32.mrf.mxu0
        %v934 = vadd.f32 0.0, %v933
        %v935 = vpop.f32.mrf.mxu0
        %936 = vmatprep.mubr.f32.mxu0 0.0
        %937 = vmatmul.mubr.f32.gmra.mxu0 %v860
        %v938 = vpop.f32.mrf.mxu0
        %v939 = vadd.f32 0.0, %v938
        %v940 = vpop.f32.mrf.mxu0
        %941 = vmatprep.mubr.f32.mxu0 0.0
        %942 = vmatmul.mubr.f32.gmra.mxu0 %v863
        %v943 = vpop.f32.mrf.mxu0
        %v944 = vadd.f32 0.0, %v943
        %v945 = vpop.f32.mrf.mxu0
        %946 = vdwg.mxu0
        %v947 = vadd.f32 %v724, %v934
        %v948 = vadd.f32 %v725, %v939
        %v949 = vadd.f32 %v726, %v944
        %950 = vrot.lane.b32.xlu0 %v193, 125
        %v951 = vpop.permute.xlu0 %950
        %952 = vrot.lane.b32.xlu0 %v194, 125
        %v953 = vpop.permute.xlu0 %952
        %954 = vrot.lane.b32.xlu0 %v195, 125
        %v955 = vpop.permute.xlu0 %954
        %956 = vrot.lane.b32.xlu0 %v196, 125
        %v957 = vpop.permute.xlu0 %956
        %958 = vrot.lane.b32.xlu0 %v197, 125
        %v959 = vpop.permute.xlu0 %958
        %960 = vrot.lane.b32.xlu0 %v198, 125
        %v961 = vpop.permute.xlu0 %960
        %962 = vrot.lane.b32.xlu0 %v199, 125
        %v963 = vpop.permute.xlu0 %962
        %v970 = vsel %vm244, %v963, 0
        %972 = vmatprep.subr.mxu0 0.0
        %973 = vmatpush1.msra.mxu0 0.0
        %974 = vmatprep.subr.mxu0 0.0
        %975 = vmatpush1.msra.mxu0 0.0
        %976 = vmatprep.subr.mxu0 0.0
        %977 = vmatpush1.msra.mxu0 0.0
        %978 = vmatprep.subr.mxu0 0.0
        %979 = vmatpush1.msra.mxu0 0.0
        %980 = vmatprep.subr.mxu0 0.0
        %981 = vmatpush1.msra.mxu0 0.0
        %982 = vmatprep.subr.mxu0 0.0
        %983 = vmatpush1.msra.mxu0 0.0
        %984 = vmatprep.subr.mxu0 0.0
        %985 = vmatpush1.msra.mxu0 0.0
        %986 = vmatprep.subr.mxu0 0.0
        %987 = vmatpush1.msra.mxu0 0.0
        %988 = vmatprep.subr.mxu0 0.0
        %989 = vmatpush1.msra.mxu0 0.0
        %990 = vmatprep.subr.mxu0 0.0
        %991 = vmatpush1.msra.mxu0 %v970
        %992 = vmatprep.subr.mxu0 0.0
        %993 = vmatpush1.msra.mxu0 %v961
        %994 = vmatprep.subr.mxu0 0.0
        %995 = vmatpush1.msra.mxu0 %v959
        %996 = vmatprep.subr.mxu0 0.0
        %997 = vmatpush1.msra.mxu0 %v957
        %998 = vmatprep.subr.mxu0 0.0
        %999 = vmatpush1.msra.mxu0 %v955
        %1000 = vmatprep.subr.mxu0 0.0
        %1001 = vmatpush1.msra.mxu0 %v953
        %1002 = vmatprep.subr.mxu0 0.0
        %1003 = vmatpush1.msra.mxu0 %v951
        %1004 = vmatprep.subr.mxu0 0.0
        %1005 = vmatpush2.msra.mxu0 0.0
        %1006 = vmatprep.subr.mxu0 0.0
        %1007 = vmatpush2.msra.mxu0 0.0
        %1008 = vmatprep.subr.mxu0 0.0
        %1009 = vmatpush2.msra.mxu0 0.0
        %1010 = vmatprep.subr.mxu0 0.0
        %1011 = vmatpush2.msra.mxu0 0.0
        %1012 = vmatprep.subr.mxu0 0.0
        %1013 = vmatpush2.msra.mxu0 0.0
        %1014 = vmatprep.subr.mxu0 0.0
        %1015 = vmatpush2.msra.mxu0 0.0
        %1016 = vmatprep.subr.mxu0 0.0
        %1017 = vmatpush2.msra.mxu0 0.0
        %1018 = vmatprep.subr.mxu0 0.0
        %1019 = vmatpush2.msra.mxu0 0.0
        %1020 = vmatprep.subr.mxu0 0.0
        %1021 = vmatpush2.msra.mxu0 0.0
        %1022 = vmatprep.subr.mxu0 0.0
        %1023 = vmatpush2.msra.mxu0 0.0
        %1024 = vmatprep.subr.mxu0 0.0
        %1025 = vmatpush2.msra.mxu0 0.0
        %1026 = vmatprep.subr.mxu0 0.0
        %1027 = vmatpush2.msra.mxu0 0.0
        %1028 = vmatprep.subr.mxu0 0.0
        %1029 = vmatpush2.msra.mxu0 0.0
        %1030 = vmatprep.subr.mxu0 0.0
        %1031 = vmatpush2.msra.mxu0 0.0
        %1032 = vmatprep.subr.mxu0 0.0
        %1033 = vmatpush2.msra.mxu0 0.0
        %1034 = vmatprep.subr.mxu0 0.0
        %1035 = vmatpush2.msra.mxu0 0.0
        %1036 = vmatprep.mubr.f32.mxu0 0.0
        %1037 = vmatmul.mubr.f32.gmra.mxu0 %v857
        %v1038 = vpop.f32.mrf.mxu0
        %v1039 = vadd.f32 0.0, %v1038
        %v1040 = vpop.f32.mrf.mxu0
        %1041 = vmatprep.mubr.f32.mxu0 0.0
        %1042 = vmatmul.mubr.f32.gmra.mxu0 %v860
        %v1043 = vpop.f32.mrf.mxu0
        %v1044 = vadd.f32 0.0, %v1043
        %v1045 = vpop.f32.mrf.mxu0
        %1046 = vmatprep.mubr.f32.mxu0 0.0
        %1047 = vmatmul.mubr.f32.gmra.mxu0 %v863
        %v1048 = vpop.f32.mrf.mxu0
        %v1049 = vadd.f32 0.0, %v1048
        %v1050 = vpop.f32.mrf.mxu0
        %1051 = vdwg.mxu0
        %v1052 = vadd.f32 %v829, %v1039
        %v1053 = vadd.f32 %v830, %v1044
        %v1054 = vadd.f32 %v831, %v1049
        %s1055 = scalar_lea.vmem %s1, 96
        %v1056 = vld [vmem:[%s1055] sm:$0xff]
        %v1057 = vld [vmem:[%s1055 + $0x8] sm:$0xff]
        %v1058 = vld [vmem:[%s1055 + $0x10] sm:$0xf]
        %1059 = vrot.lane.b32.xlu0 %v183, 124
        %v1060 = vpop.permute.xlu0 %1059
        %1061 = vrot.lane.b32.xlu0 %v184, 124
        %v1062 = vpop.permute.xlu0 %1061
        %1063 = vrot.lane.b32.xlu0 %v185, 124
        %v1064 = vpop.permute.xlu0 %1063
        %1065 = vrot.lane.b32.xlu0 %v186, 124
        %v1066 = vpop.permute.xlu0 %1065
        %1067 = vrot.lane.b32.xlu0 %v187, 124
        %v1068 = vpop.permute.xlu0 %1067
        %1069 = vrot.lane.b32.xlu0 %v188, 124
        %v1070 = vpop.permute.xlu0 %1069
        %1071 = vrot.lane.b32.xlu0 %v189, 124
        %v1072 = vpop.permute.xlu0 %1071
        %v1080 = vsel %vm234, %v1056, 0
        %v1083 = vsel %vm234, %v1057, 0
        %v1086 = vsel %vm234, %v1058, 0
        %v1088 = vsel %vm244, %v1072, 0
        %1090 = vmatprep.subr.mxu0 0.0
        %1091 = vmatpush1.msra.mxu0 0.0
        %1092 = vmatprep.subr.mxu0 0.0
        %1093 = vmatpush1.msra.mxu0 0.0
        %1094 = vmatprep.subr.mxu0 0.0
        %1095 = vmatpush1.msra.mxu0 0.0
        %1096 = vmatprep.subr.mxu0 0.0
        %1097 = vmatpush1.msra.mxu0 0.0
        %1098 = vmatprep.subr.mxu0 0.0
        %1099 = vmatpush1.msra.mxu0 0.0
        %1100 = vmatprep.subr.mxu0 0.0
        %1101 = vmatpush1.msra.mxu0 0.0
        %1102 = vmatprep.subr.mxu0 0.0
        %1103 = vmatpush1.msra.mxu0 0.0
        %1104 = vmatprep.subr.mxu0 0.0
        %1105 = vmatpush1.msra.mxu0 0.0
        %1106 = vmatprep.subr.mxu0 0.0
        %1107 = vmatpush1.msra.mxu0 0.0
        %1108 = vmatprep.subr.mxu0 0.0
        %1109 = vmatpush1.msra.mxu0 %v1088
        %1110 = vmatprep.subr.mxu0 0.0
        %1111 = vmatpush1.msra.mxu0 %v1070
        %1112 = vmatprep.subr.mxu0 0.0
        %1113 = vmatpush1.msra.mxu0 %v1068
        %1114 = vmatprep.subr.mxu0 0.0
        %1115 = vmatpush1.msra.mxu0 %v1066
        %1116 = vmatprep.subr.mxu0 0.0
        %1117 = vmatpush1.msra.mxu0 %v1064
        %1118 = vmatprep.subr.mxu0 0.0
        %1119 = vmatpush1.msra.mxu0 %v1062
        %1120 = vmatprep.subr.mxu0 0.0
        %1121 = vmatpush1.msra.mxu0 %v1060
        %1122 = vmatprep.subr.mxu0 0.0
        %1123 = vmatpush2.msra.mxu0 0.0
        %1124 = vmatprep.subr.mxu0 0.0
        %1125 = vmatpush2.msra.mxu0 0.0
        %1126 = vmatprep.subr.mxu0 0.0
        %1127 = vmatpush2.msra.mxu0 0.0
        %1128 = vmatprep.subr.mxu0 0.0
        %1129 = vmatpush2.msra.mxu0 0.0
        %1130 = vmatprep.subr.mxu0 0.0
        %1131 = vmatpush2.msra.mxu0 0.0
        %1132 = vmatprep.subr.mxu0 0.0
        %1133 = vmatpush2.msra.mxu0 0.0
        %1134 = vmatprep.subr.mxu0 0.0
        %1135 = vmatpush2.msra.mxu0 0.0
        %1136 = vmatprep.subr.mxu0 0.0
        %1137 = vmatpush2.msra.mxu0 0.0
        %1138 = vmatprep.subr.mxu0 0.0
        %1139 = vmatpush2.msra.mxu0 0.0
        %1140 = vmatprep.subr.mxu0 0.0
        %1141 = vmatpush2.msra.mxu0 0.0
        %1142 = vmatprep.subr.mxu0 0.0
        %1143 = vmatpush2.msra.mxu0 0.0
        %1144 = vmatprep.subr.mxu0 0.0
        %1145 = vmatpush2.msra.mxu0 0.0
        %1146 = vmatprep.subr.mxu0 0.0
        %1147 = vmatpush2.msra.mxu0 0.0
        %1148 = vmatprep.subr.mxu0 0.0
        %1149 = vmatpush2.msra.mxu0 0.0
        %1150 = vmatprep.subr.mxu0 0.0
        %1151 = vmatpush2.msra.mxu0 0.0
        %1152 = vmatprep.subr.mxu0 0.0
        %1153 = vmatpush2.msra.mxu0 0.0
        %1154 = vmatprep.mubr.f32.mxu0 0.0
        %1155 = vmatmul.mubr.f32.gmra.mxu0 %v1080
        %v1156 = vpop.f32.mrf.mxu0
        %v1157 = vadd.f32 0.0, %v1156
        %v1158 = vpop.f32.mrf.mxu0
        %1159 = vmatprep.mubr.f32.mxu0 0.0
        %1160 = vmatmul.mubr.f32.gmra.mxu0 %v1083
        %v1161 = vpop.f32.mrf.mxu0
        %v1162 = vadd.f32 0.0, %v1161
        %v1163 = vpop.f32.mrf.mxu0
        %1164 = vmatprep.mubr.f32.mxu0 0.0
        %1165 = vmatmul.mubr.f32.gmra.mxu0 %v1086
        %v1166 = vpop.f32.mrf.mxu0
        %v1167 = vadd.f32 0.0, %v1166
        %v1168 = vpop.f32.mrf.mxu0
        %1169 = vdwg.mxu0
        %v1170 = vadd.f32 %v947, %v1157
        %v1171 = vadd.f32 %v948, %v1162
        %v1172 = vadd.f32 %v949, %v1167
        %1173 = vrot.lane.b32.xlu0 %v193, 124
        %v1174 = vpop.permute.xlu0 %1173
        %1175 = vrot.lane.b32.xlu0 %v194, 124
        %v1176 = vpop.permute.xlu0 %1175
        %1177 = vrot.lane.b32.xlu0 %v195, 124
        %v1178 = vpop.permute.xlu0 %1177
        %1179 = vrot.lane.b32.xlu0 %v196, 124
        %v1180 = vpop.permute.xlu0 %1179
        %1181 = vrot.lane.b32.xlu0 %v197, 124
        %v1182 = vpop.permute.xlu0 %1181
        %1183 = vrot.lane.b32.xlu0 %v198, 124
        %v1184 = vpop.permute.xlu0 %1183
        %1185 = vrot.lane.b32.xlu0 %v199, 124
        %v1186 = vpop.permute.xlu0 %1185
        %v1193 = vsel %vm244, %v1186, 0
        %1195 = vmatprep.subr.mxu0 0.0
        %1196 = vmatpush1.msra.mxu0 0.0
        %1197 = vmatprep.subr.mxu0 0.0
        %1198 = vmatpush1.msra.mxu0 0.0
        %1199 = vmatprep.subr.mxu0 0.0
        %1200 = vmatpush1.msra.mxu0 0.0
        %1201 = vmatprep.subr.mxu0 0.0
        %1202 = vmatpush1.msra.mxu0 0.0
        %1203 = vmatprep.subr.mxu0 0.0
        %1204 = vmatpush1.msra.mxu0 0.0
        %1205 = vmatprep.subr.mxu0 0.0
        %1206 = vmatpush1.msra.mxu0 0.0
        %1207 = vmatprep.subr.mxu0 0.0
        %1208 = vmatpush1.msra.mxu0 0.0
        %1209 = vmatprep.subr.mxu0 0.0
        %1210 = vmatpush1.msra.mxu0 0.0
        %1211 = vmatprep.subr.mxu0 0.0
        %1212 = vmatpush1.msra.mxu0 0.0
        %1213 = vmatprep.subr.mxu0 0.0
        %1214 = vmatpush1.msra.mxu0 %v1193
        %1215 = vmatprep.subr.mxu0 0.0
        %1216 = vmatpush1.msra.mxu0 %v1184
        %1217 = vmatprep.subr.mxu0 0.0
        %1218 = vmatpush1.msra.mxu0 %v1182
        %1219 = vmatprep.subr.mxu0 0.0
        %1220 = vmatpush1.msra.mxu0 %v1180
        %1221 = vmatprep.subr.mxu0 0.0
        %1222 = vmatpush1.msra.mxu0 %v1178
        %1223 = vmatprep.subr.mxu0 0.0
        %1224 = vmatpush1.msra.mxu0 %v1176
        %1225 = vmatprep.subr.mxu0 0.0
        %1226 = vmatpush1.msra.mxu0 %v1174
        %1227 = vmatprep.subr.mxu0 0.0
        %1228 = vmatpush2.msra.mxu0 0.0
        %1229 = vmatprep.subr.mxu0 0.0
        %1230 = vmatpush2.msra.mxu0 0.0
        %1231 = vmatprep.subr.mxu0 0.0
        %1232 = vmatpush2.msra.mxu0 0.0
        %1233 = vmatprep.subr.mxu0 0.0
        %1234 = vmatpush2.msra.mxu0 0.0
        %1235 = vmatprep.subr.mxu0 0.0
        %1236 = vmatpush2.msra.mxu0 0.0
        %1237 = vmatprep.subr.mxu0 0.0
        %1238 = vmatpush2.msra.mxu0 0.0
        %1239 = vmatprep.subr.mxu0 0.0
        %1240 = vmatpush2.msra.mxu0 0.0
        %1241 = vmatprep.subr.mxu0 0.0
        %1242 = vmatpush2.msra.mxu0 0.0
        %1243 = vmatprep.subr.mxu0 0.0
        %1244 = vmatpush2.msra.mxu0 0.0
        %1245 = vmatprep.subr.mxu0 0.0
        %1246 = vmatpush2.msra.mxu0 0.0
        %1247 = vmatprep.subr.mxu0 0.0
        %1248 = vmatpush2.msra.mxu0 0.0
        %1249 = vmatprep.subr.mxu0 0.0
        %1250 = vmatpush2.msra.mxu0 0.0
        %1251 = vmatprep.subr.mxu0 0.0
        %1252 = vmatpush2.msra.mxu0 0.0
        %1253 = vmatprep.subr.mxu0 0.0
        %1254 = vmatpush2.msra.mxu0 0.0
        %1255 = vmatprep.subr.mxu0 0.0
        %1256 = vmatpush2.msra.mxu0 0.0
        %1257 = vmatprep.subr.mxu0 0.0
        %1258 = vmatpush2.msra.mxu0 0.0
        %1259 = vmatprep.mubr.f32.mxu0 0.0
        %1260 = vmatmul.mubr.f32.gmra.mxu0 %v1080
        %v1261 = vpop.f32.mrf.mxu0
        %v1262 = vadd.f32 0.0, %v1261
        %v1263 = vpop.f32.mrf.mxu0
        %1264 = vmatprep.mubr.f32.mxu0 0.0
        %1265 = vmatmul.mubr.f32.gmra.mxu0 %v1083
        %v1266 = vpop.f32.mrf.mxu0
        %v1267 = vadd.f32 0.0, %v1266
        %v1268 = vpop.f32.mrf.mxu0
        %1269 = vmatprep.mubr.f32.mxu0 0.0
        %1270 = vmatmul.mubr.f32.gmra.mxu0 %v1086
        %v1271 = vpop.f32.mrf.mxu0
        %v1272 = vadd.f32 0.0, %v1271
        %v1273 = vpop.f32.mrf.mxu0
        %1274 = vdwg.mxu0
        %v1275 = vadd.f32 %v1052, %v1262
        %v1276 = vadd.f32 %v1053, %v1267
        %v1277 = vadd.f32 %v1054, %v1272
        %v1278 = vmax.f32 %v1170, %v1275
        %v1279 = vmax.f32 %v1171, %v1276
        %v1280 = vmax.f32 %v1172, %v1277
        %1282 = vset.pattern.permute.xlu0 0
        %1283 = vperm.xlu0 %1282, %v171
        %v1284 = vpop.permute.xlu0 %1283
        %1287 = vset.pattern.permute.xlu0 0
        %1288 = vperm.xlu0 %1287, %v172
        %v1289 = vpop.permute.xlu0 %1288
        %1292 = vset.pattern.permute.xlu0 0
        %1293 = vperm.xlu0 %1292, %v173
        %v1294 = vpop.permute.xlu0 %1293
        %v1296 = vadd.f32 %v1278, %v1284
        %v1297 = vadd.f32 %v1279, %v1289
        %v1298 = vadd.f32 %v1280, %v1294
        %v1299 = vmax.f32 %v1296, 0.0
        %v1300 = vmax.f32 %v1297, 0.0
        %v1301 = vmax.f32 %v1298, 0.0
        %s1302 = smul.u32 %s175, 24
        %s1303 = scalar_lea.vmem %s170, %s1302
        %vm1304 = vcmask 474112
        %1305 = vst.msk [vmem:[%s1303] sm:$0xff] %vm1304, %v1299
        %1306 = vst.msk [vmem:[%s1303 + $0x8] sm:$0xff] %vm1304, %v1300
        %vm1307 = vcmask 470016
        %1308 = vst.msk [vmem:[%s1303 + $0x10] sm:$0xf] %vm1307, %v1301
      $region37: #{network_forward.4} parent=31 // loop_footer
        %s179 = sadd.s32 1, %s175
      $region38: #{network_forward.4} parent=31 // loop_footer_branch
        %174 = sbr.rel target = $region34
      $region39: #{network_forward.4} parent=31 // loop_exit
        _
      %p1309 = scmp.lt.s32.totalorder %s14, 1
      %s1310 = scalar_select %p1309, %s14, 1
      %s1311 = smul.addr %s1310, 87
      %s1312 = smul.addr %s1311, 8
      %s1313 = scalar_lea.vmem %s3, %s1312
      // Predicated region
      $region40: #{network_forward.4} parent=31 // pred_check
        %p1314 = pneg %p100
      $region41: #{network_forward.4} parent=31 // pred_check_branch
        %1316 = sbr.rel (%p1314) target = $region43
      $region42: #{network_forward.4} parent=31 // pred_region
        _
      $region43: #{network_forward.4} parent=31 // pred_fallthru
        _
    $region32: #{network_forward.4} parent=5 // pred_fallthru
      _
    %p1317 = scmp.le.s32.totalorder 2, %s9
    // Predicated region
    $region44: #{network_forward.4} parent=5 // pred_check
      %p1318 = pneg %p1317
    $region45: #{network_forward.4} parent=5 // pred_check_branch
      %1320 = sbr.rel (%p1318) target = $region47
    $region46: #{network_forward.4} parent=5 // pred_region
      %s1321 = ssub.s32 %s9, 2
      // Predicated region
      $region48: #{network_forward.4} parent=46 // pred_check
        %p1322 = pneg %p106
      $region49: #{network_forward.4} parent=46 // pred_check_branch
        %1324 = sbr.rel (%p1322) target = $region51
      $region50: #{network_forward.4} parent=46 // pred_region
        %p1325 = scmp.lt.s32.totalorder %s15, 1
        %s1326 = scalar_select %p1325, %s15, 1
        %s1327 = smul.addr %s1326, 87
        %s1328 = smul.addr %s1327, 8
        %s1329 = scalar_lea.vmem %s3, %s1328
      $region51: #{network_forward.4} parent=46 // pred_fallthru
        _
    $region47: #{network_forward.4} parent=5 // pred_fallthru
      _
  $region6: #{network_forward.4} parent=0 // loop_footer
    %s13 = sadd.s32 1, %s9
  $region7: #{network_forward.4} parent=0 // loop_footer_branch
    %8 = sbr.rel target = $region3
  $region8: #{network_forward.4} parent=0 // loop_exit
    _

// kernel: network_forward.5
$region0: #{network_forward.5}
  #allocation0 [shape = 'u32[]', space=smem, size = 0x4, offset = 0x4, fixed_abs, tag = 'smem constant byte address 0x4 - core index']
  #allocation1 [shape = 'u32[144,128]{1,0:T(1,128)}', space=vmem, size = 0x12000, scoped, tag = 'internal scratch']
  #allocation2 [shape = 'f32[2,50]{1,0:T(2,128)}', space=vmem, size = 0x400, scoped, tag = 'scratch operand']
  %s0 = inlined_call_operand.vmem [shape: f32[2,16896], index: 0, kind: input, shape index: {}]
  %s1 = inlined_call_operand.vmem [shape: f32[16896,50], index: 1, kind: input, shape index: {}]
  %s2 = inlined_call_operand.vmem [shape: f32[1,50], index: 2, kind: input, shape index: {}]
  %s3 = inlined_call_operand.vmem [shape: f32[50,2], index: 3, kind: input, shape index: {}]
  %s4 = inlined_call_operand.vmem [shape: f32[1,2], index: 4, kind: input, shape index: {}]
  %s5 = inlined_call_operand.hbm [shape: f32[2,2], index: 5, kind: output, shape index: {}]
  %s6 = sld [smem:[#allocation0]]
  $region61: #{network_forward.5} parent=0
    _
  %s8 = ssub.s32 1, %s6
  %s9 = scalar_select 0, %s8, %s6
  $region1: #{network_forward.5} parent=0
    #allocation3 [shape = 'u8[1024]{0}', space=vmem, size = 0x400, scoped, tag = 'output window, operand 0, single buffered']
    #allocation4 [shape = 's32[2]{0}', space=sflag, size = 0x8, scoped, tag = 'scoped memory for network_forward.5']
    %10 = vsyncpa [#allocation4], 0
    loop: start=0, step=1, limit=6
    $region2: #{network_forward.5} parent=1 // loop_pre_header
      _
    $region3: #{network_forward.5} parent=1 // loop_header
      %s12 = sphi 0, %s16
      %p13 = scmp.ge.s32.totalorder %s12, 6
      %s22 = sphi 0, %s24
      %s25 = sphi 0, %s22
      %s26 = sphi 0, %s25
      %s42 = sphi 0, %s26
      %s48 = sphi 0, %s50
      %s51 = sphi 0, %s48
      %s52 = sphi 0, %s51
      %s68 = sphi 0, %s52
      %s72 = sphi 0, %s72
      %s74 = sphi 0, %s72
      %s75 = sphi 0, %s74
      %s89 = sphi 0, %s75
      %s93 = sphi 0, %s93
      %s95 = sphi 0, %s93
      %s96 = sphi 0, %s95
      %s110 = sphi 0, %s96
      %s114 = sphi 0, %s114
      %s116 = sphi 0, %s114
      %s117 = sphi 0, %s116
      %s131 = sphi 0, %s117
      %s135 = sphi 0, %s135
      %s137 = sphi 0, %s135
      %s138 = sphi 0, %s137
      %s152 = sphi 0, %s138
    $region4: #{network_forward.5} parent=1 // loop_header_branch
      %15 = sbr.rel (%p13) target = $region8
    $region5: #{network_forward.5} parent=1 // loop_body
      %s17 = ssub.s32 %s12, 1
      %s18 = ssub.s32 %s12, 2
      %s19 = sadd.s32 %s12, 1
      %s20 = ssub.s32 %s12, %s19
      %p21 = scmp.eq.s32.totalorder %s20, 0
      %s23 = sadd.s32 %s22, 1
      %s24 = scalar_select %p21, %s22, %s23
      %p27 = pneg %p21
      %p28 = scmp.eq.s32.totalorder %s12, 3
      %p29 = por %p27, %p28
      %p30 = scmp.ne.s32.totalorder %s22, %s25
      %p31 = scmp.eq.s32.totalorder %s12, 0
      %p32 = por %p30, %p31
      %p33 = scmp.ne.s32.totalorder %s22, %s25
      %p34 = scmp.eq.s32.totalorder %s17, 3
      %p35 = por %p33, %p34
      %p36 = scmp.ne.s32.totalorder %s25, %s26
      %p37 = scmp.eq.s32.totalorder %s17, 0
      %p38 = por %p36, %p37
      %p39 = scmp.ne.s32.totalorder %s25, %s26
      %p40 = scmp.eq.s32.totalorder %s18, 3
      %p41 = por %p39, %p40
      %p43 = scmp.ne.s32.totalorder %s26, %s42
      %p44 = scmp.eq.s32.totalorder %s18, 0
      %p45 = por %p43, %p44
      %s46 = ssub.s32 %s12, %s19
      %p47 = scmp.eq.s32.totalorder %s46, 0
      %s49 = sadd.s32 %s48, 1
      %s50 = scalar_select %p47, %s48, %s49
      %p53 = pneg %p47
      %p54 = scmp.eq.s32.totalorder %s12, 3
      %p55 = por %p53, %p54
      %p56 = scmp.ne.s32.totalorder %s48, %s51
      %p57 = scmp.eq.s32.totalorder %s12, 0
      %p58 = por %p56, %p57
      %p59 = scmp.ne.s32.totalorder %s48, %s51
      %p60 = scmp.eq.s32.totalorder %s17, 3
      %p61 = por %p59, %p60
      %p62 = scmp.ne.s32.totalorder %s51, %s52
      %p63 = scmp.eq.s32.totalorder %s17, 0
      %p64 = por %p62, %p63
      %p65 = scmp.ne.s32.totalorder %s51, %s52
      %p66 = scmp.eq.s32.totalorder %s18, 3
      %p67 = por %p65, %p66
      %p69 = scmp.ne.s32.totalorder %s52, %s68
      %p70 = scmp.eq.s32.totalorder %s18, 0
      %p71 = por %p69, %p70
      %s73 = sadd.s32 %s72, 1
      %p76 = scmp.eq.s32.totalorder %s12, 3
      %p77 = scmp.ne.s32.totalorder %s72, %s74
      %p78 = scmp.eq.s32.totalorder %s12, 0
      %p79 = por %p77, %p78
      %p80 = scmp.ne.s32.totalorder %s72, %s74
      %p81 = scmp.eq.s32.totalorder %s17, 3
      %p82 = por %p80, %p81
      %p83 = scmp.ne.s32.totalorder %s74, %s75
      %p84 = scmp.eq.s32.totalorder %s17, 0
      %p85 = por %p83, %p84
      %p86 = scmp.ne.s32.totalorder %s74, %s75
      %p87 = scmp.eq.s32.totalorder %s18, 3
      %p88 = por %p86, %p87
      %p90 = scmp.ne.s32.totalorder %s75, %s89
      %p91 = scmp.eq.s32.totalorder %s18, 0
      %p92 = por %p90, %p91
      %s94 = sadd.s32 %s93, 1
      %p97 = scmp.eq.s32.totalorder %s12, 3
      %p98 = scmp.ne.s32.totalorder %s93, %s95
      %p99 = scmp.eq.s32.totalorder %s12, 0
      %p100 = por %p98, %p99
      %p101 = scmp.ne.s32.totalorder %s93, %s95
      %p102 = scmp.eq.s32.totalorder %s17, 3
      %p103 = por %p101, %p102
      %p104 = scmp.ne.s32.totalorder %s95, %s96
      %p105 = scmp.eq.s32.totalorder %s17, 0
      %p106 = por %p104, %p105
      %p107 = scmp.ne.s32.totalorder %s95, %s96
      %p108 = scmp.eq.s32.totalorder %s18, 3
      %p109 = por %p107, %p108
      %p111 = scmp.ne.s32.totalorder %s96, %s110
      %p112 = scmp.eq.s32.totalorder %s18, 0
      %p113 = por %p111, %p112
      %s115 = sadd.s32 %s114, 1
      %p118 = scmp.eq.s32.totalorder %s12, 3
      %p119 = scmp.ne.s32.totalorder %s114, %s116
      %p120 = scmp.eq.s32.totalorder %s12, 0
      %p121 = por %p119, %p120
      %p122 = scmp.ne.s32.totalorder %s114, %s116
      %p123 = scmp.eq.s32.totalorder %s17, 3
      %p124 = por %p122, %p123
      %p125 = scmp.ne.s32.totalorder %s116, %s117
      %p126 = scmp.eq.s32.totalorder %s17, 0
      %p127 = por %p125, %p126
      %p128 = scmp.ne.s32.totalorder %s116, %s117
      %p129 = scmp.eq.s32.totalorder %s18, 3
      %p130 = por %p128, %p129
      %p132 = scmp.ne.s32.totalorder %s117, %s131
      %p133 = scmp.eq.s32.totalorder %s18, 0
      %p134 = por %p132, %p133
      %s136 = sadd.s32 %s135, 1
      %p139 = scmp.eq.s32.totalorder %s12, 3
      %p140 = scmp.ne.s32.totalorder %s135, %s137
      %p141 = scmp.eq.s32.totalorder %s12, 0
      %p142 = por %p140, %p141
      %p143 = scmp.ne.s32.totalorder %s135, %s137
      %p144 = scmp.eq.s32.totalorder %s17, 3
      %p145 = por %p143, %p144
      %p146 = scmp.ne.s32.totalorder %s137, %s138
      %p147 = scmp.eq.s32.totalorder %s17, 0
      %p148 = por %p146, %p147
      %p149 = scmp.ne.s32.totalorder %s137, %s138
      %p150 = scmp.eq.s32.totalorder %s18, 3
      %p151 = por %p149, %p150
      %p153 = scmp.ne.s32.totalorder %s138, %s152
      %p154 = scmp.eq.s32.totalorder %s18, 0
      %p155 = por %p153, %p154
      %p156 = scmp.le.s32.totalorder 1, %s12
      %p157 = scmp.lt.s32.totalorder %s12, 5
      %p158 = pnand %p156, %p157
      %p159 = pneg %p158
      // Predicated region
      $region9: #{network_forward.5} parent=5 // pred_check
        _
      $region10: #{network_forward.5} parent=5 // pred_check_branch
        %161 = sbr.rel (%p158) target = $region12
      $region11: #{network_forward.5} parent=5 // pred_region
        %s162 = ssub.s32 %s12, 1
        // Predicated region
        $region13: #{network_forward.5} parent=11 // pred_check
          %p163 = pneg %p85
        $region14: #{network_forward.5} parent=11 // pred_check_branch
          %165 = sbr.rel (%p163) target = $region16
        $region15: #{network_forward.5} parent=11 // pred_region
          _
        $region16: #{network_forward.5} parent=11 // pred_fallthru
          _
        // Predicated region
        $region17: #{network_forward.5} parent=11 // pred_check
          %p166 = pneg %p106
        $region18: #{network_forward.5} parent=11 // pred_check_branch
          %168 = sbr.rel (%p166) target = $region20
        $region19: #{network_forward.5} parent=11 // pred_region
          _
        $region20: #{network_forward.5} parent=11 // pred_fallthru
          _
        // Predicated region
        $region21: #{network_forward.5} parent=11 // pred_check
          %p169 = pneg %p127
        $region22: #{network_forward.5} parent=11 // pred_check_branch
          %171 = sbr.rel (%p169) target = $region24
        $region23: #{network_forward.5} parent=11 // pred_region
          _
        $region24: #{network_forward.5} parent=11 // pred_fallthru
          _
      $region12: #{network_forward.5} parent=5 // pred_fallthru
        _
      %p172 = scmp.lt.s32.totalorder %s12, 4
      // Predicated region
      $region25: #{network_forward.5} parent=5 // pred_check
        %p173 = pneg %p172
      $region26: #{network_forward.5} parent=5 // pred_check_branch
        %175 = sbr.rel (%p173) target = $region28
      $region27: #{network_forward.5} parent=5 // pred_region
        // Predicated region
        $region29: #{network_forward.5} parent=27 // pred_check
          %p176 = pneg %p32
        $region30: #{network_forward.5} parent=27 // pred_check_branch
          %178 = sbr.rel (%p176) target = $region32
        $region31: #{network_forward.5} parent=27 // pred_region
          %s179 = smul.u32 33, %s12
          %p180 = scmp.lt.s32.totalorder %s179, 131
          %s181 = scalar_select %p180, %s179, 131
          %s182 = smul.addr %s181, 2
          %s183 = scalar_lea.vmem %s0, %s182
          %s184 = smul.u32 33, %s12
        $region32: #{network_forward.5} parent=27 // pred_fallthru
          _
        // Predicated region
        $region33: #{network_forward.5} parent=27 // pred_check
          %p185 = pneg %p58
        $region34: #{network_forward.5} parent=27 // pred_check_branch
          %187 = sbr.rel (%p185) target = $region36
        $region35: #{network_forward.5} parent=27 // pred_region
          %s188 = smul.u32 528, %s12
          %p189 = scmp.lt.s32.totalorder %s188, 2111
          %s190 = scalar_select %p189, %s188, 2111
          %s191 = smul.addr %s190, 8
          %s192 = scalar_lea.vmem %s1, %s191
          %s193 = smul.u32 528, %s12
        $region36: #{network_forward.5} parent=27 // pred_fallthru
          _
      $region28: #{network_forward.5} parent=5 // pred_fallthru
        _
      %p194 = scmp.le.s32.totalorder 1, %s12
      %p195 = scmp.lt.s32.totalorder %s12, 5
      %p196 = pnand %p194, %p195
      %p197 = pneg %p196
      // Predicated region
      $region37: #{network_forward.5} parent=5 // pred_check
        _
      $region38: #{network_forward.5} parent=5 // pred_check_branch
        %199 = sbr.rel (%p196) target = $region40
      $region39: #{network_forward.5} parent=5 // pred_region
        %s200 = ssub.s32 %s12, 1
        %s201 = smul.u32 33, %s17
        %p202 = scmp.lt.s32.totalorder %s201, 131
        %s203 = scalar_select %p202, %s201, 131
        %s204 = smul.addr %s203, 2
        %s205 = scalar_lea.vmem %s0, %s204
        %p206 = pneg %p38
        %p207 = pneg %p35
        %s208 = smul.u32 528, %s17
        %p209 = scmp.lt.s32.totalorder %s208, 2111
        %s210 = scalar_select %p209, %s208, 2111
        %s211 = smul.addr %s210, 8
        %s212 = scalar_lea.vmem %s1, %s211
        %p213 = pneg %p64
        %p214 = pneg %p61
        %p215 = pneg %p85
        %p216 = pneg %p82
        %p217 = pneg %p106
        %p218 = pneg %p103
        %p219 = pneg %p127
        %p220 = pneg %p124
        %p221 = pneg %p148
        %p222 = pneg %p145
        %s223 = smul.u32 33, %s17
        %p224 = scmp.lt.s32.totalorder %s223, 131
        %s225 = scalar_select %p224, %s223, 131
        %s226 = smul.addr %s225, 2
        %s227 = scalar_lea.vmem %s0, %s226
        %s228 = smul.u32 33, %s17
        %s229 = smul.u32 528, %s17
        %p230 = scmp.lt.s32.totalorder %s229, 2111
        %s231 = scalar_select %p230, %s229, 2111
        %s232 = smul.addr %s231, 8
        %s233 = scalar_lea.vmem %s1, %s232
        %s234 = smul.u32 528, %s17
        %p235 = scmp.eq.s32.totalorder %s17, 0
        // Predicated region
        $region41: #{network_forward.5} parent=39 // pred_check
          %p236 = pneg %p235
        $region42: #{network_forward.5} parent=39 // pred_check_branch
          %238 = sbr.rel (%p236) target = $region44
        $region43: #{network_forward.5} parent=39 // pred_region
          %vm239 = vcmask 402432
          %240 = vst.msk [vmem:[#allocation2] sm:$0x3] %vm239, 0.0
        $region44: #{network_forward.5} parent=39 // pred_fallthru
          _
        %v241 = vld [vmem:[#allocation2] sm:$0x3]
        %v242 = vld [vmem:[%s227] sm:$0xff]
        %v243 = vld [vmem:[%s227 + $0x8] sm:$0xff]
        %v244 = vld [vmem:[%s227 + $0x10] sm:$0xff]
        %v245 = vld [vmem:[%s227 + $0x18] sm:$0xff]
        %v246 = vld [vmem:[%s227 + $0x20] sm:$0xff]
        %v247 = vld [vmem:[%s227 + $0x28] sm:$0xff]
        %v248 = vld [vmem:[%s227 + $0x30] sm:$0xff]
        %v249 = vld [vmem:[%s227 + $0x38] sm:$0xff]
        %v250 = vld [vmem:[%s227 + $0x40] sm:$0x3]
        %v251 = vld [vmem:[%s233] sm:$0xff]
        %v252 = vld [vmem:[%s233 + $0x8] sm:$0xff]
        %v253 = vld [vmem:[%s233 + $0x10] sm:$0xff]
        %v254 = vld [vmem:[%s233 + $0x18] sm:$0xff]
        %v255 = vld [vmem:[%s233 + $0x20] sm:$0xff]
        %v256 = vld [vmem:[%s233 + $0x28] sm:$0xff]
        %v257 = vld [vmem:[%s233 + $0x30] sm:$0xff]
        %v258 = vld [vmem:[%s233 + $0x38] sm:$0xff]
        %v259 = vld [vmem:[%s233 + $0x40] sm:$0xff]
        %v260 = vld [vmem:[%s233 + $0x48] sm:$0xff]
        %v261 = vld [vmem:[%s233 + $0x50] sm:$0xff]
        %v262 = vld [vmem:[%s233 + $0x58] sm:$0xff]
        %v263 = vld [vmem:[%s233 + $0x60] sm:$0xff]
        %v264 = vld [vmem:[%s233 + $0x68] sm:$0xff]
        %v265 = vld [vmem:[%s233 + $0x70] sm:$0xff]
        %v266 = vld [vmem:[%s233 + $0x78] sm:$0xff]
        %v267 = vld [vmem:[%s233 + $0x80] sm:$0xff]
        %v268 = vld [vmem:[%s233 + $0x88] sm:$0xff]
        %v269 = vld [vmem:[%s233 + $0x90] sm:$0xff]
        %v270 = vld [vmem:[%s233 + $0x98] sm:$0xff]
        %v271 = vld [vmem:[%s233 + $0xa0] sm:$0xff]
        %v272 = vld [vmem:[%s233 + $0xa8] sm:$0xff]
        %v273 = vld [vmem:[%s233 + $0xb0] sm:$0xff]
        %v274 = vld [vmem:[%s233 + $0xb8] sm:$0xff]
        %v275 = vld [vmem:[%s233 + $0xc0] sm:$0xff]
        %v276 = vld [vmem:[%s233 + $0xc8] sm:$0xff]
        %v277 = vld [vmem:[%s233 + $0xd0] sm:$0xff]
        %v278 = vld [vmem:[%s233 + $0xd8] sm:$0xff]
        %v279 = vld [vmem:[%s233 + $0xe0] sm:$0xff]
        %v280 = vld [vmem:[%s233 + $0xe8] sm:$0xff]
        %v281 = vld [vmem:[%s233 + $0xf0] sm:$0xff]
        %v282 = vld [vmem:[%s233 + $0xf8] sm:$0xff]
        %v283 = vld [vmem:[%s233 + $0x100] sm:$0xff]
        %v284 = vld [vmem:[%s233 + $0x108] sm:$0xff]
        %v285 = vld [vmem:[%s233 + $0x110] sm:$0xff]
        %v286 = vld [vmem:[%s233 + $0x118] sm:$0xff]
        %v287 = vld [vmem:[%s233 + $0x120] sm:$0xff]
        %v288 = vld [vmem:[%s233 + $0x128] sm:$0xff]
        %v289 = vld [vmem:[%s233 + $0x130] sm:$0xff]
        %v290 = vld [vmem:[%s233 + $0x138] sm:$0xff]
        %v291 = vld [vmem:[%s233 + $0x140] sm:$0xff]
        %v292 = vld [vmem:[%s233 + $0x148] sm:$0xff]
        %v293 = vld [vmem:[%s233 + $0x150] sm:$0xff]
        %v294 = vld [vmem:[%s233 + $0x158] sm:$0xff]
        %v295 = vld [vmem:[%s233 + $0x160] sm:$0xff]
        %v296 = vld [vmem:[%s233 + $0x168] sm:$0xff]
        %v297 = vld [vmem:[%s233 + $0x170] sm:$0xff]
        %v298 = vld [vmem:[%s233 + $0x178] sm:$0xff]
        %v299 = vld [vmem:[%s233 + $0x180] sm:$0xff]
        %v300 = vld [vmem:[%s233 + $0x188] sm:$0xff]
        %v301 = vld [vmem:[%s233 + $0x190] sm:$0xff]
        %v302 = vld [vmem:[%s233 + $0x198] sm:$0xff]
        %v303 = vld [vmem:[%s233 + $0x1a0] sm:$0xff]
        %v304 = vld [vmem:[%s233 + $0x1a8] sm:$0xff]
        %v305 = vld [vmem:[%s233 + $0x1b0] sm:$0xff]
        %v306 = vld [vmem:[%s233 + $0x1b8] sm:$0xff]
        %v307 = vld [vmem:[%s233 + $0x1c0] sm:$0xff]
        %v308 = vld [vmem:[%s233 + $0x1c8] sm:$0xff]
        %v309 = vld [vmem:[%s233 + $0x1d0] sm:$0xff]
        %v310 = vld [vmem:[%s233 + $0x1d8] sm:$0xff]
        %v311 = vld [vmem:[%s233 + $0x1e0] sm:$0xff]
        %v312 = vld [vmem:[%s233 + $0x1e8] sm:$0xff]
        %v313 = vld [vmem:[%s233 + $0x1f0] sm:$0xff]
        %v314 = vld [vmem:[%s233 + $0x1f8] sm:$0xff]
        %v315 = vld [vmem:[%s233 + $0x200] sm:$0xff]
        %v316 = vld [vmem:[%s233 + $0x208] sm:$0xff]
        %v317 = vld [vmem:[%s233 + $0x210] sm:$0xff]
        %v318 = vld [vmem:[%s233 + $0x218] sm:$0xff]
        %v319 = vld [vmem:[%s233 + $0x220] sm:$0xff]
        %v320 = vld [vmem:[%s233 + $0x228] sm:$0xff]
        %v321 = vld [vmem:[%s233 + $0x230] sm:$0xff]
        %v322 = vld [vmem:[%s233 + $0x238] sm:$0xff]
        %v323 = vld [vmem:[%s233 + $0x240] sm:$0xff]
        %v324 = vld [vmem:[%s233 + $0x248] sm:$0xff]
        %v325 = vld [vmem:[%s233 + $0x250] sm:$0xff]
        %v326 = vld [vmem:[%s233 + $0x258] sm:$0xff]
        %v327 = vld [vmem:[%s233 + $0x260] sm:$0xff]
        %v328 = vld [vmem:[%s233 + $0x268] sm:$0xff]
        %v329 = vld [vmem:[%s233 + $0x270] sm:$0xff]
        %v330 = vld [vmem:[%s233 + $0x278] sm:$0xff]
        %v331 = vld [vmem:[%s233 + $0x280] sm:$0xff]
        %v332 = vld [vmem:[%s233 + $0x288] sm:$0xff]
        %v333 = vld [vmem:[%s233 + $0x290] sm:$0xff]
        %v334 = vld [vmem:[%s233 + $0x298] sm:$0xff]
        %v335 = vld [vmem:[%s233 + $0x2a0] sm:$0xff]
        %v336 = vld [vmem:[%s233 + $0x2a8] sm:$0xff]
        %v337 = vld [vmem:[%s233 + $0x2b0] sm:$0xff]
        %v338 = vld [vmem:[%s233 + $0x2b8] sm:$0xff]
        %v339 = vld [vmem:[%s233 + $0x2c0] sm:$0xff]
        %v340 = vld [vmem:[%s233 + $0x2c8] sm:$0xff]
        %v341 = vld [vmem:[%s233 + $0x2d0] sm:$0xff]
        %v342 = vld [vmem:[%s233 + $0x2d8] sm:$0xff]
        %v343 = vld [vmem:[%s233 + $0x2e0] sm:$0xff]
        %v344 = vld [vmem:[%s233 + $0x2e8] sm:$0xff]
        %v345 = vld [vmem:[%s233 + $0x2f0] sm:$0xff]
        %v346 = vld [vmem:[%s233 + $0x2f8] sm:$0xff]
        %v347 = vld [vmem:[%s233 + $0x300] sm:$0xff]
        %v348 = vld [vmem:[%s233 + $0x308] sm:$0xff]
        %v349 = vld [vmem:[%s233 + $0x310] sm:$0xff]
        %v350 = vld [vmem:[%s233 + $0x318] sm:$0xff]
        %v351 = vld [vmem:[%s233 + $0x320] sm:$0xff]
        %v352 = vld [vmem:[%s233 + $0x328] sm:$0xff]
        %v353 = vld [vmem:[%s233 + $0x330] sm:$0xff]
        %v354 = vld [vmem:[%s233 + $0x338] sm:$0xff]
        %v355 = vld [vmem:[%s233 + $0x340] sm:$0xff]
        %v356 = vld [vmem:[%s233 + $0x348] sm:$0xff]
        %v357 = vld [vmem:[%s233 + $0x350] sm:$0xff]
        %v358 = vld [vmem:[%s233 + $0x358] sm:$0xff]
        %v359 = vld [vmem:[%s233 + $0x360] sm:$0xff]
        %v360 = vld [vmem:[%s233 + $0x368] sm:$0xff]
        %v361 = vld [vmem:[%s233 + $0x370] sm:$0xff]
        %v362 = vld [vmem:[%s233 + $0x378] sm:$0xff]
        %v363 = vld [vmem:[%s233 + $0x380] sm:$0xff]
        %v364 = vld [vmem:[%s233 + $0x388] sm:$0xff]
        %v365 = vld [vmem:[%s233 + $0x390] sm:$0xff]
        %v366 = vld [vmem:[%s233 + $0x398] sm:$0xff]
        %v367 = vld [vmem:[%s233 + $0x3a0] sm:$0xff]
        %v368 = vld [vmem:[%s233 + $0x3a8] sm:$0xff]
        %v369 = vld [vmem:[%s233 + $0x3b0] sm:$0xff]
        %v370 = vld [vmem:[%s233 + $0x3b8] sm:$0xff]
        %v371 = vld [vmem:[%s233 + $0x3c0] sm:$0xff]
        %v372 = vld [vmem:[%s233 + $0x3c8] sm:$0xff]
        %v373 = vld [vmem:[%s233 + $0x3d0] sm:$0xff]
        %v374 = vld [vmem:[%s233 + $0x3d8] sm:$0xff]
        %v375 = vld [vmem:[%s233 + $0x3e0] sm:$0xff]
        %v376 = vld [vmem:[%s233 + $0x3e8] sm:$0xff]
        %v377 = vld [vmem:[%s233 + $0x3f0] sm:$0xff]
        %v378 = vld [vmem:[%s233 + $0x3f8] sm:$0xff]
        %v379 = vld [vmem:[%s233 + $0x400] sm:$0xff]
        %v380 = vld [vmem:[%s233 + $0x408] sm:$0xff]
        %v381 = vld [vmem:[%s233 + $0x410] sm:$0xff]
        %v382 = vld [vmem:[%s233 + $0x418] sm:$0xff]
        %v383 = vld [vmem:[%s233 + $0x420] sm:$0xff]
        %v384 = vld [vmem:[%s233 + $0x428] sm:$0xff]
        %v385 = vld [vmem:[%s233 + $0x430] sm:$0xff]
        %v386 = vld [vmem:[%s233 + $0x438] sm:$0xff]
        %v387 = vld [vmem:[%s233 + $0x440] sm:$0xff]
        %v388 = vld [vmem:[%s233 + $0x448] sm:$0xff]
        %v389 = vld [vmem:[%s233 + $0x450] sm:$0xff]
        %v390 = vld [vmem:[%s233 + $0x458] sm:$0xff]
        %v391 = vld [vmem:[%s233 + $0x460] sm:$0xff]
        %v392 = vld [vmem:[%s233 + $0x468] sm:$0xff]
        %v393 = vld [vmem:[%s233 + $0x470] sm:$0xff]
        %v394 = vld [vmem:[%s233 + $0x478] sm:$0xff]
        %v395 = vld [vmem:[%s233 + $0x480] sm:$0xff]
        %v396 = vld [vmem:[%s233 + $0x488] sm:$0xff]
        %v397 = vld [vmem:[%s233 + $0x490] sm:$0xff]
        %v398 = vld [vmem:[%s233 + $0x498] sm:$0xff]
        %v399 = vld [vmem:[%s233 + $0x4a0] sm:$0xff]
        %v400 = vld [vmem:[%s233 + $0x4a8] sm:$0xff]
        %v401 = vld [vmem:[%s233 + $0x4b0] sm:$0xff]
        %v402 = vld [vmem:[%s233 + $0x4b8] sm:$0xff]
        %v403 = vld [vmem:[%s233 + $0x4c0] sm:$0xff]
        %v404 = vld [vmem:[%s233 + $0x4c8] sm:$0xff]
        %v405 = vld [vmem:[%s233 + $0x4d0] sm:$0xff]
        %v406 = vld [vmem:[%s233 + $0x4d8] sm:$0xff]
        %v407 = vld [vmem:[%s233 + $0x4e0] sm:$0xff]
        %v408 = vld [vmem:[%s233 + $0x4e8] sm:$0xff]
        %v409 = vld [vmem:[%s233 + $0x4f0] sm:$0xff]
        %v410 = vld [vmem:[%s233 + $0x4f8] sm:$0xff]
        %v411 = vld [vmem:[%s233 + $0x500] sm:$0xff]
        %v412 = vld [vmem:[%s233 + $0x508] sm:$0xff]
        %v413 = vld [vmem:[%s233 + $0x510] sm:$0xff]
        %v414 = vld [vmem:[%s233 + $0x518] sm:$0xff]
        %v415 = vld [vmem:[%s233 + $0x520] sm:$0xff]
        %v416 = vld [vmem:[%s233 + $0x528] sm:$0xff]
        %v417 = vld [vmem:[%s233 + $0x530] sm:$0xff]
        %v418 = vld [vmem:[%s233 + $0x538] sm:$0xff]
        %v419 = vld [vmem:[%s233 + $0x540] sm:$0xff]
        %v420 = vld [vmem:[%s233 + $0x548] sm:$0xff]
        %v421 = vld [vmem:[%s233 + $0x550] sm:$0xff]
        %v422 = vld [vmem:[%s233 + $0x558] sm:$0xff]
        %v423 = vld [vmem:[%s233 + $0x560] sm:$0xff]
        %v424 = vld [vmem:[%s233 + $0x568] sm:$0xff]
        %v425 = vld [vmem:[%s233 + $0x570] sm:$0xff]
        %v426 = vld [vmem:[%s233 + $0x578] sm:$0xff]
        %v427 = vld [vmem:[%s233 + $0x580] sm:$0xff]
        %v428 = vld [vmem:[%s233 + $0x588] sm:$0xff]
        %v429 = vld [vmem:[%s233 + $0x590] sm:$0xff]
        %v430 = vld [vmem:[%s233 + $0x598] sm:$0xff]
        %v431 = vld [vmem:[%s233 + $0x5a0] sm:$0xff]
        %v432 = vld [vmem:[%s233 + $0x5a8] sm:$0xff]
        %v433 = vld [vmem:[%s233 + $0x5b0] sm:$0xff]
        %v434 = vld [vmem:[%s233 + $0x5b8] sm:$0xff]
        %v435 = vld [vmem:[%s233 + $0x5c0] sm:$0xff]
        %v436 = vld [vmem:[%s233 + $0x5c8] sm:$0xff]
        %v437 = vld [vmem:[%s233 + $0x5d0] sm:$0xff]
        %v438 = vld [vmem:[%s233 + $0x5d8] sm:$0xff]
        %v439 = vld [vmem:[%s233 + $0x5e0] sm:$0xff]
        %v440 = vld [vmem:[%s233 + $0x5e8] sm:$0xff]
        %v441 = vld [vmem:[%s233 + $0x5f0] sm:$0xff]
        %v442 = vld [vmem:[%s233 + $0x5f8] sm:$0xff]
        %v443 = vld [vmem:[%s233 + $0x600] sm:$0xff]
        %v444 = vld [vmem:[%s233 + $0x608] sm:$0xff]
        %v445 = vld [vmem:[%s233 + $0x610] sm:$0xff]
        %v446 = vld [vmem:[%s233 + $0x618] sm:$0xff]
        %v447 = vld [vmem:[%s233 + $0x620] sm:$0xff]
        %v448 = vld [vmem:[%s233 + $0x628] sm:$0xff]
        %v449 = vld [vmem:[%s233 + $0x630] sm:$0xff]
        %v450 = vld [vmem:[%s233 + $0x638] sm:$0xff]
        %v451 = vld [vmem:[%s233 + $0x640] sm:$0xff]
        %v452 = vld [vmem:[%s233 + $0x648] sm:$0xff]
        %v453 = vld [vmem:[%s233 + $0x650] sm:$0xff]
        %v454 = vld [vmem:[%s233 + $0x658] sm:$0xff]
        %v455 = vld [vmem:[%s233 + $0x660] sm:$0xff]
        %v456 = vld [vmem:[%s233 + $0x668] sm:$0xff]
        %v457 = vld [vmem:[%s233 + $0x670] sm:$0xff]
        %v458 = vld [vmem:[%s233 + $0x678] sm:$0xff]
        %v459 = vld [vmem:[%s233 + $0x680] sm:$0xff]
        %v460 = vld [vmem:[%s233 + $0x688] sm:$0xff]
        %v461 = vld [vmem:[%s233 + $0x690] sm:$0xff]
        %v462 = vld [vmem:[%s233 + $0x698] sm:$0xff]
        %v463 = vld [vmem:[%s233 + $0x6a0] sm:$0xff]
        %v464 = vld [vmem:[%s233 + $0x6a8] sm:$0xff]
        %v465 = vld [vmem:[%s233 + $0x6b0] sm:$0xff]
        %v466 = vld [vmem:[%s233 + $0x6b8] sm:$0xff]
        %v467 = vld [vmem:[%s233 + $0x6c0] sm:$0xff]
        %v468 = vld [vmem:[%s233 + $0x6c8] sm:$0xff]
        %v469 = vld [vmem:[%s233 + $0x6d0] sm:$0xff]
        %v470 = vld [vmem:[%s233 + $0x6d8] sm:$0xff]
        %v471 = vld [vmem:[%s233 + $0x6e0] sm:$0xff]
        %v472 = vld [vmem:[%s233 + $0x6e8] sm:$0xff]
        %v473 = vld [vmem:[%s233 + $0x6f0] sm:$0xff]
        %v474 = vld [vmem:[%s233 + $0x6f8] sm:$0xff]
        %v475 = vld [vmem:[%s233 + $0x700] sm:$0xff]
        %v476 = vld [vmem:[%s233 + $0x708] sm:$0xff]
        %v477 = vld [vmem:[%s233 + $0x710] sm:$0xff]
        %v478 = vld [vmem:[%s233 + $0x718] sm:$0xff]
        %v479 = vld [vmem:[%s233 + $0x720] sm:$0xff]
        %v480 = vld [vmem:[%s233 + $0x728] sm:$0xff]
        %v481 = vld [vmem:[%s233 + $0x730] sm:$0xff]
        %v482 = vld [vmem:[%s233 + $0x738] sm:$0xff]
        %v483 = vld [vmem:[%s233 + $0x740] sm:$0xff]
        %v484 = vld [vmem:[%s233 + $0x748] sm:$0xff]
        %v485 = vld [vmem:[%s233 + $0x750] sm:$0xff]
        %v486 = vld [vmem:[%s233 + $0x758] sm:$0xff]
        %v487 = vld [vmem:[%s233 + $0x760] sm:$0xff]
        %v488 = vld [vmem:[%s233 + $0x768] sm:$0xff]
        %v489 = vld [vmem:[%s233 + $0x770] sm:$0xff]
        %v490 = vld [vmem:[%s233 + $0x778] sm:$0xff]
        %v491 = vld [vmem:[%s233 + $0x780] sm:$0xff]
        %v492 = vld [vmem:[%s233 + $0x788] sm:$0xff]
        %v493 = vld [vmem:[%s233 + $0x790] sm:$0xff]
        %v494 = vld [vmem:[%s233 + $0x798] sm:$0xff]
        %v495 = vld [vmem:[%s233 + $0x7a0] sm:$0xff]
        %v496 = vld [vmem:[%s233 + $0x7a8] sm:$0xff]
        %v497 = vld [vmem:[%s233 + $0x7b0] sm:$0xff]
        %v498 = vld [vmem:[%s233 + $0x7b8] sm:$0xff]
        %v499 = vld [vmem:[%s233 + $0x7c0] sm:$0xff]
        %v500 = vld [vmem:[%s233 + $0x7c8] sm:$0xff]
        %v501 = vld [vmem:[%s233 + $0x7d0] sm:$0xff]
        %v502 = vld [vmem:[%s233 + $0x7d8] sm:$0xff]
        %v503 = vld [vmem:[%s233 + $0x7e0] sm:$0xff]
        %v504 = vld [vmem:[%s233 + $0x7e8] sm:$0xff]
        %v505 = vld [vmem:[%s233 + $0x7f0] sm:$0xff]
        %v506 = vld [vmem:[%s233 + $0x7f8] sm:$0xff]
        %v507 = vld [vmem:[%s233 + $0x800] sm:$0xff]
        %v508 = vld [vmem:[%s233 + $0x808] sm:$0xff]
        %v509 = vld [vmem:[%s233 + $0x810] sm:$0xff]
        %v510 = vld [vmem:[%s233 + $0x818] sm:$0xff]
        %v511 = vld [vmem:[%s233 + $0x820] sm:$0xff]
        %v512 = vld [vmem:[%s233 + $0x828] sm:$0xff]
        %v513 = vld [vmem:[%s233 + $0x830] sm:$0xff]
        %v514 = vld [vmem:[%s233 + $0x838] sm:$0xff]
        %v515 = vld [vmem:[%s233 + $0x840] sm:$0xff]
        %v516 = vld [vmem:[%s233 + $0x848] sm:$0xff]
        %v517 = vld [vmem:[%s233 + $0x850] sm:$0xff]
        %v518 = vld [vmem:[%s233 + $0x858] sm:$0xff]
        %v519 = vld [vmem:[%s233 + $0x860] sm:$0xff]
        %v520 = vld [vmem:[%s233 + $0x868] sm:$0xff]
        %v521 = vld [vmem:[%s233 + $0x870] sm:$0xff]
        %v522 = vld [vmem:[%s233 + $0x878] sm:$0xff]
        %v523 = vld [vmem:[%s233 + $0x880] sm:$0xff]
        %v524 = vld [vmem:[%s233 + $0x888] sm:$0xff]
        %v525 = vld [vmem:[%s233 + $0x890] sm:$0xff]
        %v526 = vld [vmem:[%s233 + $0x898] sm:$0xff]
        %v527 = vld [vmem:[%s233 + $0x8a0] sm:$0xff]
        %v528 = vld [vmem:[%s233 + $0x8a8] sm:$0xff]
        %v529 = vld [vmem:[%s233 + $0x8b0] sm:$0xff]
        %v530 = vld [vmem:[%s233 + $0x8b8] sm:$0xff]
        %v531 = vld [vmem:[%s233 + $0x8c0] sm:$0xff]
        %v532 = vld [vmem:[%s233 + $0x8c8] sm:$0xff]
        %v533 = vld [vmem:[%s233 + $0x8d0] sm:$0xff]
        %v534 = vld [vmem:[%s233 + $0x8d8] sm:$0xff]
        %v535 = vld [vmem:[%s233 + $0x8e0] sm:$0xff]
        %v536 = vld [vmem:[%s233 + $0x8e8] sm:$0xff]
        %v537 = vld [vmem:[%s233 + $0x8f0] sm:$0xff]
        %v538 = vld [vmem:[%s233 + $0x8f8] sm:$0xff]
        %v539 = vld [vmem:[%s233 + $0x900] sm:$0xff]
        %v540 = vld [vmem:[%s233 + $0x908] sm:$0xff]
        %v541 = vld [vmem:[%s233 + $0x910] sm:$0xff]
        %v542 = vld [vmem:[%s233 + $0x918] sm:$0xff]
        %v543 = vld [vmem:[%s233 + $0x920] sm:$0xff]
        %v544 = vld [vmem:[%s233 + $0x928] sm:$0xff]
        %v545 = vld [vmem:[%s233 + $0x930] sm:$0xff]
        %v546 = vld [vmem:[%s233 + $0x938] sm:$0xff]
        %v547 = vld [vmem:[%s233 + $0x940] sm:$0xff]
        %v548 = vld [vmem:[%s233 + $0x948] sm:$0xff]
        %v549 = vld [vmem:[%s233 + $0x950] sm:$0xff]
        %v550 = vld [vmem:[%s233 + $0x958] sm:$0xff]
        %v551 = vld [vmem:[%s233 + $0x960] sm:$0xff]
        %v552 = vld [vmem:[%s233 + $0x968] sm:$0xff]
        %v553 = vld [vmem:[%s233 + $0x970] sm:$0xff]
        %v554 = vld [vmem:[%s233 + $0x978] sm:$0xff]
        %v555 = vld [vmem:[%s233 + $0x980] sm:$0xff]
        %v556 = vld [vmem:[%s233 + $0x988] sm:$0xff]
        %v557 = vld [vmem:[%s233 + $0x990] sm:$0xff]
        %v558 = vld [vmem:[%s233 + $0x998] sm:$0xff]
        %v559 = vld [vmem:[%s233 + $0x9a0] sm:$0xff]
        %v560 = vld [vmem:[%s233 + $0x9a8] sm:$0xff]
        %v561 = vld [vmem:[%s233 + $0x9b0] sm:$0xff]
        %v562 = vld [vmem:[%s233 + $0x9b8] sm:$0xff]
        %v563 = vld [vmem:[%s233 + $0x9c0] sm:$0xff]
        %v564 = vld [vmem:[%s233 + $0x9c8] sm:$0xff]
        %v565 = vld [vmem:[%s233 + $0x9d0] sm:$0xff]
        %v566 = vld [vmem:[%s233 + $0x9d8] sm:$0xff]
        %v567 = vld [vmem:[%s233 + $0x9e0] sm:$0xff]
        %v568 = vld [vmem:[%s233 + $0x9e8] sm:$0xff]
        %v569 = vld [vmem:[%s233 + $0x9f0] sm:$0xff]
        %v570 = vld [vmem:[%s233 + $0x9f8] sm:$0xff]
        %v571 = vld [vmem:[%s233 + $0xa00] sm:$0xff]
        %v572 = vld [vmem:[%s233 + $0xa08] sm:$0xff]
        %v573 = vld [vmem:[%s233 + $0xa10] sm:$0xff]
        %v574 = vld [vmem:[%s233 + $0xa18] sm:$0xff]
        %v575 = vld [vmem:[%s233 + $0xa20] sm:$0xff]
        %v576 = vld [vmem:[%s233 + $0xa28] sm:$0xff]
        %v577 = vld [vmem:[%s233 + $0xa30] sm:$0xff]
        %v578 = vld [vmem:[%s233 + $0xa38] sm:$0xff]
        %v579 = vld [vmem:[%s233 + $0xa40] sm:$0xff]
        %v580 = vld [vmem:[%s233 + $0xa48] sm:$0xff]
        %v581 = vld [vmem:[%s233 + $0xa50] sm:$0xff]
        %v582 = vld [vmem:[%s233 + $0xa58] sm:$0xff]
        %v583 = vld [vmem:[%s233 + $0xa60] sm:$0xff]
        %v584 = vld [vmem:[%s233 + $0xa68] sm:$0xff]
        %v585 = vld [vmem:[%s233 + $0xa70] sm:$0xff]
        %v586 = vld [vmem:[%s233 + $0xa78] sm:$0xff]
        %v587 = vld [vmem:[%s233 + $0xa80] sm:$0xff]
        %v588 = vld [vmem:[%s233 + $0xa88] sm:$0xff]
        %v589 = vld [vmem:[%s233 + $0xa90] sm:$0xff]
        %v590 = vld [vmem:[%s233 + $0xa98] sm:$0xff]
        %v591 = vld [vmem:[%s233 + $0xaa0] sm:$0xff]
        %v592 = vld [vmem:[%s233 + $0xaa8] sm:$0xff]
        %v593 = vld [vmem:[%s233 + $0xab0] sm:$0xff]
        %v594 = vld [vmem:[%s233 + $0xab8] sm:$0xff]
        %v595 = vld [vmem:[%s233 + $0xac0] sm:$0xff]
        %v596 = vld [vmem:[%s233 + $0xac8] sm:$0xff]
        %v597 = vld [vmem:[%s233 + $0xad0] sm:$0xff]
        %v598 = vld [vmem:[%s233 + $0xad8] sm:$0xff]
        %v599 = vld [vmem:[%s233 + $0xae0] sm:$0xff]
        %v600 = vld [vmem:[%s233 + $0xae8] sm:$0xff]
        %v601 = vld [vmem:[%s233 + $0xaf0] sm:$0xff]
        %v602 = vld [vmem:[%s233 + $0xaf8] sm:$0xff]
        %v603 = vld [vmem:[%s233 + $0xb00] sm:$0xff]
        %v604 = vld [vmem:[%s233 + $0xb08] sm:$0xff]
        %v605 = vld [vmem:[%s233 + $0xb10] sm:$0xff]
        %v606 = vld [vmem:[%s233 + $0xb18] sm:$0xff]
        %v607 = vld [vmem:[%s233 + $0xb20] sm:$0xff]
        %v608 = vld [vmem:[%s233 + $0xb28] sm:$0xff]
        %v609 = vld [vmem:[%s233 + $0xb30] sm:$0xff]
        %v610 = vld [vmem:[%s233 + $0xb38] sm:$0xff]
        %v611 = vld [vmem:[%s233 + $0xb40] sm:$0xff]
        %v612 = vld [vmem:[%s233 + $0xb48] sm:$0xff]
        %v613 = vld [vmem:[%s233 + $0xb50] sm:$0xff]
        %v614 = vld [vmem:[%s233 + $0xb58] sm:$0xff]
        %v615 = vld [vmem:[%s233 + $0xb60] sm:$0xff]
        %v616 = vld [vmem:[%s233 + $0xb68] sm:$0xff]
        %v617 = vld [vmem:[%s233 + $0xb70] sm:$0xff]
        %v618 = vld [vmem:[%s233 + $0xb78] sm:$0xff]
        %v619 = vld [vmem:[%s233 + $0xb80] sm:$0xff]
        %v620 = vld [vmem:[%s233 + $0xb88] sm:$0xff]
        %v621 = vld [vmem:[%s233 + $0xb90] sm:$0xff]
        %v622 = vld [vmem:[%s233 + $0xb98] sm:$0xff]
        %v623 = vld [vmem:[%s233 + $0xba0] sm:$0xff]
        %v624 = vld [vmem:[%s233 + $0xba8] sm:$0xff]
        %v625 = vld [vmem:[%s233 + $0xbb0] sm:$0xff]
        %v626 = vld [vmem:[%s233 + $0xbb8] sm:$0xff]
        %v627 = vld [vmem:[%s233 + $0xbc0] sm:$0xff]
        %v628 = vld [vmem:[%s233 + $0xbc8] sm:$0xff]
        %v629 = vld [vmem:[%s233 + $0xbd0] sm:$0xff]
        %v630 = vld [vmem:[%s233 + $0xbd8] sm:$0xff]
        %v631 = vld [vmem:[%s233 + $0xbe0] sm:$0xff]
        %v632 = vld [vmem:[%s233 + $0xbe8] sm:$0xff]
        %v633 = vld [vmem:[%s233 + $0xbf0] sm:$0xff]
        %v634 = vld [vmem:[%s233 + $0xbf8] sm:$0xff]
        %v635 = vld [vmem:[%s233 + $0xc00] sm:$0xff]
        %v636 = vld [vmem:[%s233 + $0xc08] sm:$0xff]
        %v637 = vld [vmem:[%s233 + $0xc10] sm:$0xff]
        %v638 = vld [vmem:[%s233 + $0xc18] sm:$0xff]
        %v639 = vld [vmem:[%s233 + $0xc20] sm:$0xff]
        %v640 = vld [vmem:[%s233 + $0xc28] sm:$0xff]
        %v641 = vld [vmem:[%s233 + $0xc30] sm:$0xff]
        %v642 = vld [vmem:[%s233 + $0xc38] sm:$0xff]
        %v643 = vld [vmem:[%s233 + $0xc40] sm:$0xff]
        %v644 = vld [vmem:[%s233 + $0xc48] sm:$0xff]
        %v645 = vld [vmem:[%s233 + $0xc50] sm:$0xff]
        %v646 = vld [vmem:[%s233 + $0xc58] sm:$0xff]
        %v647 = vld [vmem:[%s233 + $0xc60] sm:$0xff]
        %v648 = vld [vmem:[%s233 + $0xc68] sm:$0xff]
        %v649 = vld [vmem:[%s233 + $0xc70] sm:$0xff]
        %v650 = vld [vmem:[%s233 + $0xc78] sm:$0xff]
        %v651 = vld [vmem:[%s233 + $0xc80] sm:$0xff]
        %v652 = vld [vmem:[%s233 + $0xc88] sm:$0xff]
        %v653 = vld [vmem:[%s233 + $0xc90] sm:$0xff]
        %v654 = vld [vmem:[%s233 + $0xc98] sm:$0xff]
        %v655 = vld [vmem:[%s233 + $0xca0] sm:$0xff]
        %v656 = vld [vmem:[%s233 + $0xca8] sm:$0xff]
        %v657 = vld [vmem:[%s233 + $0xcb0] sm:$0xff]
        %v658 = vld [vmem:[%s233 + $0xcb8] sm:$0xff]
        %v659 = vld [vmem:[%s233 + $0xcc0] sm:$0xff]
        %v660 = vld [vmem:[%s233 + $0xcc8] sm:$0xff]
        %v661 = vld [vmem:[%s233 + $0xcd0] sm:$0xff]
        %v662 = vld [vmem:[%s233 + $0xcd8] sm:$0xff]
        %v663 = vld [vmem:[%s233 + $0xce0] sm:$0xff]
        %v664 = vld [vmem:[%s233 + $0xce8] sm:$0xff]
        %v665 = vld [vmem:[%s233 + $0xcf0] sm:$0xff]
        %v666 = vld [vmem:[%s233 + $0xcf8] sm:$0xff]
        %v667 = vld [vmem:[%s233 + $0xd00] sm:$0xff]
        %v668 = vld [vmem:[%s233 + $0xd08] sm:$0xff]
        %v669 = vld [vmem:[%s233 + $0xd10] sm:$0xff]
        %v670 = vld [vmem:[%s233 + $0xd18] sm:$0xff]
        %v671 = vld [vmem:[%s233 + $0xd20] sm:$0xff]
        %v672 = vld [vmem:[%s233 + $0xd28] sm:$0xff]
        %v673 = vld [vmem:[%s233 + $0xd30] sm:$0xff]
        %v674 = vld [vmem:[%s233 + $0xd38] sm:$0xff]
        %v675 = vld [vmem:[%s233 + $0xd40] sm:$0xff]
        %v676 = vld [vmem:[%s233 + $0xd48] sm:$0xff]
        %v677 = vld [vmem:[%s233 + $0xd50] sm:$0xff]
        %v678 = vld [vmem:[%s233 + $0xd58] sm:$0xff]
        %v679 = vld [vmem:[%s233 + $0xd60] sm:$0xff]
        %v680 = vld [vmem:[%s233 + $0xd68] sm:$0xff]
        %v681 = vld [vmem:[%s233 + $0xd70] sm:$0xff]
        %v682 = vld [vmem:[%s233 + $0xd78] sm:$0xff]
        %v683 = vld [vmem:[%s233 + $0xd80] sm:$0xff]
        %v684 = vld [vmem:[%s233 + $0xd88] sm:$0xff]
        %v685 = vld [vmem:[%s233 + $0xd90] sm:$0xff]
        %v686 = vld [vmem:[%s233 + $0xd98] sm:$0xff]
        %v687 = vld [vmem:[%s233 + $0xda0] sm:$0xff]
        %v688 = vld [vmem:[%s233 + $0xda8] sm:$0xff]
        %v689 = vld [vmem:[%s233 + $0xdb0] sm:$0xff]
        %v690 = vld [vmem:[%s233 + $0xdb8] sm:$0xff]
        %v691 = vld [vmem:[%s233 + $0xdc0] sm:$0xff]
        %v692 = vld [vmem:[%s233 + $0xdc8] sm:$0xff]
        %v693 = vld [vmem:[%s233 + $0xdd0] sm:$0xff]
        %v694 = vld [vmem:[%s233 + $0xdd8] sm:$0xff]
        %v695 = vld [vmem:[%s233 + $0xde0] sm:$0xff]
        %v696 = vld [vmem:[%s233 + $0xde8] sm:$0xff]
        %v697 = vld [vmem:[%s233 + $0xdf0] sm:$0xff]
        %v698 = vld [vmem:[%s233 + $0xdf8] sm:$0xff]
        %v699 = vld [vmem:[%s233 + $0xe00] sm:$0xff]
        %v700 = vld [vmem:[%s233 + $0xe08] sm:$0xff]
        %v701 = vld [vmem:[%s233 + $0xe10] sm:$0xff]
        %v702 = vld [vmem:[%s233 + $0xe18] sm:$0xff]
        %v703 = vld [vmem:[%s233 + $0xe20] sm:$0xff]
        %v704 = vld [vmem:[%s233 + $0xe28] sm:$0xff]
        %v705 = vld [vmem:[%s233 + $0xe30] sm:$0xff]
        %v706 = vld [vmem:[%s233 + $0xe38] sm:$0xff]
        %v707 = vld [vmem:[%s233 + $0xe40] sm:$0xff]
        %v708 = vld [vmem:[%s233 + $0xe48] sm:$0xff]
        %v709 = vld [vmem:[%s233 + $0xe50] sm:$0xff]
        %v710 = vld [vmem:[%s233 + $0xe58] sm:$0xff]
        %v711 = vld [vmem:[%s233 + $0xe60] sm:$0xff]
        %v712 = vld [vmem:[%s233 + $0xe68] sm:$0xff]
        %v713 = vld [vmem:[%s233 + $0xe70] sm:$0xff]
        %v714 = vld [vmem:[%s233 + $0xe78] sm:$0xff]
        %v715 = vld [vmem:[%s233 + $0xe80] sm:$0xff]
        %v716 = vld [vmem:[%s233 + $0xe88] sm:$0xff]
        %v717 = vld [vmem:[%s233 + $0xe90] sm:$0xff]
        %v718 = vld [vmem:[%s233 + $0xe98] sm:$0xff]
        %v719 = vld [vmem:[%s233 + $0xea0] sm:$0xff]
        %v720 = vld [vmem:[%s233 + $0xea8] sm:$0xff]
        %v721 = vld [vmem:[%s233 + $0xeb0] sm:$0xff]
        %v722 = vld [vmem:[%s233 + $0xeb8] sm:$0xff]
        %v723 = vld [vmem:[%s233 + $0xec0] sm:$0xff]
        %v724 = vld [vmem:[%s233 + $0xec8] sm:$0xff]
        %v725 = vld [vmem:[%s233 + $0xed0] sm:$0xff]
        %v726 = vld [vmem:[%s233 + $0xed8] sm:$0xff]
        %v727 = vld [vmem:[%s233 + $0xee0] sm:$0xff]
        %v728 = vld [vmem:[%s233 + $0xee8] sm:$0xff]
        %v729 = vld [vmem:[%s233 + $0xef0] sm:$0xff]
        %v730 = vld [vmem:[%s233 + $0xef8] sm:$0xff]
        %v731 = vld [vmem:[%s233 + $0xf00] sm:$0xff]
        %v732 = vld [vmem:[%s233 + $0xf08] sm:$0xff]
        %v733 = vld [vmem:[%s233 + $0xf10] sm:$0xff]
        %v734 = vld [vmem:[%s233 + $0xf18] sm:$0xff]
        %v735 = vld [vmem:[%s233 + $0xf20] sm:$0xff]
        %v736 = vld [vmem:[%s233 + $0xf28] sm:$0xff]
        %v737 = vld [vmem:[%s233 + $0xf30] sm:$0xff]
        %v738 = vld [vmem:[%s233 + $0xf38] sm:$0xff]
        %v739 = vld [vmem:[%s233 + $0xf40] sm:$0xff]
        %v740 = vld [vmem:[%s233 + $0xf48] sm:$0xff]
        %v741 = vld [vmem:[%s233 + $0xf50] sm:$0xff]
        %v742 = vld [vmem:[%s233 + $0xf58] sm:$0xff]
        %v743 = vld [vmem:[%s233 + $0xf60] sm:$0xff]
        %v744 = vld [vmem:[%s233 + $0xf68] sm:$0xff]
        %v745 = vld [vmem:[%s233 + $0xf70] sm:$0xff]
        %v746 = vld [vmem:[%s233 + $0xf78] sm:$0xff]
        %v747 = vld [vmem:[%s233 + $0xf80] sm:$0xff]
        %v748 = vld [vmem:[%s233 + $0xf88] sm:$0xff]
        %v749 = vld [vmem:[%s233 + $0xf90] sm:$0xff]
        %v750 = vld [vmem:[%s233 + $0xf98] sm:$0xff]
        %v751 = vld [vmem:[%s233 + $0xfa0] sm:$0xff]
        %v752 = vld [vmem:[%s233 + $0xfa8] sm:$0xff]
        %v753 = vld [vmem:[%s233 + $0xfb0] sm:$0xff]
        %v754 = vld [vmem:[%s233 + $0xfb8] sm:$0xff]
        %v755 = vld [vmem:[%s233 + $0xfc0] sm:$0xff]
        %v756 = vld [vmem:[%s233 + $0xfc8] sm:$0xff]
        %v757 = vld [vmem:[%s233 + $0xfd0] sm:$0xff]
        %v758 = vld [vmem:[%s233 + $0xfd8] sm:$0xff]
        %v759 = vld [vmem:[%s233 + $0xfe0] sm:$0xff]
        %v760 = vld [vmem:[%s233 + $0xfe8] sm:$0xff]
        %v761 = vld [vmem:[%s233 + $0xff0] sm:$0xff]
        %v762 = vld [vmem:[%s233 + $0xff8] sm:$0xff]
        %v763 = vld [vmem:[%s233 + $0x1000] sm:$0xff]
        %v764 = vld [vmem:[%s233 + $0x1008] sm:$0xff]
        %v765 = vld [vmem:[%s233 + $0x1010] sm:$0xff]
        %v766 = vld [vmem:[%s233 + $0x1018] sm:$0xff]
        %v767 = vld [vmem:[%s233 + $0x1020] sm:$0xff]
        %v768 = vld [vmem:[%s233 + $0x1028] sm:$0xff]
        %v769 = vld [vmem:[%s233 + $0x1030] sm:$0xff]
        %v770 = vld [vmem:[%s233 + $0x1038] sm:$0xff]
        %v771 = vld [vmem:[%s233 + $0x1040] sm:$0xff]
        %v772 = vld [vmem:[%s233 + $0x1048] sm:$0xff]
        %v773 = vld [vmem:[%s233 + $0x1050] sm:$0xff]
        %v774 = vld [vmem:[%s233 + $0x1058] sm:$0xff]
        %v775 = vld [vmem:[%s233 + $0x1060] sm:$0xff]
        %v776 = vld [vmem:[%s233 + $0x1068] sm:$0xff]
        %v777 = vld [vmem:[%s233 + $0x1070] sm:$0xff]
        %v778 = vld [vmem:[%s233 + $0x1078] sm:$0xff]
        %v788 = vcombine.high %v242, %v242
        %v790 = vunpack.c.l.s4 1983009808
        %v791 = vunpack.c.0.s8 %v790
        %v792 = vlaneseq
        %v793 = vshrl.u32 %v792, 7
        %v794 = vsub.s32 %v791, %v793
        %v795 = vrot.slane %v242, %v794
        %v797 = vunpack.c.l.s4 1983009808
        %v798 = vunpack.c.0.s8 %v797
        %v799 = vlaneseq
        %v800 = vshrl.u32 %v799, 7
        %v801 = vsub.s32 %v798, %v800
        %v802 = vrot.slane %v788, %v801
        %v803 = vcombine.high %v795, %v795
        %v804 = vcombine.high %v802, %v802
        %v805 = vcombine.high %v243, %v243
        %v807 = vunpack.c.l.s4 1983009808
        %v808 = vunpack.c.0.s8 %v807
        %v809 = vlaneseq
        %v810 = vshrl.u32 %v809, 7
        %v811 = vsub.s32 %v808, %v810
        %v812 = vrot.slane %v243, %v811
        %v814 = vunpack.c.l.s4 1983009808
        %v815 = vunpack.c.0.s8 %v814
        %v816 = vlaneseq
        %v817 = vshrl.u32 %v816, 7
        %v818 = vsub.s32 %v815, %v817
        %v819 = vrot.slane %v805, %v818
        %v820 = vcombine.high %v812, %v812
        %v821 = vcombine.high %v819, %v819
        %v822 = vcombine.high %v244, %v244
        %v824 = vunpack.c.l.s4 1983009808
        %v825 = vunpack.c.0.s8 %v824
        %v826 = vlaneseq
        %v827 = vshrl.u32 %v826, 7
        %v828 = vsub.s32 %v825, %v827
        %v829 = vrot.slane %v244, %v828
        %v831 = vunpack.c.l.s4 1983009808
        %v832 = vunpack.c.0.s8 %v831
        %v833 = vlaneseq
        %v834 = vshrl.u32 %v833, 7
        %v835 = vsub.s32 %v832, %v834
        %v836 = vrot.slane %v822, %v835
        %v837 = vcombine.high %v829, %v829
        %v838 = vcombine.high %v836, %v836
        %v839 = vcombine.high %v245, %v245
        %v841 = vunpack.c.l.s4 1983009808
        %v842 = vunpack.c.0.s8 %v841
        %v843 = vlaneseq
        %v844 = vshrl.u32 %v843, 7
        %v845 = vsub.s32 %v842, %v844
        %v846 = vrot.slane %v245, %v845
        %v848 = vunpack.c.l.s4 1983009808
        %v849 = vunpack.c.0.s8 %v848
        %v850 = vlaneseq
        %v851 = vshrl.u32 %v850, 7
        %v852 = vsub.s32 %v849, %v851
        %v853 = vrot.slane %v839, %v852
        %v854 = vcombine.high %v846, %v846
        %v855 = vcombine.high %v853, %v853
        %v856 = vcombine.high %v246, %v246
        %v858 = vunpack.c.l.s4 1983009808
        %v859 = vunpack.c.0.s8 %v858
        %v860 = vlaneseq
        %v861 = vshrl.u32 %v860, 7
        %v862 = vsub.s32 %v859, %v861
        %v863 = vrot.slane %v246, %v862
        %v865 = vunpack.c.l.s4 1983009808
        %v866 = vunpack.c.0.s8 %v865
        %v867 = vlaneseq
        %v868 = vshrl.u32 %v867, 7
        %v869 = vsub.s32 %v866, %v868
        %v870 = vrot.slane %v856, %v869
        %v871 = vcombine.high %v863, %v863
        %v872 = vcombine.high %v870, %v870
        %v873 = vcombine.high %v247, %v247
        %v875 = vunpack.c.l.s4 1983009808
        %v876 = vunpack.c.0.s8 %v875
        %v877 = vlaneseq
        %v878 = vshrl.u32 %v877, 7
        %v879 = vsub.s32 %v876, %v878
        %v880 = vrot.slane %v247, %v879
        %v882 = vunpack.c.l.s4 1983009808
        %v883 = vunpack.c.0.s8 %v882
        %v884 = vlaneseq
        %v885 = vshrl.u32 %v884, 7
        %v886 = vsub.s32 %v883, %v885
        %v887 = vrot.slane %v873, %v886
        %v888 = vcombine.high %v880, %v880
        %v889 = vcombine.high %v887, %v887
        %v890 = vcombine.high %v248, %v248
        %v892 = vunpack.c.l.s4 1983009808
        %v893 = vunpack.c.0.s8 %v892
        %v894 = vlaneseq
        %v895 = vshrl.u32 %v894, 7
        %v896 = vsub.s32 %v893, %v895
        %v897 = vrot.slane %v248, %v896
        %v899 = vunpack.c.l.s4 1983009808
        %v900 = vunpack.c.0.s8 %v899
        %v901 = vlaneseq
        %v902 = vshrl.u32 %v901, 7
        %v903 = vsub.s32 %v900, %v902
        %v904 = vrot.slane %v890, %v903
        %v905 = vcombine.high %v897, %v897
        %v906 = vcombine.high %v904, %v904
        %v907 = vcombine.high %v249, %v249
        %v909 = vunpack.c.l.s4 1983009808
        %v910 = vunpack.c.0.s8 %v909
        %v911 = vlaneseq
        %v912 = vshrl.u32 %v911, 7
        %v913 = vsub.s32 %v910, %v912
        %v914 = vrot.slane %v249, %v913
        %v916 = vunpack.c.l.s4 1983009808
        %v917 = vunpack.c.0.s8 %v916
        %v918 = vlaneseq
        %v919 = vshrl.u32 %v918, 7
        %v920 = vsub.s32 %v917, %v919
        %v921 = vrot.slane %v907, %v920
        %v922 = vcombine.high %v914, %v914
        %v923 = vcombine.high %v921, %v921
        %v925 = vunpack.c.l.s4 1983009808
        %v926 = vunpack.c.0.s8 %v925
        %v927 = vlaneseq
        %v928 = vshrl.u32 %v927, 7
        %v929 = vsub.s32 %v926, %v928
        %v930 = vrot.slane %v250, %v929
        %964 = vmatprep.subr.mxu0 0.0
        %965 = vmatpush1.msra.mxu0 %v266
        %966 = vmatprep.subr.mxu0 0.0
        %967 = vmatpush1.msra.mxu0 %v265
        %968 = vmatprep.subr.mxu0 0.0
        %969 = vmatpush1.msra.mxu0 %v264
        %970 = vmatprep.subr.mxu0 0.0
        %971 = vmatpush1.msra.mxu0 %v263
        %972 = vmatprep.subr.mxu0 0.0
        %973 = vmatpush1.msra.mxu0 %v262
        %974 = vmatprep.subr.mxu0 0.0
        %975 = vmatpush1.msra.mxu0 %v261
        %976 = vmatprep.subr.mxu0 0.0
        %977 = vmatpush1.msra.mxu0 %v260
        %978 = vmatprep.subr.mxu0 0.0
        %979 = vmatpush1.msra.mxu0 %v259
        %980 = vmatprep.subr.mxu0 0.0
        %981 = vmatpush1.msra.mxu0 %v258
        %982 = vmatprep.subr.mxu0 0.0
        %983 = vmatpush1.msra.mxu0 %v257
        %984 = vmatprep.subr.mxu0 0.0
        %985 = vmatpush1.msra.mxu0 %v256
        %986 = vmatprep.subr.mxu0 0.0
        %987 = vmatpush1.msra.mxu0 %v255
        %988 = vmatprep.subr.mxu0 0.0
        %989 = vmatpush1.msra.mxu0 %v254
        %990 = vmatprep.subr.mxu0 0.0
        %991 = vmatpush1.msra.mxu0 %v253
        %992 = vmatprep.subr.mxu0 0.0
        %993 = vmatpush1.msra.mxu0 %v252
        %994 = vmatprep.subr.mxu0 0.0
        %995 = vmatpush1.msra.mxu0 %v251
        %996 = vmatprep.subr.mxu0 0.0
        %997 = vmatpush2.msra.mxu0 %v282
        %998 = vmatprep.subr.mxu0 0.0
        %999 = vmatpush2.msra.mxu0 %v281
        %1000 = vmatprep.subr.mxu0 0.0
        %1001 = vmatpush2.msra.mxu0 %v280
        %1002 = vmatprep.subr.mxu0 0.0
        %1003 = vmatpush2.msra.mxu0 %v279
        %1004 = vmatprep.subr.mxu0 0.0
        %1005 = vmatpush2.msra.mxu0 %v278
        %1006 = vmatprep.subr.mxu0 0.0
        %1007 = vmatpush2.msra.mxu0 %v277
        %1008 = vmatprep.subr.mxu0 0.0
        %1009 = vmatpush2.msra.mxu0 %v276
        %1010 = vmatprep.subr.mxu0 0.0
        %1011 = vmatpush2.msra.mxu0 %v275
        %1012 = vmatprep.subr.mxu0 0.0
        %1013 = vmatpush2.msra.mxu0 %v274
        %1014 = vmatprep.subr.mxu0 0.0
        %1015 = vmatpush2.msra.mxu0 %v273
        %1016 = vmatprep.subr.mxu0 0.0
        %1017 = vmatpush2.msra.mxu0 %v272
        %1018 = vmatprep.subr.mxu0 0.0
        %1019 = vmatpush2.msra.mxu0 %v271
        %1020 = vmatprep.subr.mxu0 0.0
        %1021 = vmatpush2.msra.mxu0 %v270
        %1022 = vmatprep.subr.mxu0 0.0
        %1023 = vmatpush2.msra.mxu0 %v269
        %1024 = vmatprep.subr.mxu0 0.0
        %1025 = vmatpush2.msra.mxu0 %v268
        %1026 = vmatprep.subr.mxu0 0.0
        %1027 = vmatpush2.msra.mxu0 %v267
        %1028 = vmatprep.mubr.f32.mxu0 %v803
        %1029 = vmatmul.mubr.f32.gmra.mxu0 %v795
        %v1030 = vpop.f32.mrf.mxu0
        %v1031 = vadd.f32 0.0, %v1030
        %v1032 = vpop.f32.mrf.mxu0
        %1033 = vdwg.mxu0
        %1034 = vmatprep.subr.mxu0 0.0
        %1035 = vmatpush1.msra.mxu0 %v298
        %1036 = vmatprep.subr.mxu0 0.0
        %1037 = vmatpush1.msra.mxu0 %v297
        %1038 = vmatprep.subr.mxu0 0.0
        %1039 = vmatpush1.msra.mxu0 %v296
        %1040 = vmatprep.subr.mxu0 0.0
        %1041 = vmatpush1.msra.mxu0 %v295
        %1042 = vmatprep.subr.mxu0 0.0
        %1043 = vmatpush1.msra.mxu0 %v294
        %1044 = vmatprep.subr.mxu0 0.0
        %1045 = vmatpush1.msra.mxu0 %v293
        %1046 = vmatprep.subr.mxu0 0.0
        %1047 = vmatpush1.msra.mxu0 %v292
        %1048 = vmatprep.subr.mxu0 0.0
        %1049 = vmatpush1.msra.mxu0 %v291
        %1050 = vmatprep.subr.mxu0 0.0
        %1051 = vmatpush1.msra.mxu0 %v290
        %1052 = vmatprep.subr.mxu0 0.0
        %1053 = vmatpush1.msra.mxu0 %v289
        %1054 = vmatprep.subr.mxu0 0.0
        %1055 = vmatpush1.msra.mxu0 %v288
        %1056 = vmatprep.subr.mxu0 0.0
        %1057 = vmatpush1.msra.mxu0 %v287
        %1058 = vmatprep.subr.mxu0 0.0
        %1059 = vmatpush1.msra.mxu0 %v286
        %1060 = vmatprep.subr.mxu0 0.0
        %1061 = vmatpush1.msra.mxu0 %v285
        %1062 = vmatprep.subr.mxu0 0.0
        %1063 = vmatpush1.msra.mxu0 %v284
        %1064 = vmatprep.subr.mxu0 0.0
        %1065 = vmatpush1.msra.mxu0 %v283
        %1066 = vmatprep.subr.mxu0 0.0
        %1067 = vmatpush2.msra.mxu0 %v314
        %1068 = vmatprep.subr.mxu0 0.0
        %1069 = vmatpush2.msra.mxu0 %v313
        %1070 = vmatprep.subr.mxu0 0.0
        %1071 = vmatpush2.msra.mxu0 %v312
        %1072 = vmatprep.subr.mxu0 0.0
        %1073 = vmatpush2.msra.mxu0 %v311
        %1074 = vmatprep.subr.mxu0 0.0
        %1075 = vmatpush2.msra.mxu0 %v310
        %1076 = vmatprep.subr.mxu0 0.0
        %1077 = vmatpush2.msra.mxu0 %v309
        %1078 = vmatprep.subr.mxu0 0.0
        %1079 = vmatpush2.msra.mxu0 %v308
        %1080 = vmatprep.subr.mxu0 0.0
        %1081 = vmatpush2.msra.mxu0 %v307
        %1082 = vmatprep.subr.mxu0 0.0
        %1083 = vmatpush2.msra.mxu0 %v306
        %1084 = vmatprep.subr.mxu0 0.0
        %1085 = vmatpush2.msra.mxu0 %v305
        %1086 = vmatprep.subr.mxu0 0.0
        %1087 = vmatpush2.msra.mxu0 %v304
        %1088 = vmatprep.subr.mxu0 0.0
        %1089 = vmatpush2.msra.mxu0 %v303
        %1090 = vmatprep.subr.mxu0 0.0
        %1091 = vmatpush2.msra.mxu0 %v302
        %1092 = vmatprep.subr.mxu0 0.0
        %1093 = vmatpush2.msra.mxu0 %v301
        %1094 = vmatprep.subr.mxu0 0.0
        %1095 = vmatpush2.msra.mxu0 %v300
        %1096 = vmatprep.subr.mxu0 0.0
        %1097 = vmatpush2.msra.mxu0 %v299
        %1098 = vmatprep.mubr.f32.mxu0 %v804
        %1099 = vmatmul.mubr.f32.gmra.mxu0 %v802
        %v1100 = vpop.f32.mrf.mxu0
        %v1101 = vadd.f32 %v1031, %v1100
        %v1102 = vpop.f32.mrf.mxu0
        %1103 = vdwg.mxu0
        %1104 = vmatprep.subr.mxu0 0.0
        %1105 = vmatpush1.msra.mxu0 %v330
        %1106 = vmatprep.subr.mxu0 0.0
        %1107 = vmatpush1.msra.mxu0 %v329
        %1108 = vmatprep.subr.mxu0 0.0
        %1109 = vmatpush1.msra.mxu0 %v328
        %1110 = vmatprep.subr.mxu0 0.0
        %1111 = vmatpush1.msra.mxu0 %v327
        %1112 = vmatprep.subr.mxu0 0.0
        %1113 = vmatpush1.msra.mxu0 %v326
        %1114 = vmatprep.subr.mxu0 0.0
        %1115 = vmatpush1.msra.mxu0 %v325
        %1116 = vmatprep.subr.mxu0 0.0
        %1117 = vmatpush1.msra.mxu0 %v324
        %1118 = vmatprep.subr.mxu0 0.0
        %1119 = vmatpush1.msra.mxu0 %v323
        %1120 = vmatprep.subr.mxu0 0.0
        %1121 = vmatpush1.msra.mxu0 %v322
        %1122 = vmatprep.subr.mxu0 0.0
        %1123 = vmatpush1.msra.mxu0 %v321
        %1124 = vmatprep.subr.mxu0 0.0
        %1125 = vmatpush1.msra.mxu0 %v320
        %1126 = vmatprep.subr.mxu0 0.0
        %1127 = vmatpush1.msra.mxu0 %v319
        %1128 = vmatprep.subr.mxu0 0.0
        %1129 = vmatpush1.msra.mxu0 %v318
        %1130 = vmatprep.subr.mxu0 0.0
        %1131 = vmatpush1.msra.mxu0 %v317
        %1132 = vmatprep.subr.mxu0 0.0
        %1133 = vmatpush1.msra.mxu0 %v316
        %1134 = vmatprep.subr.mxu0 0.0
        %1135 = vmatpush1.msra.mxu0 %v315
        %1136 = vmatprep.subr.mxu0 0.0
        %1137 = vmatpush2.msra.mxu0 %v346
        %1138 = vmatprep.subr.mxu0 0.0
        %1139 = vmatpush2.msra.mxu0 %v345
        %1140 = vmatprep.subr.mxu0 0.0
        %1141 = vmatpush2.msra.mxu0 %v344
        %1142 = vmatprep.subr.mxu0 0.0
        %1143 = vmatpush2.msra.mxu0 %v343
        %1144 = vmatprep.subr.mxu0 0.0
        %1145 = vmatpush2.msra.mxu0 %v342
        %1146 = vmatprep.subr.mxu0 0.0
        %1147 = vmatpush2.msra.mxu0 %v341
        %1148 = vmatprep.subr.mxu0 0.0
        %1149 = vmatpush2.msra.mxu0 %v340
        %1150 = vmatprep.subr.mxu0 0.0
        %1151 = vmatpush2.msra.mxu0 %v339
        %1152 = vmatprep.subr.mxu0 0.0
        %1153 = vmatpush2.msra.mxu0 %v338
        %1154 = vmatprep.subr.mxu0 0.0
        %1155 = vmatpush2.msra.mxu0 %v337
        %1156 = vmatprep.subr.mxu0 0.0
        %1157 = vmatpush2.msra.mxu0 %v336
        %1158 = vmatprep.subr.mxu0 0.0
        %1159 = vmatpush2.msra.mxu0 %v335
        %1160 = vmatprep.subr.mxu0 0.0
        %1161 = vmatpush2.msra.mxu0 %v334
        %1162 = vmatprep.subr.mxu0 0.0
        %1163 = vmatpush2.msra.mxu0 %v333
        %1164 = vmatprep.subr.mxu0 0.0
        %1165 = vmatpush2.msra.mxu0 %v332
        %1166 = vmatprep.subr.mxu0 0.0
        %1167 = vmatpush2.msra.mxu0 %v331
        %1168 = vmatprep.mubr.f32.mxu0 %v820
        %1169 = vmatmul.mubr.f32.gmra.mxu0 %v812
        %v1170 = vpop.f32.mrf.mxu0
        %v1171 = vadd.f32 %v1101, %v1170
        %v1172 = vpop.f32.mrf.mxu0
        %1173 = vdwg.mxu0
        %1174 = vmatprep.subr.mxu0 0.0
        %1175 = vmatpush1.msra.mxu0 %v362
        %1176 = vmatprep.subr.mxu0 0.0
        %1177 = vmatpush1.msra.mxu0 %v361
        %1178 = vmatprep.subr.mxu0 0.0
        %1179 = vmatpush1.msra.mxu0 %v360
        %1180 = vmatprep.subr.mxu0 0.0
        %1181 = vmatpush1.msra.mxu0 %v359
        %1182 = vmatprep.subr.mxu0 0.0
        %1183 = vmatpush1.msra.mxu0 %v358
        %1184 = vmatprep.subr.mxu0 0.0
        %1185 = vmatpush1.msra.mxu0 %v357
        %1186 = vmatprep.subr.mxu0 0.0
        %1187 = vmatpush1.msra.mxu0 %v356
        %1188 = vmatprep.subr.mxu0 0.0
        %1189 = vmatpush1.msra.mxu0 %v355
        %1190 = vmatprep.subr.mxu0 0.0
        %1191 = vmatpush1.msra.mxu0 %v354
        %1192 = vmatprep.subr.mxu0 0.0
        %1193 = vmatpush1.msra.mxu0 %v353
        %1194 = vmatprep.subr.mxu0 0.0
        %1195 = vmatpush1.msra.mxu0 %v352
        %1196 = vmatprep.subr.mxu0 0.0
        %1197 = vmatpush1.msra.mxu0 %v351
        %1198 = vmatprep.subr.mxu0 0.0
        %1199 = vmatpush1.msra.mxu0 %v350
        %1200 = vmatprep.subr.mxu0 0.0
        %1201 = vmatpush1.msra.mxu0 %v349
        %1202 = vmatprep.subr.mxu0 0.0
        %1203 = vmatpush1.msra.mxu0 %v348
        %1204 = vmatprep.subr.mxu0 0.0
        %1205 = vmatpush1.msra.mxu0 %v347
        %1206 = vmatprep.subr.mxu0 0.0
        %1207 = vmatpush2.msra.mxu0 %v378
        %1208 = vmatprep.subr.mxu0 0.0
        %1209 = vmatpush2.msra.mxu0 %v377
        %1210 = vmatprep.subr.mxu0 0.0
        %1211 = vmatpush2.msra.mxu0 %v376
        %1212 = vmatprep.subr.mxu0 0.0
        %1213 = vmatpush2.msra.mxu0 %v375
        %1214 = vmatprep.subr.mxu0 0.0
        %1215 = vmatpush2.msra.mxu0 %v374
        %1216 = vmatprep.subr.mxu0 0.0
        %1217 = vmatpush2.msra.mxu0 %v373
        %1218 = vmatprep.subr.mxu0 0.0
        %1219 = vmatpush2.msra.mxu0 %v372
        %1220 = vmatprep.subr.mxu0 0.0
        %1221 = vmatpush2.msra.mxu0 %v371
        %1222 = vmatprep.subr.mxu0 0.0
        %1223 = vmatpush2.msra.mxu0 %v370
        %1224 = vmatprep.subr.mxu0 0.0
        %1225 = vmatpush2.msra.mxu0 %v369
        %1226 = vmatprep.subr.mxu0 0.0
        %1227 = vmatpush2.msra.mxu0 %v368
        %1228 = vmatprep.subr.mxu0 0.0
        %1229 = vmatpush2.msra.mxu0 %v367
        %1230 = vmatprep.subr.mxu0 0.0
        %1231 = vmatpush2.msra.mxu0 %v366
        %1232 = vmatprep.subr.mxu0 0.0
        %1233 = vmatpush2.msra.mxu0 %v365
        %1234 = vmatprep.subr.mxu0 0.0
        %1235 = vmatpush2.msra.mxu0 %v364
        %1236 = vmatprep.subr.mxu0 0.0
        %1237 = vmatpush2.msra.mxu0 %v363
        %1238 = vmatprep.mubr.f32.mxu0 %v821
        %1239 = vmatmul.mubr.f32.gmra.mxu0 %v819
        %v1240 = vpop.f32.mrf.mxu0
        %v1241 = vadd.f32 %v1171, %v1240
        %v1242 = vpop.f32.mrf.mxu0
        %1243 = vdwg.mxu0
        %1244 = vmatprep.subr.mxu0 0.0
        %1245 = vmatpush1.msra.mxu0 %v394
        %1246 = vmatprep.subr.mxu0 0.0
        %1247 = vmatpush1.msra.mxu0 %v393
        %1248 = vmatprep.subr.mxu0 0.0
        %1249 = vmatpush1.msra.mxu0 %v392
        %1250 = vmatprep.subr.mxu0 0.0
        %1251 = vmatpush1.msra.mxu0 %v391
        %1252 = vmatprep.subr.mxu0 0.0
        %1253 = vmatpush1.msra.mxu0 %v390
        %1254 = vmatprep.subr.mxu0 0.0
        %1255 = vmatpush1.msra.mxu0 %v389
        %1256 = vmatprep.subr.mxu0 0.0
        %1257 = vmatpush1.msra.mxu0 %v388
        %1258 = vmatprep.subr.mxu0 0.0
        %1259 = vmatpush1.msra.mxu0 %v387
        %1260 = vmatprep.subr.mxu0 0.0
        %1261 = vmatpush1.msra.mxu0 %v386
        %1262 = vmatprep.subr.mxu0 0.0
        %1263 = vmatpush1.msra.mxu0 %v385
        %1264 = vmatprep.subr.mxu0 0.0
        %1265 = vmatpush1.msra.mxu0 %v384
        %1266 = vmatprep.subr.mxu0 0.0
        %1267 = vmatpush1.msra.mxu0 %v383
        %1268 = vmatprep.subr.mxu0 0.0
        %1269 = vmatpush1.msra.mxu0 %v382
        %1270 = vmatprep.subr.mxu0 0.0
        %1271 = vmatpush1.msra.mxu0 %v381
        %1272 = vmatprep.subr.mxu0 0.0
        %1273 = vmatpush1.msra.mxu0 %v380
        %1274 = vmatprep.subr.mxu0 0.0
        %1275 = vmatpush1.msra.mxu0 %v379
        %1276 = vmatprep.subr.mxu0 0.0
        %1277 = vmatpush2.msra.mxu0 %v410
        %1278 = vmatprep.subr.mxu0 0.0
        %1279 = vmatpush2.msra.mxu0 %v409
        %1280 = vmatprep.subr.mxu0 0.0
        %1281 = vmatpush2.msra.mxu0 %v408
        %1282 = vmatprep.subr.mxu0 0.0
        %1283 = vmatpush2.msra.mxu0 %v407
        %1284 = vmatprep.subr.mxu0 0.0
        %1285 = vmatpush2.msra.mxu0 %v406
        %1286 = vmatprep.subr.mxu0 0.0
        %1287 = vmatpush2.msra.mxu0 %v405
        %1288 = vmatprep.subr.mxu0 0.0
        %1289 = vmatpush2.msra.mxu0 %v404
        %1290 = vmatprep.subr.mxu0 0.0
        %1291 = vmatpush2.msra.mxu0 %v403
        %1292 = vmatprep.subr.mxu0 0.0
        %1293 = vmatpush2.msra.mxu0 %v402
        %1294 = vmatprep.subr.mxu0 0.0
        %1295 = vmatpush2.msra.mxu0 %v401
        %1296 = vmatprep.subr.mxu0 0.0
        %1297 = vmatpush2.msra.mxu0 %v400
        %1298 = vmatprep.subr.mxu0 0.0
        %1299 = vmatpush2.msra.mxu0 %v399
        %1300 = vmatprep.subr.mxu0 0.0
        %1301 = vmatpush2.msra.mxu0 %v398
        %1302 = vmatprep.subr.mxu0 0.0
        %1303 = vmatpush2.msra.mxu0 %v397
        %1304 = vmatprep.subr.mxu0 0.0
        %1305 = vmatpush2.msra.mxu0 %v396
        %1306 = vmatprep.subr.mxu0 0.0
        %1307 = vmatpush2.msra.mxu0 %v395
        %1308 = vmatprep.mubr.f32.mxu0 %v837
        %1309 = vmatmul.mubr.f32.gmra.mxu0 %v829
        %v1310 = vpop.f32.mrf.mxu0
        %v1311 = vadd.f32 %v1241, %v1310
        %v1312 = vpop.f32.mrf.mxu0
        %1313 = vdwg.mxu0
        %1314 = vmatprep.subr.mxu0 0.0
        %1315 = vmatpush1.msra.mxu0 %v426
        %1316 = vmatprep.subr.mxu0 0.0
        %1317 = vmatpush1.msra.mxu0 %v425
        %1318 = vmatprep.subr.mxu0 0.0
        %1319 = vmatpush1.msra.mxu0 %v424
        %1320 = vmatprep.subr.mxu0 0.0
        %1321 = vmatpush1.msra.mxu0 %v423
        %1322 = vmatprep.subr.mxu0 0.0
        %1323 = vmatpush1.msra.mxu0 %v422
        %1324 = vmatprep.subr.mxu0 0.0
        %1325 = vmatpush1.msra.mxu0 %v421
        %1326 = vmatprep.subr.mxu0 0.0
        %1327 = vmatpush1.msra.mxu0 %v420
        %1328 = vmatprep.subr.mxu0 0.0
        %1329 = vmatpush1.msra.mxu0 %v419
        %1330 = vmatprep.subr.mxu0 0.0
        %1331 = vmatpush1.msra.mxu0 %v418
        %1332 = vmatprep.subr.mxu0 0.0
        %1333 = vmatpush1.msra.mxu0 %v417
        %1334 = vmatprep.subr.mxu0 0.0
        %1335 = vmatpush1.msra.mxu0 %v416
        %1336 = vmatprep.subr.mxu0 0.0
        %1337 = vmatpush1.msra.mxu0 %v415
        %1338 = vmatprep.subr.mxu0 0.0
        %1339 = vmatpush1.msra.mxu0 %v414
        %1340 = vmatprep.subr.mxu0 0.0
        %1341 = vmatpush1.msra.mxu0 %v413
        %1342 = vmatprep.subr.mxu0 0.0
        %1343 = vmatpush1.msra.mxu0 %v412
        %1344 = vmatprep.subr.mxu0 0.0
        %1345 = vmatpush1.msra.mxu0 %v411
        %1346 = vmatprep.subr.mxu0 0.0
        %1347 = vmatpush2.msra.mxu0 %v442
        %1348 = vmatprep.subr.mxu0 0.0
        %1349 = vmatpush2.msra.mxu0 %v441
        %1350 = vmatprep.subr.mxu0 0.0
        %1351 = vmatpush2.msra.mxu0 %v440
        %1352 = vmatprep.subr.mxu0 0.0
        %1353 = vmatpush2.msra.mxu0 %v439
        %1354 = vmatprep.subr.mxu0 0.0
        %1355 = vmatpush2.msra.mxu0 %v438
        %1356 = vmatprep.subr.mxu0 0.0
        %1357 = vmatpush2.msra.mxu0 %v437
        %1358 = vmatprep.subr.mxu0 0.0
        %1359 = vmatpush2.msra.mxu0 %v436
        %1360 = vmatprep.subr.mxu0 0.0
        %1361 = vmatpush2.msra.mxu0 %v435
        %1362 = vmatprep.subr.mxu0 0.0
        %1363 = vmatpush2.msra.mxu0 %v434
        %1364 = vmatprep.subr.mxu0 0.0
        %1365 = vmatpush2.msra.mxu0 %v433
        %1366 = vmatprep.subr.mxu0 0.0
        %1367 = vmatpush2.msra.mxu0 %v432
        %1368 = vmatprep.subr.mxu0 0.0
        %1369 = vmatpush2.msra.mxu0 %v431
        %1370 = vmatprep.subr.mxu0 0.0
        %1371 = vmatpush2.msra.mxu0 %v430
        %1372 = vmatprep.subr.mxu0 0.0
        %1373 = vmatpush2.msra.mxu0 %v429
        %1374 = vmatprep.subr.mxu0 0.0
        %1375 = vmatpush2.msra.mxu0 %v428
        %1376 = vmatprep.subr.mxu0 0.0
        %1377 = vmatpush2.msra.mxu0 %v427
        %1378 = vmatprep.mubr.f32.mxu0 %v838
        %1379 = vmatmul.mubr.f32.gmra.mxu0 %v836
        %v1380 = vpop.f32.mrf.mxu0
        %v1381 = vadd.f32 %v1311, %v1380
        %v1382 = vpop.f32.mrf.mxu0
        %1383 = vdwg.mxu0
        %1384 = vmatprep.subr.mxu0 0.0
        %1385 = vmatpush1.msra.mxu0 %v458
        %1386 = vmatprep.subr.mxu0 0.0
        %1387 = vmatpush1.msra.mxu0 %v457
        %1388 = vmatprep.subr.mxu0 0.0
        %1389 = vmatpush1.msra.mxu0 %v456
        %1390 = vmatprep.subr.mxu0 0.0
        %1391 = vmatpush1.msra.mxu0 %v455
        %1392 = vmatprep.subr.mxu0 0.0
        %1393 = vmatpush1.msra.mxu0 %v454
        %1394 = vmatprep.subr.mxu0 0.0
        %1395 = vmatpush1.msra.mxu0 %v453
        %1396 = vmatprep.subr.mxu0 0.0
        %1397 = vmatpush1.msra.mxu0 %v452
        %1398 = vmatprep.subr.mxu0 0.0
        %1399 = vmatpush1.msra.mxu0 %v451
        %1400 = vmatprep.subr.mxu0 0.0
        %1401 = vmatpush1.msra.mxu0 %v450
        %1402 = vmatprep.subr.mxu0 0.0
        %1403 = vmatpush1.msra.mxu0 %v449
        %1404 = vmatprep.subr.mxu0 0.0
        %1405 = vmatpush1.msra.mxu0 %v448
        %1406 = vmatprep.subr.mxu0 0.0
        %1407 = vmatpush1.msra.mxu0 %v447
        %1408 = vmatprep.subr.mxu0 0.0
        %1409 = vmatpush1.msra.mxu0 %v446
        %1410 = vmatprep.subr.mxu0 0.0
        %1411 = vmatpush1.msra.mxu0 %v445
        %1412 = vmatprep.subr.mxu0 0.0
        %1413 = vmatpush1.msra.mxu0 %v444
        %1414 = vmatprep.subr.mxu0 0.0
        %1415 = vmatpush1.msra.mxu0 %v443
        %1416 = vmatprep.subr.mxu0 0.0
        %1417 = vmatpush2.msra.mxu0 %v474
        %1418 = vmatprep.subr.mxu0 0.0
        %1419 = vmatpush2.msra.mxu0 %v473
        %1420 = vmatprep.subr.mxu0 0.0
        %1421 = vmatpush2.msra.mxu0 %v472
        %1422 = vmatprep.subr.mxu0 0.0
        %1423 = vmatpush2.msra.mxu0 %v471
        %1424 = vmatprep.subr.mxu0 0.0
        %1425 = vmatpush2.msra.mxu0 %v470
        %1426 = vmatprep.subr.mxu0 0.0
        %1427 = vmatpush2.msra.mxu0 %v469
        %1428 = vmatprep.subr.mxu0 0.0
        %1429 = vmatpush2.msra.mxu0 %v468
        %1430 = vmatprep.subr.mxu0 0.0
        %1431 = vmatpush2.msra.mxu0 %v467
        %1432 = vmatprep.subr.mxu0 0.0
        %1433 = vmatpush2.msra.mxu0 %v466
        %1434 = vmatprep.subr.mxu0 0.0
        %1435 = vmatpush2.msra.mxu0 %v465
        %1436 = vmatprep.subr.mxu0 0.0
        %1437 = vmatpush2.msra.mxu0 %v464
        %1438 = vmatprep.subr.mxu0 0.0
        %1439 = vmatpush2.msra.mxu0 %v463
        %1440 = vmatprep.subr.mxu0 0.0
        %1441 = vmatpush2.msra.mxu0 %v462
        %1442 = vmatprep.subr.mxu0 0.0
        %1443 = vmatpush2.msra.mxu0 %v461
        %1444 = vmatprep.subr.mxu0 0.0
        %1445 = vmatpush2.msra.mxu0 %v460
        %1446 = vmatprep.subr.mxu0 0.0
        %1447 = vmatpush2.msra.mxu0 %v459
        %1448 = vmatprep.mubr.f32.mxu0 %v854
        %1449 = vmatmul.mubr.f32.gmra.mxu0 %v846
        %v1450 = vpop.f32.mrf.mxu0
        %v1451 = vadd.f32 %v1381, %v1450
        %v1452 = vpop.f32.mrf.mxu0
        %1453 = vdwg.mxu0
        %1454 = vmatprep.subr.mxu0 0.0
        %1455 = vmatpush1.msra.mxu0 %v490
        %1456 = vmatprep.subr.mxu0 0.0
        %1457 = vmatpush1.msra.mxu0 %v489
        %1458 = vmatprep.subr.mxu0 0.0
        %1459 = vmatpush1.msra.mxu0 %v488
        %1460 = vmatprep.subr.mxu0 0.0
        %1461 = vmatpush1.msra.mxu0 %v487
        %1462 = vmatprep.subr.mxu0 0.0
        %1463 = vmatpush1.msra.mxu0 %v486
        %1464 = vmatprep.subr.mxu0 0.0
        %1465 = vmatpush1.msra.mxu0 %v485
        %1466 = vmatprep.subr.mxu0 0.0
        %1467 = vmatpush1.msra.mxu0 %v484
        %1468 = vmatprep.subr.mxu0 0.0
        %1469 = vmatpush1.msra.mxu0 %v483
        %1470 = vmatprep.subr.mxu0 0.0
        %1471 = vmatpush1.msra.mxu0 %v482
        %1472 = vmatprep.subr.mxu0 0.0
        %1473 = vmatpush1.msra.mxu0 %v481
        %1474 = vmatprep.subr.mxu0 0.0
        %1475 = vmatpush1.msra.mxu0 %v480
        %1476 = vmatprep.subr.mxu0 0.0
        %1477 = vmatpush1.msra.mxu0 %v479
        %1478 = vmatprep.subr.mxu0 0.0
        %1479 = vmatpush1.msra.mxu0 %v478
        %1480 = vmatprep.subr.mxu0 0.0
        %1481 = vmatpush1.msra.mxu0 %v477
        %1482 = vmatprep.subr.mxu0 0.0
        %1483 = vmatpush1.msra.mxu0 %v476
        %1484 = vmatprep.subr.mxu0 0.0
        %1485 = vmatpush1.msra.mxu0 %v475
        %1486 = vmatprep.subr.mxu0 0.0
        %1487 = vmatpush2.msra.mxu0 %v506
        %1488 = vmatprep.subr.mxu0 0.0
        %1489 = vmatpush2.msra.mxu0 %v505
        %1490 = vmatprep.subr.mxu0 0.0
        %1491 = vmatpush2.msra.mxu0 %v504
        %1492 = vmatprep.subr.mxu0 0.0
        %1493 = vmatpush2.msra.mxu0 %v503
        %1494 = vmatprep.subr.mxu0 0.0
        %1495 = vmatpush2.msra.mxu0 %v502
        %1496 = vmatprep.subr.mxu0 0.0
        %1497 = vmatpush2.msra.mxu0 %v501
        %1498 = vmatprep.subr.mxu0 0.0
        %1499 = vmatpush2.msra.mxu0 %v500
        %1500 = vmatprep.subr.mxu0 0.0
        %1501 = vmatpush2.msra.mxu0 %v499
        %1502 = vmatprep.subr.mxu0 0.0
        %1503 = vmatpush2.msra.mxu0 %v498
        %1504 = vmatprep.subr.mxu0 0.0
        %1505 = vmatpush2.msra.mxu0 %v497
        %1506 = vmatprep.subr.mxu0 0.0
        %1507 = vmatpush2.msra.mxu0 %v496
        %1508 = vmatprep.subr.mxu0 0.0
        %1509 = vmatpush2.msra.mxu0 %v495
        %1510 = vmatprep.subr.mxu0 0.0
        %1511 = vmatpush2.msra.mxu0 %v494
        %1512 = vmatprep.subr.mxu0 0.0
        %1513 = vmatpush2.msra.mxu0 %v493
        %1514 = vmatprep.subr.mxu0 0.0
        %1515 = vmatpush2.msra.mxu0 %v492
        %1516 = vmatprep.subr.mxu0 0.0
        %1517 = vmatpush2.msra.mxu0 %v491
        %1518 = vmatprep.mubr.f32.mxu0 %v855
        %1519 = vmatmul.mubr.f32.gmra.mxu0 %v853
        %v1520 = vpop.f32.mrf.mxu0
        %v1521 = vadd.f32 %v1451, %v1520
        %v1522 = vpop.f32.mrf.mxu0
        %1523 = vdwg.mxu0
        %1524 = vmatprep.subr.mxu0 0.0
        %1525 = vmatpush1.msra.mxu0 %v522
        %1526 = vmatprep.subr.mxu0 0.0
        %1527 = vmatpush1.msra.mxu0 %v521
        %1528 = vmatprep.subr.mxu0 0.0
        %1529 = vmatpush1.msra.mxu0 %v520
        %1530 = vmatprep.subr.mxu0 0.0
        %1531 = vmatpush1.msra.mxu0 %v519
        %1532 = vmatprep.subr.mxu0 0.0
        %1533 = vmatpush1.msra.mxu0 %v518
        %1534 = vmatprep.subr.mxu0 0.0
        %1535 = vmatpush1.msra.mxu0 %v517
        %1536 = vmatprep.subr.mxu0 0.0
        %1537 = vmatpush1.msra.mxu0 %v516
        %1538 = vmatprep.subr.mxu0 0.0
        %1539 = vmatpush1.msra.mxu0 %v515
        %1540 = vmatprep.subr.mxu0 0.0
        %1541 = vmatpush1.msra.mxu0 %v514
        %1542 = vmatprep.subr.mxu0 0.0
        %1543 = vmatpush1.msra.mxu0 %v513
        %1544 = vmatprep.subr.mxu0 0.0
        %1545 = vmatpush1.msra.mxu0 %v512
        %1546 = vmatprep.subr.mxu0 0.0
        %1547 = vmatpush1.msra.mxu0 %v511
        %1548 = vmatprep.subr.mxu0 0.0
        %1549 = vmatpush1.msra.mxu0 %v510
        %1550 = vmatprep.subr.mxu0 0.0
        %1551 = vmatpush1.msra.mxu0 %v509
        %1552 = vmatprep.subr.mxu0 0.0
        %1553 = vmatpush1.msra.mxu0 %v508
        %1554 = vmatprep.subr.mxu0 0.0
        %1555 = vmatpush1.msra.mxu0 %v507
        %1556 = vmatprep.subr.mxu0 0.0
        %1557 = vmatpush2.msra.mxu0 %v538
        %1558 = vmatprep.subr.mxu0 0.0
        %1559 = vmatpush2.msra.mxu0 %v537
        %1560 = vmatprep.subr.mxu0 0.0
        %1561 = vmatpush2.msra.mxu0 %v536
        %1562 = vmatprep.subr.mxu0 0.0
        %1563 = vmatpush2.msra.mxu0 %v535
        %1564 = vmatprep.subr.mxu0 0.0
        %1565 = vmatpush2.msra.mxu0 %v534
        %1566 = vmatprep.subr.mxu0 0.0
        %1567 = vmatpush2.msra.mxu0 %v533
        %1568 = vmatprep.subr.mxu0 0.0
        %1569 = vmatpush2.msra.mxu0 %v532
        %1570 = vmatprep.subr.mxu0 0.0
        %1571 = vmatpush2.msra.mxu0 %v531
        %1572 = vmatprep.subr.mxu0 0.0
        %1573 = vmatpush2.msra.mxu0 %v530
        %1574 = vmatprep.subr.mxu0 0.0
        %1575 = vmatpush2.msra.mxu0 %v529
        %1576 = vmatprep.subr.mxu0 0.0
        %1577 = vmatpush2.msra.mxu0 %v528
        %1578 = vmatprep.subr.mxu0 0.0
        %1579 = vmatpush2.msra.mxu0 %v527
        %1580 = vmatprep.subr.mxu0 0.0
        %1581 = vmatpush2.msra.mxu0 %v526
        %1582 = vmatprep.subr.mxu0 0.0
        %1583 = vmatpush2.msra.mxu0 %v525
        %1584 = vmatprep.subr.mxu0 0.0
        %1585 = vmatpush2.msra.mxu0 %v524
        %1586 = vmatprep.subr.mxu0 0.0
        %1587 = vmatpush2.msra.mxu0 %v523
        %1588 = vmatprep.mubr.f32.mxu0 %v871
        %1589 = vmatmul.mubr.f32.gmra.mxu0 %v863
        %v1590 = vpop.f32.mrf.mxu0
        %v1591 = vadd.f32 %v1521, %v1590
        %v1592 = vpop.f32.mrf.mxu0
        %1593 = vdwg.mxu0
        %1594 = vmatprep.subr.mxu0 0.0
        %1595 = vmatpush1.msra.mxu0 %v554
        %1596 = vmatprep.subr.mxu0 0.0
        %1597 = vmatpush1.msra.mxu0 %v553
        %1598 = vmatprep.subr.mxu0 0.0
        %1599 = vmatpush1.msra.mxu0 %v552
        %1600 = vmatprep.subr.mxu0 0.0
        %1601 = vmatpush1.msra.mxu0 %v551
        %1602 = vmatprep.subr.mxu0 0.0
        %1603 = vmatpush1.msra.mxu0 %v550
        %1604 = vmatprep.subr.mxu0 0.0
        %1605 = vmatpush1.msra.mxu0 %v549
        %1606 = vmatprep.subr.mxu0 0.0
        %1607 = vmatpush1.msra.mxu0 %v548
        %1608 = vmatprep.subr.mxu0 0.0
        %1609 = vmatpush1.msra.mxu0 %v547
        %1610 = vmatprep.subr.mxu0 0.0
        %1611 = vmatpush1.msra.mxu0 %v546
        %1612 = vmatprep.subr.mxu0 0.0
        %1613 = vmatpush1.msra.mxu0 %v545
        %1614 = vmatprep.subr.mxu0 0.0
        %1615 = vmatpush1.msra.mxu0 %v544
        %1616 = vmatprep.subr.mxu0 0.0
        %1617 = vmatpush1.msra.mxu0 %v543
        %1618 = vmatprep.subr.mxu0 0.0
        %1619 = vmatpush1.msra.mxu0 %v542
        %1620 = vmatprep.subr.mxu0 0.0
        %1621 = vmatpush1.msra.mxu0 %v541
        %1622 = vmatprep.subr.mxu0 0.0
        %1623 = vmatpush1.msra.mxu0 %v540
        %1624 = vmatprep.subr.mxu0 0.0
        %1625 = vmatpush1.msra.mxu0 %v539
        %1626 = vmatprep.subr.mxu0 0.0
        %1627 = vmatpush2.msra.mxu0 %v570
        %1628 = vmatprep.subr.mxu0 0.0
        %1629 = vmatpush2.msra.mxu0 %v569
        %1630 = vmatprep.subr.mxu0 0.0
        %1631 = vmatpush2.msra.mxu0 %v568
        %1632 = vmatprep.subr.mxu0 0.0
        %1633 = vmatpush2.msra.mxu0 %v567
        %1634 = vmatprep.subr.mxu0 0.0
        %1635 = vmatpush2.msra.mxu0 %v566
        %1636 = vmatprep.subr.mxu0 0.0
        %1637 = vmatpush2.msra.mxu0 %v565
        %1638 = vmatprep.subr.mxu0 0.0
        %1639 = vmatpush2.msra.mxu0 %v564
        %1640 = vmatprep.subr.mxu0 0.0
        %1641 = vmatpush2.msra.mxu0 %v563
        %1642 = vmatprep.subr.mxu0 0.0
        %1643 = vmatpush2.msra.mxu0 %v562
        %1644 = vmatprep.subr.mxu0 0.0
        %1645 = vmatpush2.msra.mxu0 %v561
        %1646 = vmatprep.subr.mxu0 0.0
        %1647 = vmatpush2.msra.mxu0 %v560
        %1648 = vmatprep.subr.mxu0 0.0
        %1649 = vmatpush2.msra.mxu0 %v559
        %1650 = vmatprep.subr.mxu0 0.0
        %1651 = vmatpush2.msra.mxu0 %v558
        %1652 = vmatprep.subr.mxu0 0.0
        %1653 = vmatpush2.msra.mxu0 %v557
        %1654 = vmatprep.subr.mxu0 0.0
        %1655 = vmatpush2.msra.mxu0 %v556
        %1656 = vmatprep.subr.mxu0 0.0
        %1657 = vmatpush2.msra.mxu0 %v555
        %1658 = vmatprep.mubr.f32.mxu0 %v872
        %1659 = vmatmul.mubr.f32.gmra.mxu0 %v870
        %v1660 = vpop.f32.mrf.mxu0
        %v1661 = vadd.f32 %v1591, %v1660
        %v1662 = vpop.f32.mrf.mxu0
        %1663 = vdwg.mxu0
        %1664 = vmatprep.subr.mxu0 0.0
        %1665 = vmatpush1.msra.mxu0 %v586
        %1666 = vmatprep.subr.mxu0 0.0
        %1667 = vmatpush1.msra.mxu0 %v585
        %1668 = vmatprep.subr.mxu0 0.0
        %1669 = vmatpush1.msra.mxu0 %v584
        %1670 = vmatprep.subr.mxu0 0.0
        %1671 = vmatpush1.msra.mxu0 %v583
        %1672 = vmatprep.subr.mxu0 0.0
        %1673 = vmatpush1.msra.mxu0 %v582
        %1674 = vmatprep.subr.mxu0 0.0
        %1675 = vmatpush1.msra.mxu0 %v581
        %1676 = vmatprep.subr.mxu0 0.0
        %1677 = vmatpush1.msra.mxu0 %v580
        %1678 = vmatprep.subr.mxu0 0.0
        %1679 = vmatpush1.msra.mxu0 %v579
        %1680 = vmatprep.subr.mxu0 0.0
        %1681 = vmatpush1.msra.mxu0 %v578
        %1682 = vmatprep.subr.mxu0 0.0
        %1683 = vmatpush1.msra.mxu0 %v577
        %1684 = vmatprep.subr.mxu0 0.0
        %1685 = vmatpush1.msra.mxu0 %v576
        %1686 = vmatprep.subr.mxu0 0.0
        %1687 = vmatpush1.msra.mxu0 %v575
        %1688 = vmatprep.subr.mxu0 0.0
        %1689 = vmatpush1.msra.mxu0 %v574
        %1690 = vmatprep.subr.mxu0 0.0
        %1691 = vmatpush1.msra.mxu0 %v573
        %1692 = vmatprep.subr.mxu0 0.0
        %1693 = vmatpush1.msra.mxu0 %v572
        %1694 = vmatprep.subr.mxu0 0.0
        %1695 = vmatpush1.msra.mxu0 %v571
        %1696 = vmatprep.subr.mxu0 0.0
        %1697 = vmatpush2.msra.mxu0 %v602
        %1698 = vmatprep.subr.mxu0 0.0
        %1699 = vmatpush2.msra.mxu0 %v601
        %1700 = vmatprep.subr.mxu0 0.0
        %1701 = vmatpush2.msra.mxu0 %v600
        %1702 = vmatprep.subr.mxu0 0.0
        %1703 = vmatpush2.msra.mxu0 %v599
        %1704 = vmatprep.subr.mxu0 0.0
        %1705 = vmatpush2.msra.mxu0 %v598
        %1706 = vmatprep.subr.mxu0 0.0
        %1707 = vmatpush2.msra.mxu0 %v597
        %1708 = vmatprep.subr.mxu0 0.0
        %1709 = vmatpush2.msra.mxu0 %v596
        %1710 = vmatprep.subr.mxu0 0.0
        %1711 = vmatpush2.msra.mxu0 %v595
        %1712 = vmatprep.subr.mxu0 0.0
        %1713 = vmatpush2.msra.mxu0 %v594
        %1714 = vmatprep.subr.mxu0 0.0
        %1715 = vmatpush2.msra.mxu0 %v593
        %1716 = vmatprep.subr.mxu0 0.0
        %1717 = vmatpush2.msra.mxu0 %v592
        %1718 = vmatprep.subr.mxu0 0.0
        %1719 = vmatpush2.msra.mxu0 %v591
        %1720 = vmatprep.subr.mxu0 0.0
        %1721 = vmatpush2.msra.mxu0 %v590
        %1722 = vmatprep.subr.mxu0 0.0
        %1723 = vmatpush2.msra.mxu0 %v589
        %1724 = vmatprep.subr.mxu0 0.0
        %1725 = vmatpush2.msra.mxu0 %v588
        %1726 = vmatprep.subr.mxu0 0.0
        %1727 = vmatpush2.msra.mxu0 %v587
        %1728 = vmatprep.mubr.f32.mxu0 %v888
        %1729 = vmatmul.mubr.f32.gmra.mxu0 %v880
        %v1730 = vpop.f32.mrf.mxu0
        %v1731 = vadd.f32 %v1661, %v1730
        %v1732 = vpop.f32.mrf.mxu0
        %1733 = vdwg.mxu0
        %1734 = vmatprep.subr.mxu0 0.0
        %1735 = vmatpush1.msra.mxu0 %v618
        %1736 = vmatprep.subr.mxu0 0.0
        %1737 = vmatpush1.msra.mxu0 %v617
        %1738 = vmatprep.subr.mxu0 0.0
        %1739 = vmatpush1.msra.mxu0 %v616
        %1740 = vmatprep.subr.mxu0 0.0
        %1741 = vmatpush1.msra.mxu0 %v615
        %1742 = vmatprep.subr.mxu0 0.0
        %1743 = vmatpush1.msra.mxu0 %v614
        %1744 = vmatprep.subr.mxu0 0.0
        %1745 = vmatpush1.msra.mxu0 %v613
        %1746 = vmatprep.subr.mxu0 0.0
        %1747 = vmatpush1.msra.mxu0 %v612
        %1748 = vmatprep.subr.mxu0 0.0
        %1749 = vmatpush1.msra.mxu0 %v611
        %1750 = vmatprep.subr.mxu0 0.0
        %1751 = vmatpush1.msra.mxu0 %v610
        %1752 = vmatprep.subr.mxu0 0.0
        %1753 = vmatpush1.msra.mxu0 %v609
        %1754 = vmatprep.subr.mxu0 0.0
        %1755 = vmatpush1.msra.mxu0 %v608
        %1756 = vmatprep.subr.mxu0 0.0
        %1757 = vmatpush1.msra.mxu0 %v607
        %1758 = vmatprep.subr.mxu0 0.0
        %1759 = vmatpush1.msra.mxu0 %v606
        %1760 = vmatprep.subr.mxu0 0.0
        %1761 = vmatpush1.msra.mxu0 %v605
        %1762 = vmatprep.subr.mxu0 0.0
        %1763 = vmatpush1.msra.mxu0 %v604
        %1764 = vmatprep.subr.mxu0 0.0
        %1765 = vmatpush1.msra.mxu0 %v603
        %1766 = vmatprep.subr.mxu0 0.0
        %1767 = vmatpush2.msra.mxu0 %v634
        %1768 = vmatprep.subr.mxu0 0.0
        %1769 = vmatpush2.msra.mxu0 %v633
        %1770 = vmatprep.subr.mxu0 0.0
        %1771 = vmatpush2.msra.mxu0 %v632
        %1772 = vmatprep.subr.mxu0 0.0
        %1773 = vmatpush2.msra.mxu0 %v631
        %1774 = vmatprep.subr.mxu0 0.0
        %1775 = vmatpush2.msra.mxu0 %v630
        %1776 = vmatprep.subr.mxu0 0.0
        %1777 = vmatpush2.msra.mxu0 %v629
        %1778 = vmatprep.subr.mxu0 0.0
        %1779 = vmatpush2.msra.mxu0 %v628
        %1780 = vmatprep.subr.mxu0 0.0
        %1781 = vmatpush2.msra.mxu0 %v627
        %1782 = vmatprep.subr.mxu0 0.0
        %1783 = vmatpush2.msra.mxu0 %v626
        %1784 = vmatprep.subr.mxu0 0.0
        %1785 = vmatpush2.msra.mxu0 %v625
        %1786 = vmatprep.subr.mxu0 0.0
        %1787 = vmatpush2.msra.mxu0 %v624
        %1788 = vmatprep.subr.mxu0 0.0
        %1789 = vmatpush2.msra.mxu0 %v623
        %1790 = vmatprep.subr.mxu0 0.0
        %1791 = vmatpush2.msra.mxu0 %v622
        %1792 = vmatprep.subr.mxu0 0.0
        %1793 = vmatpush2.msra.mxu0 %v621
        %1794 = vmatprep.subr.mxu0 0.0
        %1795 = vmatpush2.msra.mxu0 %v620
        %1796 = vmatprep.subr.mxu0 0.0
        %1797 = vmatpush2.msra.mxu0 %v619
        %1798 = vmatprep.mubr.f32.mxu0 %v889
        %1799 = vmatmul.mubr.f32.gmra.mxu0 %v887
        %v1800 = vpop.f32.mrf.mxu0
        %v1801 = vadd.f32 %v1731, %v1800
        %v1802 = vpop.f32.mrf.mxu0
        %1803 = vdwg.mxu0
        %1804 = vmatprep.subr.mxu0 0.0
        %1805 = vmatpush1.msra.mxu0 %v650
        %1806 = vmatprep.subr.mxu0 0.0
        %1807 = vmatpush1.msra.mxu0 %v649
        %1808 = vmatprep.subr.mxu0 0.0
        %1809 = vmatpush1.msra.mxu0 %v648
        %1810 = vmatprep.subr.mxu0 0.0
        %1811 = vmatpush1.msra.mxu0 %v647
        %1812 = vmatprep.subr.mxu0 0.0
        %1813 = vmatpush1.msra.mxu0 %v646
        %1814 = vmatprep.subr.mxu0 0.0
        %1815 = vmatpush1.msra.mxu0 %v645
        %1816 = vmatprep.subr.mxu0 0.0
        %1817 = vmatpush1.msra.mxu0 %v644
        %1818 = vmatprep.subr.mxu0 0.0
        %1819 = vmatpush1.msra.mxu0 %v643
        %1820 = vmatprep.subr.mxu0 0.0
        %1821 = vmatpush1.msra.mxu0 %v642
        %1822 = vmatprep.subr.mxu0 0.0
        %1823 = vmatpush1.msra.mxu0 %v641
        %1824 = vmatprep.subr.mxu0 0.0
        %1825 = vmatpush1.msra.mxu0 %v640
        %1826 = vmatprep.subr.mxu0 0.0
        %1827 = vmatpush1.msra.mxu0 %v639
        %1828 = vmatprep.subr.mxu0 0.0
        %1829 = vmatpush1.msra.mxu0 %v638
        %1830 = vmatprep.subr.mxu0 0.0
        %1831 = vmatpush1.msra.mxu0 %v637
        %1832 = vmatprep.subr.mxu0 0.0
        %1833 = vmatpush1.msra.mxu0 %v636
        %1834 = vmatprep.subr.mxu0 0.0
        %1835 = vmatpush1.msra.mxu0 %v635
        %1836 = vmatprep.subr.mxu0 0.0
        %1837 = vmatpush2.msra.mxu0 %v666
        %1838 = vmatprep.subr.mxu0 0.0
        %1839 = vmatpush2.msra.mxu0 %v665
        %1840 = vmatprep.subr.mxu0 0.0
        %1841 = vmatpush2.msra.mxu0 %v664
        %1842 = vmatprep.subr.mxu0 0.0
        %1843 = vmatpush2.msra.mxu0 %v663
        %1844 = vmatprep.subr.mxu0 0.0
        %1845 = vmatpush2.msra.mxu0 %v662
        %1846 = vmatprep.subr.mxu0 0.0
        %1847 = vmatpush2.msra.mxu0 %v661
        %1848 = vmatprep.subr.mxu0 0.0
        %1849 = vmatpush2.msra.mxu0 %v660
        %1850 = vmatprep.subr.mxu0 0.0
        %1851 = vmatpush2.msra.mxu0 %v659
        %1852 = vmatprep.subr.mxu0 0.0
        %1853 = vmatpush2.msra.mxu0 %v658
        %1854 = vmatprep.subr.mxu0 0.0
        %1855 = vmatpush2.msra.mxu0 %v657
        %1856 = vmatprep.subr.mxu0 0.0
        %1857 = vmatpush2.msra.mxu0 %v656
        %1858 = vmatprep.subr.mxu0 0.0
        %1859 = vmatpush2.msra.mxu0 %v655
        %1860 = vmatprep.subr.mxu0 0.0
        %1861 = vmatpush2.msra.mxu0 %v654
        %1862 = vmatprep.subr.mxu0 0.0
        %1863 = vmatpush2.msra.mxu0 %v653
        %1864 = vmatprep.subr.mxu0 0.0
        %1865 = vmatpush2.msra.mxu0 %v652
        %1866 = vmatprep.subr.mxu0 0.0
        %1867 = vmatpush2.msra.mxu0 %v651
        %1868 = vmatprep.mubr.f32.mxu0 %v905
        %1869 = vmatmul.mubr.f32.gmra.mxu0 %v897
        %v1870 = vpop.f32.mrf.mxu0
        %v1871 = vadd.f32 %v1801, %v1870
        %v1872 = vpop.f32.mrf.mxu0
        %1873 = vdwg.mxu0
        %1874 = vmatprep.subr.mxu0 0.0
        %1875 = vmatpush1.msra.mxu0 %v682
        %1876 = vmatprep.subr.mxu0 0.0
        %1877 = vmatpush1.msra.mxu0 %v681
        %1878 = vmatprep.subr.mxu0 0.0
        %1879 = vmatpush1.msra.mxu0 %v680
        %1880 = vmatprep.subr.mxu0 0.0
        %1881 = vmatpush1.msra.mxu0 %v679
        %1882 = vmatprep.subr.mxu0 0.0
        %1883 = vmatpush1.msra.mxu0 %v678
        %1884 = vmatprep.subr.mxu0 0.0
        %1885 = vmatpush1.msra.mxu0 %v677
        %1886 = vmatprep.subr.mxu0 0.0
        %1887 = vmatpush1.msra.mxu0 %v676
        %1888 = vmatprep.subr.mxu0 0.0
        %1889 = vmatpush1.msra.mxu0 %v675
        %1890 = vmatprep.subr.mxu0 0.0
        %1891 = vmatpush1.msra.mxu0 %v674
        %1892 = vmatprep.subr.mxu0 0.0
        %1893 = vmatpush1.msra.mxu0 %v673
        %1894 = vmatprep.subr.mxu0 0.0
        %1895 = vmatpush1.msra.mxu0 %v672
        %1896 = vmatprep.subr.mxu0 0.0
        %1897 = vmatpush1.msra.mxu0 %v671
        %1898 = vmatprep.subr.mxu0 0.0
        %1899 = vmatpush1.msra.mxu0 %v670
        %1900 = vmatprep.subr.mxu0 0.0
        %1901 = vmatpush1.msra.mxu0 %v669
        %1902 = vmatprep.subr.mxu0 0.0
        %1903 = vmatpush1.msra.mxu0 %v668
        %1904 = vmatprep.subr.mxu0 0.0
        %1905 = vmatpush1.msra.mxu0 %v667
        %1906 = vmatprep.subr.mxu0 0.0
        %1907 = vmatpush2.msra.mxu0 %v698
        %1908 = vmatprep.subr.mxu0 0.0
        %1909 = vmatpush2.msra.mxu0 %v697
        %1910 = vmatprep.subr.mxu0 0.0
        %1911 = vmatpush2.msra.mxu0 %v696
        %1912 = vmatprep.subr.mxu0 0.0
        %1913 = vmatpush2.msra.mxu0 %v695
        %1914 = vmatprep.subr.mxu0 0.0
        %1915 = vmatpush2.msra.mxu0 %v694
        %1916 = vmatprep.subr.mxu0 0.0
        %1917 = vmatpush2.msra.mxu0 %v693
        %1918 = vmatprep.subr.mxu0 0.0
        %1919 = vmatpush2.msra.mxu0 %v692
        %1920 = vmatprep.subr.mxu0 0.0
        %1921 = vmatpush2.msra.mxu0 %v691
        %1922 = vmatprep.subr.mxu0 0.0
        %1923 = vmatpush2.msra.mxu0 %v690
        %1924 = vmatprep.subr.mxu0 0.0
        %1925 = vmatpush2.msra.mxu0 %v689
        %1926 = vmatprep.subr.mxu0 0.0
        %1927 = vmatpush2.msra.mxu0 %v688
        %1928 = vmatprep.subr.mxu0 0.0
        %1929 = vmatpush2.msra.mxu0 %v687
        %1930 = vmatprep.subr.mxu0 0.0
        %1931 = vmatpush2.msra.mxu0 %v686
        %1932 = vmatprep.subr.mxu0 0.0
        %1933 = vmatpush2.msra.mxu0 %v685
        %1934 = vmatprep.subr.mxu0 0.0
        %1935 = vmatpush2.msra.mxu0 %v684
        %1936 = vmatprep.subr.mxu0 0.0
        %1937 = vmatpush2.msra.mxu0 %v683
        %1938 = vmatprep.mubr.f32.mxu0 %v906
        %1939 = vmatmul.mubr.f32.gmra.mxu0 %v904
        %v1940 = vpop.f32.mrf.mxu0
        %v1941 = vadd.f32 %v1871, %v1940
        %v1942 = vpop.f32.mrf.mxu0
        %1943 = vdwg.mxu0
        %1944 = vmatprep.subr.mxu0 0.0
        %1945 = vmatpush1.msra.mxu0 %v714
        %1946 = vmatprep.subr.mxu0 0.0
        %1947 = vmatpush1.msra.mxu0 %v713
        %1948 = vmatprep.subr.mxu0 0.0
        %1949 = vmatpush1.msra.mxu0 %v712
        %1950 = vmatprep.subr.mxu0 0.0
        %1951 = vmatpush1.msra.mxu0 %v711
        %1952 = vmatprep.subr.mxu0 0.0
        %1953 = vmatpush1.msra.mxu0 %v710
        %1954 = vmatprep.subr.mxu0 0.0
        %1955 = vmatpush1.msra.mxu0 %v709
        %1956 = vmatprep.subr.mxu0 0.0
        %1957 = vmatpush1.msra.mxu0 %v708
        %1958 = vmatprep.subr.mxu0 0.0
        %1959 = vmatpush1.msra.mxu0 %v707
        %1960 = vmatprep.subr.mxu0 0.0
        %1961 = vmatpush1.msra.mxu0 %v706
        %1962 = vmatprep.subr.mxu0 0.0
        %1963 = vmatpush1.msra.mxu0 %v705
        %1964 = vmatprep.subr.mxu0 0.0
        %1965 = vmatpush1.msra.mxu0 %v704
        %1966 = vmatprep.subr.mxu0 0.0
        %1967 = vmatpush1.msra.mxu0 %v703
        %1968 = vmatprep.subr.mxu0 0.0
        %1969 = vmatpush1.msra.mxu0 %v702
        %1970 = vmatprep.subr.mxu0 0.0
        %1971 = vmatpush1.msra.mxu0 %v701
        %1972 = vmatprep.subr.mxu0 0.0
        %1973 = vmatpush1.msra.mxu0 %v700
        %1974 = vmatprep.subr.mxu0 0.0
        %1975 = vmatpush1.msra.mxu0 %v699
        %1976 = vmatprep.subr.mxu0 0.0
        %1977 = vmatpush2.msra.mxu0 %v730
        %1978 = vmatprep.subr.mxu0 0.0
        %1979 = vmatpush2.msra.mxu0 %v729
        %1980 = vmatprep.subr.mxu0 0.0
        %1981 = vmatpush2.msra.mxu0 %v728
        %1982 = vmatprep.subr.mxu0 0.0
        %1983 = vmatpush2.msra.mxu0 %v727
        %1984 = vmatprep.subr.mxu0 0.0
        %1985 = vmatpush2.msra.mxu0 %v726
        %1986 = vmatprep.subr.mxu0 0.0
        %1987 = vmatpush2.msra.mxu0 %v725
        %1988 = vmatprep.subr.mxu0 0.0
        %1989 = vmatpush2.msra.mxu0 %v724
        %1990 = vmatprep.subr.mxu0 0.0
        %1991 = vmatpush2.msra.mxu0 %v723
        %1992 = vmatprep.subr.mxu0 0.0
        %1993 = vmatpush2.msra.mxu0 %v722
        %1994 = vmatprep.subr.mxu0 0.0
        %1995 = vmatpush2.msra.mxu0 %v721
        %1996 = vmatprep.subr.mxu0 0.0
        %1997 = vmatpush2.msra.mxu0 %v720
        %1998 = vmatprep.subr.mxu0 0.0
        %1999 = vmatpush2.msra.mxu0 %v719
        %2000 = vmatprep.subr.mxu0 0.0
        %2001 = vmatpush2.msra.mxu0 %v718
        %2002 = vmatprep.subr.mxu0 0.0
        %2003 = vmatpush2.msra.mxu0 %v717
        %2004 = vmatprep.subr.mxu0 0.0
        %2005 = vmatpush2.msra.mxu0 %v716
        %2006 = vmatprep.subr.mxu0 0.0
        %2007 = vmatpush2.msra.mxu0 %v715
        %2008 = vmatprep.mubr.f32.mxu0 %v922
        %2009 = vmatmul.mubr.f32.gmra.mxu0 %v914
        %v2010 = vpop.f32.mrf.mxu0
        %v2011 = vadd.f32 %v1941, %v2010
        %v2012 = vpop.f32.mrf.mxu0
        %2013 = vdwg.mxu0
        %2014 = vmatprep.subr.mxu0 0.0
        %2015 = vmatpush1.msra.mxu0 %v746
        %2016 = vmatprep.subr.mxu0 0.0
        %2017 = vmatpush1.msra.mxu0 %v745
        %2018 = vmatprep.subr.mxu0 0.0
        %2019 = vmatpush1.msra.mxu0 %v744
        %2020 = vmatprep.subr.mxu0 0.0
        %2021 = vmatpush1.msra.mxu0 %v743
        %2022 = vmatprep.subr.mxu0 0.0
        %2023 = vmatpush1.msra.mxu0 %v742
        %2024 = vmatprep.subr.mxu0 0.0
        %2025 = vmatpush1.msra.mxu0 %v741
        %2026 = vmatprep.subr.mxu0 0.0
        %2027 = vmatpush1.msra.mxu0 %v740
        %2028 = vmatprep.subr.mxu0 0.0
        %2029 = vmatpush1.msra.mxu0 %v739
        %2030 = vmatprep.subr.mxu0 0.0
        %2031 = vmatpush1.msra.mxu0 %v738
        %2032 = vmatprep.subr.mxu0 0.0
        %2033 = vmatpush1.msra.mxu0 %v737
        %2034 = vmatprep.subr.mxu0 0.0
        %2035 = vmatpush1.msra.mxu0 %v736
        %2036 = vmatprep.subr.mxu0 0.0
        %2037 = vmatpush1.msra.mxu0 %v735
        %2038 = vmatprep.subr.mxu0 0.0
        %2039 = vmatpush1.msra.mxu0 %v734
        %2040 = vmatprep.subr.mxu0 0.0
        %2041 = vmatpush1.msra.mxu0 %v733
        %2042 = vmatprep.subr.mxu0 0.0
        %2043 = vmatpush1.msra.mxu0 %v732
        %2044 = vmatprep.subr.mxu0 0.0
        %2045 = vmatpush1.msra.mxu0 %v731
        %2046 = vmatprep.subr.mxu0 0.0
        %2047 = vmatpush2.msra.mxu0 %v762
        %2048 = vmatprep.subr.mxu0 0.0
        %2049 = vmatpush2.msra.mxu0 %v761
        %2050 = vmatprep.subr.mxu0 0.0
        %2051 = vmatpush2.msra.mxu0 %v760
        %2052 = vmatprep.subr.mxu0 0.0
        %2053 = vmatpush2.msra.mxu0 %v759
        %2054 = vmatprep.subr.mxu0 0.0
        %2055 = vmatpush2.msra.mxu0 %v758
        %2056 = vmatprep.subr.mxu0 0.0
        %2057 = vmatpush2.msra.mxu0 %v757
        %2058 = vmatprep.subr.mxu0 0.0
        %2059 = vmatpush2.msra.mxu0 %v756
        %2060 = vmatprep.subr.mxu0 0.0
        %2061 = vmatpush2.msra.mxu0 %v755
        %2062 = vmatprep.subr.mxu0 0.0
        %2063 = vmatpush2.msra.mxu0 %v754
        %2064 = vmatprep.subr.mxu0 0.0
        %2065 = vmatpush2.msra.mxu0 %v753
        %2066 = vmatprep.subr.mxu0 0.0
        %2067 = vmatpush2.msra.mxu0 %v752
        %2068 = vmatprep.subr.mxu0 0.0
        %2069 = vmatpush2.msra.mxu0 %v751
        %2070 = vmatprep.subr.mxu0 0.0
        %2071 = vmatpush2.msra.mxu0 %v750
        %2072 = vmatprep.subr.mxu0 0.0
        %2073 = vmatpush2.msra.mxu0 %v749
        %2074 = vmatprep.subr.mxu0 0.0
        %2075 = vmatpush2.msra.mxu0 %v748
        %2076 = vmatprep.subr.mxu0 0.0
        %2077 = vmatpush2.msra.mxu0 %v747
        %2078 = vmatprep.mubr.f32.mxu0 %v923
        %2079 = vmatmul.mubr.f32.gmra.mxu0 %v921
        %v2080 = vpop.f32.mrf.mxu0
        %v2081 = vadd.f32 %v2011, %v2080
        %v2082 = vpop.f32.mrf.mxu0
        %2083 = vdwg.mxu0
        %2084 = vmatprep.subr.mxu0 0.0
        %2085 = vmatpush1.msra.mxu0 %v778
        %2086 = vmatprep.subr.mxu0 0.0
        %2087 = vmatpush1.msra.mxu0 %v777
        %2088 = vmatprep.subr.mxu0 0.0
        %2089 = vmatpush1.msra.mxu0 %v776
        %2090 = vmatprep.subr.mxu0 0.0
        %2091 = vmatpush1.msra.mxu0 %v775
        %2092 = vmatprep.subr.mxu0 0.0
        %2093 = vmatpush1.msra.mxu0 %v774
        %2094 = vmatprep.subr.mxu0 0.0
        %2095 = vmatpush1.msra.mxu0 %v773
        %2096 = vmatprep.subr.mxu0 0.0
        %2097 = vmatpush1.msra.mxu0 %v772
        %2098 = vmatprep.subr.mxu0 0.0
        %2099 = vmatpush1.msra.mxu0 %v771
        %2100 = vmatprep.subr.mxu0 0.0
        %2101 = vmatpush1.msra.mxu0 %v770
        %2102 = vmatprep.subr.mxu0 0.0
        %2103 = vmatpush1.msra.mxu0 %v769
        %2104 = vmatprep.subr.mxu0 0.0
        %2105 = vmatpush1.msra.mxu0 %v768
        %2106 = vmatprep.subr.mxu0 0.0
        %2107 = vmatpush1.msra.mxu0 %v767
        %2108 = vmatprep.subr.mxu0 0.0
        %2109 = vmatpush1.msra.mxu0 %v766
        %2110 = vmatprep.subr.mxu0 0.0
        %2111 = vmatpush1.msra.mxu0 %v765
        %2112 = vmatprep.subr.mxu0 0.0
        %2113 = vmatpush1.msra.mxu0 %v764
        %2114 = vmatprep.subr.mxu0 0.0
        %2115 = vmatpush1.msra.mxu0 %v763
        %2116 = vmatprep.subr.mxu0 0.0
        %2117 = vmatpush2.msra.mxu0 0.0
        %2118 = vmatprep.subr.mxu0 0.0
        %2119 = vmatpush2.msra.mxu0 0.0
        %2120 = vmatprep.subr.mxu0 0.0
        %2121 = vmatpush2.msra.mxu0 0.0
        %2122 = vmatprep.subr.mxu0 0.0
        %2123 = vmatpush2.msra.mxu0 0.0
        %2124 = vmatprep.subr.mxu0 0.0
        %2125 = vmatpush2.msra.mxu0 0.0
        %2126 = vmatprep.subr.mxu0 0.0
        %2127 = vmatpush2.msra.mxu0 0.0
        %2128 = vmatprep.subr.mxu0 0.0
        %2129 = vmatpush2.msra.mxu0 0.0
        %2130 = vmatprep.subr.mxu0 0.0
        %2131 = vmatpush2.msra.mxu0 0.0
        %2132 = vmatprep.subr.mxu0 0.0
        %2133 = vmatpush2.msra.mxu0 0.0
        %2134 = vmatprep.subr.mxu0 0.0
        %2135 = vmatpush2.msra.mxu0 0.0
        %2136 = vmatprep.subr.mxu0 0.0
        %2137 = vmatpush2.msra.mxu0 0.0
        %2138 = vmatprep.subr.mxu0 0.0
        %2139 = vmatpush2.msra.mxu0 0.0
        %2140 = vmatprep.subr.mxu0 0.0
        %2141 = vmatpush2.msra.mxu0 0.0
        %2142 = vmatprep.subr.mxu0 0.0
        %2143 = vmatpush2.msra.mxu0 0.0
        %2144 = vmatprep.subr.mxu0 0.0
        %2145 = vmatpush2.msra.mxu0 0.0
        %2146 = vmatprep.subr.mxu0 0.0
        %2147 = vmatpush2.msra.mxu0 0.0
        %2148 = vmatprep.mubr.f32.mxu0 0.0
        %2149 = vmatmul.mubr.f32.gmra.mxu0 %v930
        %v2150 = vpop.f32.mrf.mxu0
        %v2151 = vadd.f32 %v2081, %v2150
        %v2152 = vpop.f32.mrf.mxu0
        %2153 = vdwg.mxu0
        %v2154 = vadd.f32 %v241, %v2151
        %vm2155 = vcmask 402432
        %2156 = vst.msk [vmem:[#allocation2] sm:$0x3] %vm2155, %v2154
        %p2157 = scmp.eq.s32.totalorder %s17, 3
        // Predicated region
        $region45: #{network_forward.5} parent=39 // pred_check
          %p2158 = pneg %p2157
        $region46: #{network_forward.5} parent=39 // pred_check_branch
          %2160 = sbr.rel (%p2158) target = $region48
        $region47: #{network_forward.5} parent=39 // pred_region
          %v2161 = vld [vmem:[#allocation2] sm:$0x3]
          %v2162 = vld [vmem:[%s2] sm:$0x1]
          %v2164 = vlaneseq
          %v2165 = vshrl.u32 %v2164, 7
          %v2166 = vsub.s32 0, %v2165
          %v2167 = vrot.slane %v2162, %v2166
          %v2169 = vadd.f32 %v2161, %v2167
          %v2170 = vmax.f32 %v2169, 0.0
          %v2171 = vld [vmem:[%s3] sm:$0xff]
          %v2172 = vld [vmem:[%s3 + $0x8] sm:$0xff]
          %v2173 = vld [vmem:[%s3 + $0x10] sm:$0xff]
          %v2174 = vld [vmem:[%s3 + $0x18] sm:$0xff]
          %v2175 = vld [vmem:[%s3 + $0x20] sm:$0xff]
          %v2176 = vld [vmem:[%s3 + $0x28] sm:$0xff]
          %v2177 = vld [vmem:[%s3 + $0x30] sm:$0x3]
          %v2178 = vld [vmem:[%s4] sm:$0x1]
          %v2180 = vlaneseq
          %v2181 = vshrl.u32 %v2180, 7
          %v2182 = vsub.s32 0, %v2181
          %v2183 = vrot.slane %v2178, %v2182
          %vm2185 = vcmask 408576
          %v2187 = vsel %vm2185, %v2170, 0
          %vm2189 = vcmask 1041408
          %v2191 = vsel %vm2189, %v2177, 0
          %2193 = vmatprep.subr.mxu0 0.0
          %2194 = vmatpush1.msra.mxu0 0.0
          %2195 = vmatprep.subr.mxu0 0.0
          %2196 = vmatpush1.msra.mxu0 0.0
          %2197 = vmatprep.subr.mxu0 0.0
          %2198 = vmatpush1.msra.mxu0 0.0
          %2199 = vmatprep.subr.mxu0 0.0
          %2200 = vmatpush1.msra.mxu0 0.0
          %2201 = vmatprep.subr.mxu0 0.0
          %2202 = vmatpush1.msra.mxu0 0.0
          %2203 = vmatprep.subr.mxu0 0.0
          %2204 = vmatpush1.msra.mxu0 0.0
          %2205 = vmatprep.subr.mxu0 0.0
          %2206 = vmatpush1.msra.mxu0 0.0
          %2207 = vmatprep.subr.mxu0 0.0
          %2208 = vmatpush1.msra.mxu0 0.0
          %2209 = vmatprep.subr.mxu0 0.0
          %2210 = vmatpush1.msra.mxu0 0.0
          %2211 = vmatprep.subr.mxu0 0.0
          %2212 = vmatpush1.msra.mxu0 %v2191
          %2213 = vmatprep.subr.mxu0 0.0
          %2214 = vmatpush1.msra.mxu0 %v2176
          %2215 = vmatprep.subr.mxu0 0.0
          %2216 = vmatpush1.msra.mxu0 %v2175
          %2217 = vmatprep.subr.mxu0 0.0
          %2218 = vmatpush1.msra.mxu0 %v2174
          %2219 = vmatprep.subr.mxu0 0.0
          %2220 = vmatpush1.msra.mxu0 %v2173
          %2221 = vmatprep.subr.mxu0 0.0
          %2222 = vmatpush1.msra.mxu0 %v2172
          %2223 = vmatprep.subr.mxu0 0.0
          %2224 = vmatpush1.msra.mxu0 %v2171
          %2225 = vmatprep.subr.mxu0 0.0
          %2226 = vmatpush2.msra.mxu0 0.0
          %2227 = vmatprep.subr.mxu0 0.0
          %2228 = vmatpush2.msra.mxu0 0.0
          %2229 = vmatprep.subr.mxu0 0.0
          %2230 = vmatpush2.msra.mxu0 0.0
          %2231 = vmatprep.subr.mxu0 0.0
          %2232 = vmatpush2.msra.mxu0 0.0
          %2233 = vmatprep.subr.mxu0 0.0
          %2234 = vmatpush2.msra.mxu0 0.0
          %2235 = vmatprep.subr.mxu0 0.0
          %2236 = vmatpush2.msra.mxu0 0.0
          %2237 = vmatprep.subr.mxu0 0.0
          %2238 = vmatpush2.msra.mxu0 0.0
          %2239 = vmatprep.subr.mxu0 0.0
          %2240 = vmatpush2.msra.mxu0 0.0
          %2241 = vmatprep.subr.mxu0 0.0
          %2242 = vmatpush2.msra.mxu0 0.0
          %2243 = vmatprep.subr.mxu0 0.0
          %2244 = vmatpush2.msra.mxu0 0.0
          %2245 = vmatprep.subr.mxu0 0.0
          %2246 = vmatpush2.msra.mxu0 0.0
          %2247 = vmatprep.subr.mxu0 0.0
          %2248 = vmatpush2.msra.mxu0 0.0
          %2249 = vmatprep.subr.mxu0 0.0
          %2250 = vmatpush2.msra.mxu0 0.0
          %2251 = vmatprep.subr.mxu0 0.0
          %2252 = vmatpush2.msra.mxu0 0.0
          %2253 = vmatprep.subr.mxu0 0.0
          %2254 = vmatpush2.msra.mxu0 0.0
          %2255 = vmatprep.subr.mxu0 0.0
          %2256 = vmatpush2.msra.mxu0 0.0
          %2257 = vmatprep.mubr.f32.mxu0 0.0
          %2258 = vmatmul.mubr.f32.gmra.mxu0 %v2187
          %v2259 = vpop.f32.mrf.mxu0
          %v2260 = vadd.f32 %v2183, %v2259
          %v2261 = vpop.f32.mrf.mxu0
          %2262 = vdwg.mxu0
          %vm2263 = vcmask 9216
          %v2264 = vsel %vm2263, %v2260, -inf
          %2265 = vmax.xlane.f32.xlu0 %v2264
          %v2266 = vpop.xlane.xlu0 %2265
          %v2267 = vsub.f32 %v2260, %v2266
          %v2268 = vmul.f32 %v2267, 1.442695
          %v2269 = vpow.pop %v2268
          %v2270 = vsel %vm2263, %v2269, 0.0
          %2271 = vadd.xlane.f32.xlu0 %v2270
          %v2272 = vpop.xlane.xlu0 %2271
          %v2273 = vlog2.pop %v2272
          %v2274 = vmul.f32 %v2273, 0.6931472
          %v2275 = vsub.f32 %v2267, %v2274
          %2276 = vst.msk [vmem:[#allocation3] sm:$0x3] %vm2263, %v2275
        $region48: #{network_forward.5} parent=39 // pred_fallthru
          _
        // Predicated region
        $region49: #{network_forward.5} parent=39 // pred_check
          %p2277 = pneg %p145
        $region50: #{network_forward.5} parent=39 // pred_check_branch
          %2279 = sbr.rel (%p2277) target = $region52
        $region51: #{network_forward.5} parent=39 // pred_region
          %s2281 = ssub.s32 32, 32
          %2282 = vsyncadd [#allocation4], %s2281
          %s2284 = sshll.u32 [#allocation3], 4
          %s2285 = int_to_ptr.vmem [resolvable:$true] %s2284
          %2287 = dma.vmem_to_hbm [thread:$0]  %s2285, 32, %s5, [#allocation4]
        $region52: #{network_forward.5} parent=39 // pred_fallthru
          _
        // Predicated region
        $region53: #{network_forward.5} parent=39 // pred_check
          %p2288 = pneg %p145
        $region54: #{network_forward.5} parent=39 // pred_check_branch
          %2290 = sbr.rel (%p2288) target = $region56
        $region55: #{network_forward.5} parent=39 // pred_region
          %2291 = dma.done [#allocation4], 32
        $region56: #{network_forward.5} parent=39 // pred_fallthru
          _
      $region40: #{network_forward.5} parent=5 // pred_fallthru
        _
      %p2292 = scmp.le.s32.totalorder 2, %s12
      // Predicated region
      $region57: #{network_forward.5} parent=5 // pred_check
        %p2293 = pneg %p2292
      $region58: #{network_forward.5} parent=5 // pred_check_branch
        %2295 = sbr.rel (%p2293) target = $region60
      $region59: #{network_forward.5} parent=5 // pred_region
        %s2296 = ssub.s32 %s12, 2
      $region60: #{network_forward.5} parent=5 // pred_fallthru
        _
    $region6: #{network_forward.5} parent=1 // loop_footer
      %s16 = sadd.s32 1, %s12
    $region7: #{network_forward.5} parent=1 // loop_footer_branch
      %11 = sbr.rel target = $region3
    $region8: #{network_forward.5} parent=1 // loop_exit
      _
    %2297 = vsyncpa [#allocation4], 1
    %s2298 = scalar_lea.sflag [#allocation4], 1
    %2299 = vsyncpa %s2298, 1

</llo_original>
